<compile_context>
chip_gen: v6e
topology: v6e:2x2x1
jax: 0.10.0
libtpu: 0.0.40
codegen_flags: <defaults>
</compile_context>

<pallas_src>
import jax
import jax.numpy as jnp
from jax.experimental import pallas as pl
from jax.experimental.pallas import tpu as pltpu


def _round_up(a, m):
    return (a + m - 1) // m * m


def _pad_to(arr, axis, size):
    pad = size - arr.shape[axis]
    if pad <= 0:
        return arr
    widths = [(0, 0)] * arr.ndim
    widths[axis] = (0, pad)
    return jnp.pad(arr, widths)


def _make_mbd_kernel(batch, out_features, intermediate_features, tb1, tb2,
                     b2_padded):
    O = out_features
    I = intermediate_features
    need_mask = (b2_padded != batch)   # only when the b2/lane axis is padded

    def mbd_kernel(x1_ref, t_ref, xt_ref, tt_ref, o_ref, acc_ref, m1_ref):
        j = pl.program_id(1)

        @pl.when(j == 0)
        def _init():
            acc_ref[...] = jnp.zeros_like(acc_ref)
            # Hot path 1 (MXU): M tile for this b1 block, computed once per b1
            # tile and cached in VMEM scratch across the whole b2 sweep.
            m1_ref[...] = jnp.dot(x1_ref[...], t_ref[...],
                                  preferred_element_type=jnp.float32)

        # Transposed M tile for the current b2 block, straight off the MXU
        # (no in-kernel XLU transpose):  m2t[o*I + i, b2] = M[b2, o, i].
        m2t = jnp.dot(tt_ref[...], xt_ref[...],
                      preferred_element_type=jnp.float32)        # (O*I, tb2)
        m1 = m1_ref[...]                                         # (tb1, O*I)

        if need_mask:
            lane = jax.lax.broadcasted_iota(jnp.int32, (tb1, tb2), 1)
            valid = (lane + j * tb2) < batch                     # padded b2 cols

        # Hot path 2 (VPU + EUP): pairwise L1 / exp with the b2 tile on the
        # lane axis; the sum over i is a plain VPU accumulate (no per-pair
        # cross-lane reduce), only the final sum over b2 hits the XLU.
        cols = []
        for o in range(O):
            m1_o = m1[:, o * I:(o + 1) * I]                      # (tb1, I)
            m2t_o = m2t[o * I:(o + 1) * I, :]                    # (I, tb2)
            l1 = jnp.zeros((tb1, tb2), jnp.float32)
            for i in range(I):                                   # short static unroll
                l1 = l1 + jnp.abs(m1_o[:, i:i + 1] - m2t_o[i:i + 1, :])
            sim = jnp.exp(-l1)                                   # EUP; co-issues free
            if need_mask:
                sim = jnp.where(valid, sim, 0.0)
            cols.append(jnp.sum(sim, axis=1, keepdims=True))     # (tb1, 1)

        acc_ref[...] += jnp.concatenate(cols, axis=1)            # (tb1, O)

        @pl.when(j == pl.num_programs(1) - 1)
        def _finalize():
            # Diagonal similarity is exp(0) = 1 exactly once per valid row:
            # subtract it instead of masking (B, B) pairs.
            o_ref[...] = (acc_ref[...] - 1.0).astype(o_ref.dtype)

    return mbd_kernel


def minibatch_discrimination(x, T, out_features, intermediate_features):
    """Pallas equivalent of MinibatchDiscrimination.forward."""
    B, F = x.shape
    O, I = out_features, intermediate_features
    OI = O * I
    assert T.shape == (F, OI)

    if B <= 1:
        # Degenerate case handled in plain JAX (matches the PyTorch branch).
        zeros = jnp.zeros((B, O), dtype=x.dtype)
        return jnp.concatenate([x, zeros], axis=1)

    # ---- tile sizes (working set stays small even on v7x's 64 MiB VMEM) ----
    if B >= 128:
        TB1, TB2 = 128, 128
    else:
        TB1 = _round_up(B, 8)   # sublane-aligned b1 tile
        TB2 = B                 # lane axis: a full (unpadded) dim is allowed
    B1_pad = _round_up(B, TB1)
    B2_pad = _round_up(B, TB2)

    x_f32 = x.astype(jnp.float32)
    T_f32 = T.astype(jnp.float32)
    x1p = _pad_to(x_f32, 0, B1_pad)        # (B1_pad, F)  rows  (b1 side)
    xtp = _pad_to(x_f32.T, 1, B2_pad)      # (F, B2_pad)  cols  (b2 side)
    Tt = T_f32.T                           # (O*I, F)

    grid = (B1_pad // TB1, B2_pad // TB2)
    kernel = _make_mbd_kernel(B, O, I, TB1, TB2, B2_pad)

    o_b = pl.pallas_call(
        kernel,
        out_shape=jax.ShapeDtypeStruct((B1_pad, O), jnp.float32),
        grid_spec=pltpu.PrefetchScalarGridSpec(
            num_scalar_prefetch=0,
            grid=grid,
            in_specs=[
                pl.BlockSpec((TB1, F), lambda i, j: (i, 0)),   # x rows (b1 tile)
                pl.BlockSpec((F, OI), lambda i, j: (0, 0)),    # T (resident)
                pl.BlockSpec((F, TB2), lambda i, j: (0, j)),   # x^T cols (b2 tile)
                pl.BlockSpec((OI, F), lambda i, j: (0, 0)),    # T^T (resident)
            ],
            out_specs=pl.BlockSpec((TB1, O), lambda i, j: (i, 0)),
            scratch_shapes=[
                pltpu.VMEM((TB1, O), jnp.float32),    # o_b accumulator
                pltpu.VMEM((TB1, OI), jnp.float32),   # cached M tile (b1 block)
            ],
        ),
        compiler_params=pltpu.CompilerParams(
            dimension_semantics=("parallel", "arbitrary"),
            vmem_limit_bytes=32 * 1024 * 1024,
        ),
    )(x1p, T_f32, xtp, Tt)

    o_b = o_b[:B].astype(x.dtype)
    # Concat outside the kernel: avoids the misaligned fused concat and the
    # redundant VMEM->HBM pass-through of x on the kernel's critical path.
    return jnp.concatenate([x, o_b], axis=1)


def _reference(x, T, out_features, intermediate_features):
    """Pure-JAX reference mirroring the PyTorch semantics, for validation."""
    B = x.shape[0]
    if B <= 1:
        return jnp.concatenate(
            [x, jnp.zeros((B, out_features), x.dtype)], axis=1)
    M = jnp.dot(x, T, precision=jax.lax.Precision.HIGHEST)
    M = M.reshape(B, out_features, intermediate_features)
    l1 = jnp.sum(jnp.abs(M[:, None] - M[None, :]), axis=3)
    sim = jnp.exp(-l1)
    mask = 1.0 - jnp.eye(B, dtype=x.dtype)[:, :, None]
    o_b = jnp.sum(sim * mask, axis=1)
    return jnp.concatenate([x, o_b], axis=1)


if __name__ == "__main__":
    # Small shapes consistent with the module's forward:
    #   x: (batch, in_features), T: (in_features, out_features * intermediate)
    batch = 8
    in_features = 32
    out_features = 16
    intermediate_features = 16

    key = jax.random.PRNGKey(0)
    kx, kt = jax.random.split(key)
    # Mild scale on x so exp(-l1) is not uniformly ~0 and the check is meaningful.
    x = 0.02 * jax.random.normal(kx, (batch, in_features), dtype=jnp.float32)
    # nn.init.normal_(T, 0, 1) -> deterministic standard-normal init here.
    T = jax.random.normal(
        kt, (in_features, out_features * intermediate_features),
        dtype=jnp.float32)

    out = minibatch_discrimination(x, T, out_features, intermediate_features)
    out = jax.block_until_ready(out)
    ref = _reference(x, T, out_features, intermediate_features)
    assert out.shape == (batch, in_features + out_features), out.shape
    assert jnp.allclose(out, ref, atol=1e-4, rtol=1e-4), "mismatch vs reference"

    # Second case: batch not a multiple of 8 tile (exercises b1-side padding).
    batch2 = 12
    x2 = 0.02 * jax.random.normal(
        jax.random.PRNGKey(1), (batch2, in_features), dtype=jnp.float32)
    out2 = jax.block_until_ready(
        minibatch_discrimination(x2, T, out_features, intermediate_features))
    ref2 = _reference(x2, T, out_features, intermediate_features)
    assert out2.shape == (batch2, in_features + out_features), out2.shape
    assert jnp.allclose(out2, ref2, atol=1e-4, rtol=1e-4), "mismatch (padded batch)"

    print("KERNEL_OK")
</pallas_src>

<mosaic_0001>
module attributes {stable_mosaic.version = 11 : i64} {
  func.func @mbd_kernel(%arg0: i32, %arg1: i32, %arg2: memref<8x32xf32, #tpu.memory_space<vmem>>, %arg3: memref<32x256xf32, #tpu.memory_space<vmem>>, %arg4: memref<32x8xf32, #tpu.memory_space<vmem>>, %arg5: memref<256x32xf32, #tpu.memory_space<vmem>>, %arg6: memref<8x16xf32, #tpu.memory_space<vmem>>, %arg7: memref<8x16xf32, #tpu.memory_space<vmem>>, %arg8: memref<8x256xf32, #tpu.memory_space<vmem>>) attributes {dimension_semantics = [#tpu.dimension_semantics<parallel>, #tpu.dimension_semantics<arbitrary>], iteration_bounds = array<i64: 1, 1>, scalar_prefetch = 0 : i64, scratch_operands = 2 : i64, tpu.core_type = #tpu.core_type<tc>, window_params = [{transform_indices = @transform_0, window_bounds = array<i64: 8, 32>}, {pipeline_mode = #tpu.pipeline_mode<synchronous>, transform_indices = @transform_1, window_bounds = array<i64: 32, 256>}, {transform_indices = @transform_2, window_bounds = array<i64: 32, 8>}, {pipeline_mode = #tpu.pipeline_mode<synchronous>, transform_indices = @transform_3, window_bounds = array<i64: 256, 32>}, {transform_indices = @transform_4, window_bounds = array<i64: 8, 16>}]} {
    %c0_i32 = arith.constant 0 : i32
    %0 = arith.cmpi eq, %arg1, %c0_i32 : i32
    %1 = arith.extui %0 : i1 to i32
    %c0_i32_0 = arith.constant 0 : i32
    %2 = arith.cmpi ne, %1, %c0_i32_0 : i32
    scf.if %2 {
      %cst_60 = arith.constant 0.000000e+00 : f32
      %1934 = vector.broadcast %cst_60 : f32 to vector<8x16xf32>
      %c0_61 = arith.constant 0 : index
      %c0_62 = arith.constant 0 : index
      %1935 = vector.load %arg7[%c0_61, %c0_62] : memref<8x16xf32, #tpu.memory_space<vmem>>, vector<8x16xf32>
      tpu.vector_store %arg7[%c0_61, %c0_62], %1934 {strides = array<i32>} : memref<8x16xf32, #tpu.memory_space<vmem>>, vector<8x16xf32>,
      %c0_63 = arith.constant 0 : index
      %c0_64 = arith.constant 0 : index
      %1936 = vector.load %arg2[%c0_63, %c0_64] : memref<8x32xf32, #tpu.memory_space<vmem>>, vector<8x32xf32>
      %c0_65 = arith.constant 0 : index
      %c0_66 = arith.constant 0 : index
      %1937 = vector.load %arg3[%c0_65, %c0_66] : memref<32x256xf32, #tpu.memory_space<vmem>>, vector<32x256xf32>
      %cst_67 = arith.constant dense<0.000000e+00> : vector<8x256xf32>
      %1938 = tpu.matmul %1936, %1937, %cst_67 {dimension_numbers = #tpu.dot_dimension_numbers<[1], [0], [0], [1], [0, 0, 1, 1], [], []>} : vector<8x32xf32>, vector<32x256xf32>, vector<8x256xf32> -> vector<8x256xf32>
      %c0_68 = arith.constant 0 : index
      %c0_69 = arith.constant 0 : index
      %1939 = vector.load %arg8[%c0_68, %c0_69] : memref<8x256xf32, #tpu.memory_space<vmem>>, vector<8x256xf32>
      tpu.vector_store %arg8[%c0_68, %c0_69], %1938 {strides = array<i32>} : memref<8x256xf32, #tpu.memory_space<vmem>>, vector<8x256xf32>,
    } else {
    }
    %c0 = arith.constant 0 : index
    %c0_1 = arith.constant 0 : index
    %3 = vector.load %arg5[%c0, %c0_1] : memref<256x32xf32, #tpu.memory_space<vmem>>, vector<256x32xf32>
    %c0_2 = arith.constant 0 : index
    %c0_3 = arith.constant 0 : index
    %4 = vector.load %arg4[%c0_2, %c0_3] : memref<32x8xf32, #tpu.memory_space<vmem>>, vector<32x8xf32>
    %cst = arith.constant dense<0.000000e+00> : vector<256x8xf32>
    %5 = tpu.matmul %3, %4, %cst {dimension_numbers = #tpu.dot_dimension_numbers<[1], [0], [0], [1], [0, 0, 1, 1], [], []>} : vector<256x32xf32>, vector<32x8xf32>, vector<256x8xf32> -> vector<256x8xf32>
    %c0_4 = arith.constant 0 : index
    %c0_5 = arith.constant 0 : index
    %6 = vector.load %arg8[%c0_4, %c0_5] : memref<8x256xf32, #tpu.memory_space<vmem>>, vector<8x256xf32>
    %7 = vector.extract_strided_slice %6 {offsets = [0, 0], sizes = [8, 16], strides = [1, 1]} : vector<8x256xf32> to vector<8x16xf32>
    %8 = vector.extract_strided_slice %5 {offsets = [0, 0], sizes = [16, 8], strides = [1, 1]} : vector<256x8xf32> to vector<16x8xf32>
    %cst_6 = arith.constant 0.000000e+00 : f32
    %9 = vector.broadcast %cst_6 : f32 to vector<8x8xf32>
    %10 = vector.extract_strided_slice %7 {offsets = [0, 0], sizes = [8, 1], strides = [1, 1]} : vector<8x16xf32> to vector<8x1xf32>
    %11 = vector.extract_strided_slice %8 {offsets = [0, 0], sizes = [1, 8], strides = [1, 1]} : vector<16x8xf32> to vector<1x8xf32>
    %12 = vector.broadcast %10 : vector<8x1xf32> to vector<8x8xf32>
    %13 = vector.broadcast %11 : vector<1x8xf32> to vector<8x8xf32>
    %14 = arith.subf %12, %13 : vector<8x8xf32>
    %15 = math.absf %14 : vector<8x8xf32>
    %16 = arith.addf %9, %15 : vector<8x8xf32>
    %17 = vector.extract_strided_slice %7 {offsets = [0, 1], sizes = [8, 1], strides = [1, 1]} : vector<8x16xf32> to vector<8x1xf32>
    %18 = vector.extract_strided_slice %8 {offsets = [1, 0], sizes = [1, 8], strides = [1, 1]} : vector<16x8xf32> to vector<1x8xf32>
    %19 = vector.broadcast %17 : vector<8x1xf32> to vector<8x8xf32>
    %20 = vector.broadcast %18 : vector<1x8xf32> to vector<8x8xf32>
    %21 = arith.subf %19, %20 : vector<8x8xf32>
    %22 = math.absf %21 : vector<8x8xf32>
    %23 = arith.addf %16, %22 : vector<8x8xf32>
    %24 = vector.extract_strided_slice %7 {offsets = [0, 2], sizes = [8, 1], strides = [1, 1]} : vector<8x16xf32> to vector<8x1xf32>
    %25 = vector.extract_strided_slice %8 {offsets = [2, 0], sizes = [1, 8], strides = [1, 1]} : vector<16x8xf32> to vector<1x8xf32>
    %26 = vector.broadcast %24 : vector<8x1xf32> to vector<8x8xf32>
    %27 = vector.broadcast %25 : vector<1x8xf32> to vector<8x8xf32>
    %28 = arith.subf %26, %27 : vector<8x8xf32>
    %29 = math.absf %28 : vector<8x8xf32>
    %30 = arith.addf %23, %29 : vector<8x8xf32>
    %31 = vector.extract_strided_slice %7 {offsets = [0, 3], sizes = [8, 1], strides = [1, 1]} : vector<8x16xf32> to vector<8x1xf32>
    %32 = vector.extract_strided_slice %8 {offsets = [3, 0], sizes = [1, 8], strides = [1, 1]} : vector<16x8xf32> to vector<1x8xf32>
    %33 = vector.broadcast %31 : vector<8x1xf32> to vector<8x8xf32>
    %34 = vector.broadcast %32 : vector<1x8xf32> to vector<8x8xf32>
    %35 = arith.subf %33, %34 : vector<8x8xf32>
    %36 = math.absf %35 : vector<8x8xf32>
    %37 = arith.addf %30, %36 : vector<8x8xf32>
    %38 = vector.extract_strided_slice %7 {offsets = [0, 4], sizes = [8, 1], strides = [1, 1]} : vector<8x16xf32> to vector<8x1xf32>
    %39 = vector.extract_strided_slice %8 {offsets = [4, 0], sizes = [1, 8], strides = [1, 1]} : vector<16x8xf32> to vector<1x8xf32>
    %40 = vector.broadcast %38 : vector<8x1xf32> to vector<8x8xf32>
    %41 = vector.broadcast %39 : vector<1x8xf32> to vector<8x8xf32>
    %42 = arith.subf %40, %41 : vector<8x8xf32>
    %43 = math.absf %42 : vector<8x8xf32>
    %44 = arith.addf %37, %43 : vector<8x8xf32>
    %45 = vector.extract_strided_slice %7 {offsets = [0, 5], sizes = [8, 1], strides = [1, 1]} : vector<8x16xf32> to vector<8x1xf32>
    %46 = vector.extract_strided_slice %8 {offsets = [5, 0], sizes = [1, 8], strides = [1, 1]} : vector<16x8xf32> to vector<1x8xf32>
    %47 = vector.broadcast %45 : vector<8x1xf32> to vector<8x8xf32>
    %48 = vector.broadcast %46 : vector<1x8xf32> to vector<8x8xf32>
    %49 = arith.subf %47, %48 : vector<8x8xf32>
    %50 = math.absf %49 : vector<8x8xf32>
    %51 = arith.addf %44, %50 : vector<8x8xf32>
    %52 = vector.extract_strided_slice %7 {offsets = [0, 6], sizes = [8, 1], strides = [1, 1]} : vector<8x16xf32> to vector<8x1xf32>
    %53 = vector.extract_strided_slice %8 {offsets = [6, 0], sizes = [1, 8], strides = [1, 1]} : vector<16x8xf32> to vector<1x8xf32>
    %54 = vector.broadcast %52 : vector<8x1xf32> to vector<8x8xf32>
    %55 = vector.broadcast %53 : vector<1x8xf32> to vector<8x8xf32>
    %56 = arith.subf %54, %55 : vector<8x8xf32>
    %57 = math.absf %56 : vector<8x8xf32>
    %58 = arith.addf %51, %57 : vector<8x8xf32>
    %59 = vector.extract_strided_slice %7 {offsets = [0, 7], sizes = [8, 1], strides = [1, 1]} : vector<8x16xf32> to vector<8x1xf32>
    %60 = vector.extract_strided_slice %8 {offsets = [7, 0], sizes = [1, 8], strides = [1, 1]} : vector<16x8xf32> to vector<1x8xf32>
    %61 = vector.broadcast %59 : vector<8x1xf32> to vector<8x8xf32>
    %62 = vector.broadcast %60 : vector<1x8xf32> to vector<8x8xf32>
    %63 = arith.subf %61, %62 : vector<8x8xf32>
    %64 = math.absf %63 : vector<8x8xf32>
    %65 = arith.addf %58, %64 : vector<8x8xf32>
    %66 = vector.extract_strided_slice %7 {offsets = [0, 8], sizes = [8, 1], strides = [1, 1]} : vector<8x16xf32> to vector<8x1xf32>
    %67 = vector.extract_strided_slice %8 {offsets = [8, 0], sizes = [1, 8], strides = [1, 1]} : vector<16x8xf32> to vector<1x8xf32>
    %68 = vector.broadcast %66 : vector<8x1xf32> to vector<8x8xf32>
    %69 = vector.broadcast %67 : vector<1x8xf32> to vector<8x8xf32>
    %70 = arith.subf %68, %69 : vector<8x8xf32>
    %71 = math.absf %70 : vector<8x8xf32>
    %72 = arith.addf %65, %71 : vector<8x8xf32>
    %73 = vector.extract_strided_slice %7 {offsets = [0, 9], sizes = [8, 1], strides = [1, 1]} : vector<8x16xf32> to vector<8x1xf32>
    %74 = vector.extract_strided_slice %8 {offsets = [9, 0], sizes = [1, 8], strides = [1, 1]} : vector<16x8xf32> to vector<1x8xf32>
    %75 = vector.broadcast %73 : vector<8x1xf32> to vector<8x8xf32>
    %76 = vector.broadcast %74 : vector<1x8xf32> to vector<8x8xf32>
    %77 = arith.subf %75, %76 : vector<8x8xf32>
    %78 = math.absf %77 : vector<8x8xf32>
    %79 = arith.addf %72, %78 : vector<8x8xf32>
    %80 = vector.extract_strided_slice %7 {offsets = [0, 10], sizes = [8, 1], strides = [1, 1]} : vector<8x16xf32> to vector<8x1xf32>
    %81 = vector.extract_strided_slice %8 {offsets = [10, 0], sizes = [1, 8], strides = [1, 1]} : vector<16x8xf32> to vector<1x8xf32>
    %82 = vector.broadcast %80 : vector<8x1xf32> to vector<8x8xf32>
    %83 = vector.broadcast %81 : vector<1x8xf32> to vector<8x8xf32>
    %84 = arith.subf %82, %83 : vector<8x8xf32>
    %85 = math.absf %84 : vector<8x8xf32>
    %86 = arith.addf %79, %85 : vector<8x8xf32>
    %87 = vector.extract_strided_slice %7 {offsets = [0, 11], sizes = [8, 1], strides = [1, 1]} : vector<8x16xf32> to vector<8x1xf32>
    %88 = vector.extract_strided_slice %8 {offsets = [11, 0], sizes = [1, 8], strides = [1, 1]} : vector<16x8xf32> to vector<1x8xf32>
    %89 = vector.broadcast %87 : vector<8x1xf32> to vector<8x8xf32>
    %90 = vector.broadcast %88 : vector<1x8xf32> to vector<8x8xf32>
    %91 = arith.subf %89, %90 : vector<8x8xf32>
    %92 = math.absf %91 : vector<8x8xf32>
    %93 = arith.addf %86, %92 : vector<8x8xf32>
    %94 = vector.extract_strided_slice %7 {offsets = [0, 12], sizes = [8, 1], strides = [1, 1]} : vector<8x16xf32> to vector<8x1xf32>
    %95 = vector.extract_strided_slice %8 {offsets = [12, 0], sizes = [1, 8], strides = [1, 1]} : vector<16x8xf32> to vector<1x8xf32>
    %96 = vector.broadcast %94 : vector<8x1xf32> to vector<8x8xf32>
    %97 = vector.broadcast %95 : vector<1x8xf32> to vector<8x8xf32>
    %98 = arith.subf %96, %97 : vector<8x8xf32>
    %99 = math.absf %98 : vector<8x8xf32>
    %100 = arith.addf %93, %99 : vector<8x8xf32>
    %101 = vector.extract_strided_slice %7 {offsets = [0, 13], sizes = [8, 1], strides = [1, 1]} : vector<8x16xf32> to vector<8x1xf32>
    %102 = vector.extract_strided_slice %8 {offsets = [13, 0], sizes = [1, 8], strides = [1, 1]} : vector<16x8xf32> to vector<1x8xf32>
    %103 = vector.broadcast %101 : vector<8x1xf32> to vector<8x8xf32>
    %104 = vector.broadcast %102 : vector<1x8xf32> to vector<8x8xf32>
    %105 = arith.subf %103, %104 : vector<8x8xf32>
    %106 = math.absf %105 : vector<8x8xf32>
    %107 = arith.addf %100, %106 : vector<8x8xf32>
    %108 = vector.extract_strided_slice %7 {offsets = [0, 14], sizes = [8, 1], strides = [1, 1]} : vector<8x16xf32> to vector<8x1xf32>
    %109 = vector.extract_strided_slice %8 {offsets = [14, 0], sizes = [1, 8], strides = [1, 1]} : vector<16x8xf32> to vector<1x8xf32>
    %110 = vector.broadcast %108 : vector<8x1xf32> to vector<8x8xf32>
    %111 = vector.broadcast %109 : vector<1x8xf32> to vector<8x8xf32>
    %112 = arith.subf %110, %111 : vector<8x8xf32>
    %113 = math.absf %112 : vector<8x8xf32>
    %114 = arith.addf %107, %113 : vector<8x8xf32>
    %115 = vector.extract_strided_slice %7 {offsets = [0, 15], sizes = [8, 1], strides = [1, 1]} : vector<8x16xf32> to vector<8x1xf32>
    %116 = vector.extract_strided_slice %8 {offsets = [15, 0], sizes = [1, 8], strides = [1, 1]} : vector<16x8xf32> to vector<1x8xf32>
    %117 = vector.broadcast %115 : vector<8x1xf32> to vector<8x8xf32>
    %118 = vector.broadcast %116 : vector<1x8xf32> to vector<8x8xf32>
    %119 = arith.subf %117, %118 : vector<8x8xf32>
    %120 = math.absf %119 : vector<8x8xf32>
    %121 = arith.addf %114, %120 : vector<8x8xf32>
    %cst_7 = arith.constant 0.000000e+00 : f32
    %122 = vector.broadcast %cst_7 : f32 to vector<8x8xf32>
    %123 = arith.subf %122, %121 : vector<8x8xf32>
    %124 = math.exp %123 : vector<8x8xf32>
    %cst_8 = arith.constant dense<0.000000e+00> : vector<8xf32>
    %125 = vector.multi_reduction <add>, %124, %cst_8 [1] : vector<8x8xf32> to vector<8xf32>
    %126 = vector.shape_cast %125 : vector<8xf32> to vector<8x1xf32>
    %127 = vector.extract_strided_slice %6 {offsets = [0, 16], sizes = [8, 16], strides = [1, 1]} : vector<8x256xf32> to vector<8x16xf32>
    %128 = vector.extract_strided_slice %5 {offsets = [16, 0], sizes = [16, 8], strides = [1, 1]} : vector<256x8xf32> to vector<16x8xf32>
    %cst_9 = arith.constant 0.000000e+00 : f32
    %129 = vector.broadcast %cst_9 : f32 to vector<8x8xf32>
    %130 = vector.extract_strided_slice %127 {offsets = [0, 0], sizes = [8, 1], strides = [1, 1]} : vector<8x16xf32> to vector<8x1xf32>
    %131 = vector.extract_strided_slice %128 {offsets = [0, 0], sizes = [1, 8], strides = [1, 1]} : vector<16x8xf32> to vector<1x8xf32>
    %132 = vector.broadcast %130 : vector<8x1xf32> to vector<8x8xf32>
    %133 = vector.broadcast %131 : vector<1x8xf32> to vector<8x8xf32>
    %134 = arith.subf %132, %133 : vector<8x8xf32>
    %135 = math.absf %134 : vector<8x8xf32>
    %136 = arith.addf %129, %135 : vector<8x8xf32>
    %137 = vector.extract_strided_slice %127 {offsets = [0, 1], sizes = [8, 1], strides = [1, 1]} : vector<8x16xf32> to vector<8x1xf32>
    %138 = vector.extract_strided_slice %128 {offsets = [1, 0], sizes = [1, 8], strides = [1, 1]} : vector<16x8xf32> to vector<1x8xf32>
    %139 = vector.broadcast %137 : vector<8x1xf32> to vector<8x8xf32>
    %140 = vector.broadcast %138 : vector<1x8xf32> to vector<8x8xf32>
    %141 = arith.subf %139, %140 : vector<8x8xf32>
    %142 = math.absf %141 : vector<8x8xf32>
    %143 = arith.addf %136, %142 : vector<8x8xf32>
    %144 = vector.extract_strided_slice %127 {offsets = [0, 2], sizes = [8, 1], strides = [1, 1]} : vector<8x16xf32> to vector<8x1xf32>
    %145 = vector.extract_strided_slice %128 {offsets = [2, 0], sizes = [1, 8], strides = [1, 1]} : vector<16x8xf32> to vector<1x8xf32>
    %146 = vector.broadcast %144 : vector<8x1xf32> to vector<8x8xf32>
    %147 = vector.broadcast %145 : vector<1x8xf32> to vector<8x8xf32>
    %148 = arith.subf %146, %147 : vector<8x8xf32>
    %149 = math.absf %148 : vector<8x8xf32>
    %150 = arith.addf %143, %149 : vector<8x8xf32>
    %151 = vector.extract_strided_slice %127 {offsets = [0, 3], sizes = [8, 1], strides = [1, 1]} : vector<8x16xf32> to vector<8x1xf32>
    %152 = vector.extract_strided_slice %128 {offsets = [3, 0], sizes = [1, 8], strides = [1, 1]} : vector<16x8xf32> to vector<1x8xf32>
    %153 = vector.broadcast %151 : vector<8x1xf32> to vector<8x8xf32>
    %154 = vector.broadcast %152 : vector<1x8xf32> to vector<8x8xf32>
    %155 = arith.subf %153, %154 : vector<8x8xf32>
    %156 = math.absf %155 : vector<8x8xf32>
    %157 = arith.addf %150, %156 : vector<8x8xf32>
    %158 = vector.extract_strided_slice %127 {offsets = [0, 4], sizes = [8, 1], strides = [1, 1]} : vector<8x16xf32> to vector<8x1xf32>
    %159 = vector.extract_strided_slice %128 {offsets = [4, 0], sizes = [1, 8], strides = [1, 1]} : vector<16x8xf32> to vector<1x8xf32>
    %160 = vector.broadcast %158 : vector<8x1xf32> to vector<8x8xf32>
    %161 = vector.broadcast %159 : vector<1x8xf32> to vector<8x8xf32>
    %162 = arith.subf %160, %161 : vector<8x8xf32>
    %163 = math.absf %162 : vector<8x8xf32>
    %164 = arith.addf %157, %163 : vector<8x8xf32>
    %165 = vector.extract_strided_slice %127 {offsets = [0, 5], sizes = [8, 1], strides = [1, 1]} : vector<8x16xf32> to vector<8x1xf32>
    %166 = vector.extract_strided_slice %128 {offsets = [5, 0], sizes = [1, 8], strides = [1, 1]} : vector<16x8xf32> to vector<1x8xf32>
    %167 = vector.broadcast %165 : vector<8x1xf32> to vector<8x8xf32>
    %168 = vector.broadcast %166 : vector<1x8xf32> to vector<8x8xf32>
    %169 = arith.subf %167, %168 : vector<8x8xf32>
    %170 = math.absf %169 : vector<8x8xf32>
    %171 = arith.addf %164, %170 : vector<8x8xf32>
    %172 = vector.extract_strided_slice %127 {offsets = [0, 6], sizes = [8, 1], strides = [1, 1]} : vector<8x16xf32> to vector<8x1xf32>
    %173 = vector.extract_strided_slice %128 {offsets = [6, 0], sizes = [1, 8], strides = [1, 1]} : vector<16x8xf32> to vector<1x8xf32>
    %174 = vector.broadcast %172 : vector<8x1xf32> to vector<8x8xf32>
    %175 = vector.broadcast %173 : vector<1x8xf32> to vector<8x8xf32>
    %176 = arith.subf %174, %175 : vector<8x8xf32>
    %177 = math.absf %176 : vector<8x8xf32>
    %178 = arith.addf %171, %177 : vector<8x8xf32>
    %179 = vector.extract_strided_slice %127 {offsets = [0, 7], sizes = [8, 1], strides = [1, 1]} : vector<8x16xf32> to vector<8x1xf32>
    %180 = vector.extract_strided_slice %128 {offsets = [7, 0], sizes = [1, 8], strides = [1, 1]} : vector<16x8xf32> to vector<1x8xf32>
    %181 = vector.broadcast %179 : vector<8x1xf32> to vector<8x8xf32>
    %182 = vector.broadcast %180 : vector<1x8xf32> to vector<8x8xf32>
    %183 = arith.subf %181, %182 : vector<8x8xf32>
    %184 = math.absf %183 : vector<8x8xf32>
    %185 = arith.addf %178, %184 : vector<8x8xf32>
    %186 = vector.extract_strided_slice %127 {offsets = [0, 8], sizes = [8, 1], strides = [1, 1]} : vector<8x16xf32> to vector<8x1xf32>
    %187 = vector.extract_strided_slice %128 {offsets = [8, 0], sizes = [1, 8], strides = [1, 1]} : vector<16x8xf32> to vector<1x8xf32>
    %188 = vector.broadcast %186 : vector<8x1xf32> to vector<8x8xf32>
    %189 = vector.broadcast %187 : vector<1x8xf32> to vector<8x8xf32>
    %190 = arith.subf %188, %189 : vector<8x8xf32>
    %191 = math.absf %190 : vector<8x8xf32>
    %192 = arith.addf %185, %191 : vector<8x8xf32>
    %193 = vector.extract_strided_slice %127 {offsets = [0, 9], sizes = [8, 1], strides = [1, 1]} : vector<8x16xf32> to vector<8x1xf32>
    %194 = vector.extract_strided_slice %128 {offsets = [9, 0], sizes = [1, 8], strides = [1, 1]} : vector<16x8xf32> to vector<1x8xf32>
    %195 = vector.broadcast %193 : vector<8x1xf32> to vector<8x8xf32>
    %196 = vector.broadcast %194 : vector<1x8xf32> to vector<8x8xf32>
    %197 = arith.subf %195, %196 : vector<8x8xf32>
    %198 = math.absf %197 : vector<8x8xf32>
    %199 = arith.addf %192, %198 : vector<8x8xf32>
    %200 = vector.extract_strided_slice %127 {offsets = [0, 10], sizes = [8, 1], strides = [1, 1]} : vector<8x16xf32> to vector<8x1xf32>
    %201 = vector.extract_strided_slice %128 {offsets = [10, 0], sizes = [1, 8], strides = [1, 1]} : vector<16x8xf32> to vector<1x8xf32>
    %202 = vector.broadcast %200 : vector<8x1xf32> to vector<8x8xf32>
    %203 = vector.broadcast %201 : vector<1x8xf32> to vector<8x8xf32>
    %204 = arith.subf %202, %203 : vector<8x8xf32>
    %205 = math.absf %204 : vector<8x8xf32>
    %206 = arith.addf %199, %205 : vector<8x8xf32>
    %207 = vector.extract_strided_slice %127 {offsets = [0, 11], sizes = [8, 1], strides = [1, 1]} : vector<8x16xf32> to vector<8x1xf32>
    %208 = vector.extract_strided_slice %128 {offsets = [11, 0], sizes = [1, 8], strides = [1, 1]} : vector<16x8xf32> to vector<1x8xf32>
    %209 = vector.broadcast %207 : vector<8x1xf32> to vector<8x8xf32>
    %210 = vector.broadcast %208 : vector<1x8xf32> to vector<8x8xf32>
    %211 = arith.subf %209, %210 : vector<8x8xf32>
    %212 = math.absf %211 : vector<8x8xf32>
    %213 = arith.addf %206, %212 : vector<8x8xf32>
    %214 = vector.extract_strided_slice %127 {offsets = [0, 12], sizes = [8, 1], strides = [1, 1]} : vector<8x16xf32> to vector<8x1xf32>
    %215 = vector.extract_strided_slice %128 {offsets = [12, 0], sizes = [1, 8], strides = [1, 1]} : vector<16x8xf32> to vector<1x8xf32>
    %216 = vector.broadcast %214 : vector<8x1xf32> to vector<8x8xf32>
    %217 = vector.broadcast %215 : vector<1x8xf32> to vector<8x8xf32>
    %218 = arith.subf %216, %217 : vector<8x8xf32>
    %219 = math.absf %218 : vector<8x8xf32>
    %220 = arith.addf %213, %219 : vector<8x8xf32>
    %221 = vector.extract_strided_slice %127 {offsets = [0, 13], sizes = [8, 1], strides = [1, 1]} : vector<8x16xf32> to vector<8x1xf32>
    %222 = vector.extract_strided_slice %128 {offsets = [13, 0], sizes = [1, 8], strides = [1, 1]} : vector<16x8xf32> to vector<1x8xf32>
    %223 = vector.broadcast %221 : vector<8x1xf32> to vector<8x8xf32>
    %224 = vector.broadcast %222 : vector<1x8xf32> to vector<8x8xf32>
    %225 = arith.subf %223, %224 : vector<8x8xf32>
    %226 = math.absf %225 : vector<8x8xf32>
    %227 = arith.addf %220, %226 : vector<8x8xf32>
    %228 = vector.extract_strided_slice %127 {offsets = [0, 14], sizes = [8, 1], strides = [1, 1]} : vector<8x16xf32> to vector<8x1xf32>
    %229 = vector.extract_strided_slice %128 {offsets = [14, 0], sizes = [1, 8], strides = [1, 1]} : vector<16x8xf32> to vector<1x8xf32>
    %230 = vector.broadcast %228 : vector<8x1xf32> to vector<8x8xf32>
    %231 = vector.broadcast %229 : vector<1x8xf32> to vector<8x8xf32>
    %232 = arith.subf %230, %231 : vector<8x8xf32>
    %233 = math.absf %232 : vector<8x8xf32>
    %234 = arith.addf %227, %233 : vector<8x8xf32>
    %235 = vector.extract_strided_slice %127 {offsets = [0, 15], sizes = [8, 1], strides = [1, 1]} : vector<8x16xf32> to vector<8x1xf32>
    %236 = vector.extract_strided_slice %128 {offsets = [15, 0], sizes = [1, 8], strides = [1, 1]} : vector<16x8xf32> to vector<1x8xf32>
    %237 = vector.broadcast %235 : vector<8x1xf32> to vector<8x8xf32>
    %238 = vector.broadcast %236 : vector<1x8xf32> to vector<8x8xf32>
    %239 = arith.subf %237, %238 : vector<8x8xf32>
    %240 = math.absf %239 : vector<8x8xf32>
    %241 = arith.addf %234, %240 : vector<8x8xf32>
    %cst_10 = arith.constant 0.000000e+00 : f32
    %242 = vector.broadcast %cst_10 : f32 to vector<8x8xf32>
    %243 = arith.subf %242, %241 : vector<8x8xf32>
    %244 = math.exp %243 : vector<8x8xf32>
    %cst_11 = arith.constant dense<0.000000e+00> : vector<8xf32>
    %245 = vector.multi_reduction <add>, %244, %cst_11 [1] : vector<8x8xf32> to vector<8xf32>
    %246 = vector.shape_cast %245 : vector<8xf32> to vector<8x1xf32>
    %247 = vector.extract_strided_slice %6 {offsets = [0, 32], sizes = [8, 16], strides = [1, 1]} : vector<8x256xf32> to vector<8x16xf32>
    %248 = vector.extract_strided_slice %5 {offsets = [32, 0], sizes = [16, 8], strides = [1, 1]} : vector<256x8xf32> to vector<16x8xf32>
    %cst_12 = arith.constant 0.000000e+00 : f32
    %249 = vector.broadcast %cst_12 : f32 to vector<8x8xf32>
    %250 = vector.extract_strided_slice %247 {offsets = [0, 0], sizes = [8, 1], strides = [1, 1]} : vector<8x16xf32> to vector<8x1xf32>
    %251 = vector.extract_strided_slice %248 {offsets = [0, 0], sizes = [1, 8], strides = [1, 1]} : vector<16x8xf32> to vector<1x8xf32>
    %252 = vector.broadcast %250 : vector<8x1xf32> to vector<8x8xf32>
    %253 = vector.broadcast %251 : vector<1x8xf32> to vector<8x8xf32>
    %254 = arith.subf %252, %253 : vector<8x8xf32>
    %255 = math.absf %254 : vector<8x8xf32>
    %256 = arith.addf %249, %255 : vector<8x8xf32>
    %257 = vector.extract_strided_slice %247 {offsets = [0, 1], sizes = [8, 1], strides = [1, 1]} : vector<8x16xf32> to vector<8x1xf32>
    %258 = vector.extract_strided_slice %248 {offsets = [1, 0], sizes = [1, 8], strides = [1, 1]} : vector<16x8xf32> to vector<1x8xf32>
    %259 = vector.broadcast %257 : vector<8x1xf32> to vector<8x8xf32>
    %260 = vector.broadcast %258 : vector<1x8xf32> to vector<8x8xf32>
    %261 = arith.subf %259, %260 : vector<8x8xf32>
    %262 = math.absf %261 : vector<8x8xf32>
    %263 = arith.addf %256, %262 : vector<8x8xf32>
    %264 = vector.extract_strided_slice %247 {offsets = [0, 2], sizes = [8, 1], strides = [1, 1]} : vector<8x16xf32> to vector<8x1xf32>
    %265 = vector.extract_strided_slice %248 {offsets = [2, 0], sizes = [1, 8], strides = [1, 1]} : vector<16x8xf32> to vector<1x8xf32>
    %266 = vector.broadcast %264 : vector<8x1xf32> to vector<8x8xf32>
    %267 = vector.broadcast %265 : vector<1x8xf32> to vector<8x8xf32>
    %268 = arith.subf %266, %267 : vector<8x8xf32>
    %269 = math.absf %268 : vector<8x8xf32>
    %270 = arith.addf %263, %269 : vector<8x8xf32>
    %271 = vector.extract_strided_slice %247 {offsets = [0, 3], sizes = [8, 1], strides = [1, 1]} : vector<8x16xf32> to vector<8x1xf32>
    %272 = vector.extract_strided_slice %248 {offsets = [3, 0], sizes = [1, 8], strides = [1, 1]} : vector<16x8xf32> to vector<1x8xf32>
    %273 = vector.broadcast %271 : vector<8x1xf32> to vector<8x8xf32>
    %274 = vector.broadcast %272 : vector<1x8xf32> to vector<8x8xf32>
    %275 = arith.subf %273, %274 : vector<8x8xf32>
    %276 = math.absf %275 : vector<8x8xf32>
    %277 = arith.addf %270, %276 : vector<8x8xf32>
    %278 = vector.extract_strided_slice %247 {offsets = [0, 4], sizes = [8, 1], strides = [1, 1]} : vector<8x16xf32> to vector<8x1xf32>
    %279 = vector.extract_strided_slice %248 {offsets = [4, 0], sizes = [1, 8], strides = [1, 1]} : vector<16x8xf32> to vector<1x8xf32>
    %280 = vector.broadcast %278 : vector<8x1xf32> to vector<8x8xf32>
    %281 = vector.broadcast %279 : vector<1x8xf32> to vector<8x8xf32>
    %282 = arith.subf %280, %281 : vector<8x8xf32>
    %283 = math.absf %282 : vector<8x8xf32>
    %284 = arith.addf %277, %283 : vector<8x8xf32>
    %285 = vector.extract_strided_slice %247 {offsets = [0, 5], sizes = [8, 1], strides = [1, 1]} : vector<8x16xf32> to vector<8x1xf32>
    %286 = vector.extract_strided_slice %248 {offsets = [5, 0], sizes = [1, 8], strides = [1, 1]} : vector<16x8xf32> to vector<1x8xf32>
    %287 = vector.broadcast %285 : vector<8x1xf32> to vector<8x8xf32>
    %288 = vector.broadcast %286 : vector<1x8xf32> to vector<8x8xf32>
    %289 = arith.subf %287, %288 : vector<8x8xf32>
    %290 = math.absf %289 : vector<8x8xf32>
    %291 = arith.addf %284, %290 : vector<8x8xf32>
    %292 = vector.extract_strided_slice %247 {offsets = [0, 6], sizes = [8, 1], strides = [1, 1]} : vector<8x16xf32> to vector<8x1xf32>
    %293 = vector.extract_strided_slice %248 {offsets = [6, 0], sizes = [1, 8], strides = [1, 1]} : vector<16x8xf32> to vector<1x8xf32>
    %294 = vector.broadcast %292 : vector<8x1xf32> to vector<8x8xf32>
    %295 = vector.broadcast %293 : vector<1x8xf32> to vector<8x8xf32>
    %296 = arith.subf %294, %295 : vector<8x8xf32>
    %297 = math.absf %296 : vector<8x8xf32>
    %298 = arith.addf %291, %297 : vector<8x8xf32>
    %299 = vector.extract_strided_slice %247 {offsets = [0, 7], sizes = [8, 1], strides = [1, 1]} : vector<8x16xf32> to vector<8x1xf32>
    %300 = vector.extract_strided_slice %248 {offsets = [7, 0], sizes = [1, 8], strides = [1, 1]} : vector<16x8xf32> to vector<1x8xf32>
    %301 = vector.broadcast %299 : vector<8x1xf32> to vector<8x8xf32>
    %302 = vector.broadcast %300 : vector<1x8xf32> to vector<8x8xf32>
    %303 = arith.subf %301, %302 : vector<8x8xf32>
    %304 = math.absf %303 : vector<8x8xf32>
    %305 = arith.addf %298, %304 : vector<8x8xf32>
    %306 = vector.extract_strided_slice %247 {offsets = [0, 8], sizes = [8, 1], strides = [1, 1]} : vector<8x16xf32> to vector<8x1xf32>
    %307 = vector.extract_strided_slice %248 {offsets = [8, 0], sizes = [1, 8], strides = [1, 1]} : vector<16x8xf32> to vector<1x8xf32>
    %308 = vector.broadcast %306 : vector<8x1xf32> to vector<8x8xf32>
    %309 = vector.broadcast %307 : vector<1x8xf32> to vector<8x8xf32>
    %310 = arith.subf %308, %309 : vector<8x8xf32>
    %311 = math.absf %310 : vector<8x8xf32>
    %312 = arith.addf %305, %311 : vector<8x8xf32>
    %313 = vector.extract_strided_slice %247 {offsets = [0, 9], sizes = [8, 1], strides = [1, 1]} : vector<8x16xf32> to vector<8x1xf32>
    %314 = vector.extract_strided_slice %248 {offsets = [9, 0], sizes = [1, 8], strides = [1, 1]} : vector<16x8xf32> to vector<1x8xf32>
    %315 = vector.broadcast %313 : vector<8x1xf32> to vector<8x8xf32>
    %316 = vector.broadcast %314 : vector<1x8xf32> to vector<8x8xf32>
    %317 = arith.subf %315, %316 : vector<8x8xf32>
    %318 = math.absf %317 : vector<8x8xf32>
    %319 = arith.addf %312, %318 : vector<8x8xf32>
    %320 = vector.extract_strided_slice %247 {offsets = [0, 10], sizes = [8, 1], strides = [1, 1]} : vector<8x16xf32> to vector<8x1xf32>
    %321 = vector.extract_strided_slice %248 {offsets = [10, 0], sizes = [1, 8], strides = [1, 1]} : vector<16x8xf32> to vector<1x8xf32>
    %322 = vector.broadcast %320 : vector<8x1xf32> to vector<8x8xf32>
    %323 = vector.broadcast %321 : vector<1x8xf32> to vector<8x8xf32>
    %324 = arith.subf %322, %323 : vector<8x8xf32>
    %325 = math.absf %324 : vector<8x8xf32>
    %326 = arith.addf %319, %325 : vector<8x8xf32>
    %327 = vector.extract_strided_slice %247 {offsets = [0, 11], sizes = [8, 1], strides = [1, 1]} : vector<8x16xf32> to vector<8x1xf32>
    %328 = vector.extract_strided_slice %248 {offsets = [11, 0], sizes = [1, 8], strides = [1, 1]} : vector<16x8xf32> to vector<1x8xf32>
    %329 = vector.broadcast %327 : vector<8x1xf32> to vector<8x8xf32>
    %330 = vector.broadcast %328 : vector<1x8xf32> to vector<8x8xf32>
    %331 = arith.subf %329, %330 : vector<8x8xf32>
    %332 = math.absf %331 : vector<8x8xf32>
    %333 = arith.addf %326, %332 : vector<8x8xf32>
    %334 = vector.extract_strided_slice %247 {offsets = [0, 12], sizes = [8, 1], strides = [1, 1]} : vector<8x16xf32> to vector<8x1xf32>
    %335 = vector.extract_strided_slice %248 {offsets = [12, 0], sizes = [1, 8], strides = [1, 1]} : vector<16x8xf32> to vector<1x8xf32>
    %336 = vector.broadcast %334 : vector<8x1xf32> to vector<8x8xf32>
    %337 = vector.broadcast %335 : vector<1x8xf32> to vector<8x8xf32>
    %338 = arith.subf %336, %337 : vector<8x8xf32>
    %339 = math.absf %338 : vector<8x8xf32>
    %340 = arith.addf %333, %339 : vector<8x8xf32>
    %341 = vector.extract_strided_slice %247 {offsets = [0, 13], sizes = [8, 1], strides = [1, 1]} : vector<8x16xf32> to vector<8x1xf32>
    %342 = vector.extract_strided_slice %248 {offsets = [13, 0], sizes = [1, 8], strides = [1, 1]} : vector<16x8xf32> to vector<1x8xf32>
    %343 = vector.broadcast %341 : vector<8x1xf32> to vector<8x8xf32>
    %344 = vector.broadcast %342 : vector<1x8xf32> to vector<8x8xf32>
    %345 = arith.subf %343, %344 : vector<8x8xf32>
    %346 = math.absf %345 : vector<8x8xf32>
    %347 = arith.addf %340, %346 : vector<8x8xf32>
    %348 = vector.extract_strided_slice %247 {offsets = [0, 14], sizes = [8, 1], strides = [1, 1]} : vector<8x16xf32> to vector<8x1xf32>
    %349 = vector.extract_strided_slice %248 {offsets = [14, 0], sizes = [1, 8], strides = [1, 1]} : vector<16x8xf32> to vector<1x8xf32>
    %350 = vector.broadcast %348 : vector<8x1xf32> to vector<8x8xf32>
    %351 = vector.broadcast %349 : vector<1x8xf32> to vector<8x8xf32>
    %352 = arith.subf %350, %351 : vector<8x8xf32>
    %353 = math.absf %352 : vector<8x8xf32>
    %354 = arith.addf %347, %353 : vector<8x8xf32>
    %355 = vector.extract_strided_slice %247 {offsets = [0, 15], sizes = [8, 1], strides = [1, 1]} : vector<8x16xf32> to vector<8x1xf32>
    %356 = vector.extract_strided_slice %248 {offsets = [15, 0], sizes = [1, 8], strides = [1, 1]} : vector<16x8xf32> to vector<1x8xf32>
    %357 = vector.broadcast %355 : vector<8x1xf32> to vector<8x8xf32>
    %358 = vector.broadcast %356 : vector<1x8xf32> to vector<8x8xf32>
    %359 = arith.subf %357, %358 : vector<8x8xf32>
    %360 = math.absf %359 : vector<8x8xf32>
    %361 = arith.addf %354, %360 : vector<8x8xf32>
    %cst_13 = arith.constant 0.000000e+00 : f32
    %362 = vector.broadcast %cst_13 : f32 to vector<8x8xf32>
    %363 = arith.subf %362, %361 : vector<8x8xf32>
    %364 = math.exp %363 : vector<8x8xf32>
    %cst_14 = arith.constant dense<0.000000e+00> : vector<8xf32>
    %365 = vector.multi_reduction <add>, %364, %cst_14 [1] : vector<8x8xf32> to vector<8xf32>
    %366 = vector.shape_cast %365 : vector<8xf32> to vector<8x1xf32>
    %367 = vector.extract_strided_slice %6 {offsets = [0, 48], sizes = [8, 16], strides = [1, 1]} : vector<8x256xf32> to vector<8x16xf32>
    %368 = vector.extract_strided_slice %5 {offsets = [48, 0], sizes = [16, 8], strides = [1, 1]} : vector<256x8xf32> to vector<16x8xf32>
    %cst_15 = arith.constant 0.000000e+00 : f32
    %369 = vector.broadcast %cst_15 : f32 to vector<8x8xf32>
    %370 = vector.extract_strided_slice %367 {offsets = [0, 0], sizes = [8, 1], strides = [1, 1]} : vector<8x16xf32> to vector<8x1xf32>
    %371 = vector.extract_strided_slice %368 {offsets = [0, 0], sizes = [1, 8], strides = [1, 1]} : vector<16x8xf32> to vector<1x8xf32>
    %372 = vector.broadcast %370 : vector<8x1xf32> to vector<8x8xf32>
    %373 = vector.broadcast %371 : vector<1x8xf32> to vector<8x8xf32>
    %374 = arith.subf %372, %373 : vector<8x8xf32>
    %375 = math.absf %374 : vector<8x8xf32>
    %376 = arith.addf %369, %375 : vector<8x8xf32>
    %377 = vector.extract_strided_slice %367 {offsets = [0, 1], sizes = [8, 1], strides = [1, 1]} : vector<8x16xf32> to vector<8x1xf32>
    %378 = vector.extract_strided_slice %368 {offsets = [1, 0], sizes = [1, 8], strides = [1, 1]} : vector<16x8xf32> to vector<1x8xf32>
    %379 = vector.broadcast %377 : vector<8x1xf32> to vector<8x8xf32>
    %380 = vector.broadcast %378 : vector<1x8xf32> to vector<8x8xf32>
    %381 = arith.subf %379, %380 : vector<8x8xf32>
    %382 = math.absf %381 : vector<8x8xf32>
    %383 = arith.addf %376, %382 : vector<8x8xf32>
    %384 = vector.extract_strided_slice %367 {offsets = [0, 2], sizes = [8, 1], strides = [1, 1]} : vector<8x16xf32> to vector<8x1xf32>
    %385 = vector.extract_strided_slice %368 {offsets = [2, 0], sizes = [1, 8], strides = [1, 1]} : vector<16x8xf32> to vector<1x8xf32>
    %386 = vector.broadcast %384 : vector<8x1xf32> to vector<8x8xf32>
    %387 = vector.broadcast %385 : vector<1x8xf32> to vector<8x8xf32>
    %388 = arith.subf %386, %387 : vector<8x8xf32>
    %389 = math.absf %388 : vector<8x8xf32>
    %390 = arith.addf %383, %389 : vector<8x8xf32>
    %391 = vector.extract_strided_slice %367 {offsets = [0, 3], sizes = [8, 1], strides = [1, 1]} : vector<8x16xf32> to vector<8x1xf32>
    %392 = vector.extract_strided_slice %368 {offsets = [3, 0], sizes = [1, 8], strides = [1, 1]} : vector<16x8xf32> to vector<1x8xf32>
    %393 = vector.broadcast %391 : vector<8x1xf32> to vector<8x8xf32>
    %394 = vector.broadcast %392 : vector<1x8xf32> to vector<8x8xf32>
    %395 = arith.subf %393, %394 : vector<8x8xf32>
    %396 = math.absf %395 : vector<8x8xf32>
    %397 = arith.addf %390, %396 : vector<8x8xf32>
    %398 = vector.extract_strided_slice %367 {offsets = [0, 4], sizes = [8, 1], strides = [1, 1]} : vector<8x16xf32> to vector<8x1xf32>
    %399 = vector.extract_strided_slice %368 {offsets = [4, 0], sizes = [1, 8], strides = [1, 1]} : vector<16x8xf32> to vector<1x8xf32>
    %400 = vector.broadcast %398 : vector<8x1xf32> to vector<8x8xf32>
    %401 = vector.broadcast %399 : vector<1x8xf32> to vector<8x8xf32>
    %402 = arith.subf %400, %401 : vector<8x8xf32>
    %403 = math.absf %402 : vector<8x8xf32>
    %404 = arith.addf %397, %403 : vector<8x8xf32>
    %405 = vector.extract_strided_slice %367 {offsets = [0, 5], sizes = [8, 1], strides = [1, 1]} : vector<8x16xf32> to vector<8x1xf32>
    %406 = vector.extract_strided_slice %368 {offsets = [5, 0], sizes = [1, 8], strides = [1, 1]} : vector<16x8xf32> to vector<1x8xf32>
    %407 = vector.broadcast %405 : vector<8x1xf32> to vector<8x8xf32>
    %408 = vector.broadcast %406 : vector<1x8xf32> to vector<8x8xf32>
    %409 = arith.subf %407, %408 : vector<8x8xf32>
    %410 = math.absf %409 : vector<8x8xf32>
    %411 = arith.addf %404, %410 : vector<8x8xf32>
    %412 = vector.extract_strided_slice %367 {offsets = [0, 6], sizes = [8, 1], strides = [1, 1]} : vector<8x16xf32> to vector<8x1xf32>
    %413 = vector.extract_strided_slice %368 {offsets = [6, 0], sizes = [1, 8], strides = [1, 1]} : vector<16x8xf32> to vector<1x8xf32>
    %414 = vector.broadcast %412 : vector<8x1xf32> to vector<8x8xf32>
    %415 = vector.broadcast %413 : vector<1x8xf32> to vector<8x8xf32>
    %416 = arith.subf %414, %415 : vector<8x8xf32>
    %417 = math.absf %416 : vector<8x8xf32>
    %418 = arith.addf %411, %417 : vector<8x8xf32>
    %419 = vector.extract_strided_slice %367 {offsets = [0, 7], sizes = [8, 1], strides = [1, 1]} : vector<8x16xf32> to vector<8x1xf32>
    %420 = vector.extract_strided_slice %368 {offsets = [7, 0], sizes = [1, 8], strides = [1, 1]} : vector<16x8xf32> to vector<1x8xf32>
    %421 = vector.broadcast %419 : vector<8x1xf32> to vector<8x8xf32>
    %422 = vector.broadcast %420 : vector<1x8xf32> to vector<8x8xf32>
    %423 = arith.subf %421, %422 : vector<8x8xf32>
    %424 = math.absf %423 : vector<8x8xf32>
    %425 = arith.addf %418, %424 : vector<8x8xf32>
    %426 = vector.extract_strided_slice %367 {offsets = [0, 8], sizes = [8, 1], strides = [1, 1]} : vector<8x16xf32> to vector<8x1xf32>
    %427 = vector.extract_strided_slice %368 {offsets = [8, 0], sizes = [1, 8], strides = [1, 1]} : vector<16x8xf32> to vector<1x8xf32>
    %428 = vector.broadcast %426 : vector<8x1xf32> to vector<8x8xf32>
    %429 = vector.broadcast %427 : vector<1x8xf32> to vector<8x8xf32>
    %430 = arith.subf %428, %429 : vector<8x8xf32>
    %431 = math.absf %430 : vector<8x8xf32>
    %432 = arith.addf %425, %431 : vector<8x8xf32>
    %433 = vector.extract_strided_slice %367 {offsets = [0, 9], sizes = [8, 1], strides = [1, 1]} : vector<8x16xf32> to vector<8x1xf32>
    %434 = vector.extract_strided_slice %368 {offsets = [9, 0], sizes = [1, 8], strides = [1, 1]} : vector<16x8xf32> to vector<1x8xf32>
    %435 = vector.broadcast %433 : vector<8x1xf32> to vector<8x8xf32>
    %436 = vector.broadcast %434 : vector<1x8xf32> to vector<8x8xf32>
    %437 = arith.subf %435, %436 : vector<8x8xf32>
    %438 = math.absf %437 : vector<8x8xf32>
    %439 = arith.addf %432, %438 : vector<8x8xf32>
    %440 = vector.extract_strided_slice %367 {offsets = [0, 10], sizes = [8, 1], strides = [1, 1]} : vector<8x16xf32> to vector<8x1xf32>
    %441 = vector.extract_strided_slice %368 {offsets = [10, 0], sizes = [1, 8], strides = [1, 1]} : vector<16x8xf32> to vector<1x8xf32>
    %442 = vector.broadcast %440 : vector<8x1xf32> to vector<8x8xf32>
    %443 = vector.broadcast %441 : vector<1x8xf32> to vector<8x8xf32>
    %444 = arith.subf %442, %443 : vector<8x8xf32>
    %445 = math.absf %444 : vector<8x8xf32>
    %446 = arith.addf %439, %445 : vector<8x8xf32>
    %447 = vector.extract_strided_slice %367 {offsets = [0, 11], sizes = [8, 1], strides = [1, 1]} : vector<8x16xf32> to vector<8x1xf32>
    %448 = vector.extract_strided_slice %368 {offsets = [11, 0], sizes = [1, 8], strides = [1, 1]} : vector<16x8xf32> to vector<1x8xf32>
    %449 = vector.broadcast %447 : vector<8x1xf32> to vector<8x8xf32>
    %450 = vector.broadcast %448 : vector<1x8xf32> to vector<8x8xf32>
    %451 = arith.subf %449, %450 : vector<8x8xf32>
    %452 = math.absf %451 : vector<8x8xf32>
    %453 = arith.addf %446, %452 : vector<8x8xf32>
    %454 = vector.extract_strided_slice %367 {offsets = [0, 12], sizes = [8, 1], strides = [1, 1]} : vector<8x16xf32> to vector<8x1xf32>
    %455 = vector.extract_strided_slice %368 {offsets = [12, 0], sizes = [1, 8], strides = [1, 1]} : vector<16x8xf32> to vector<1x8xf32>
    %456 = vector.broadcast %454 : vector<8x1xf32> to vector<8x8xf32>
    %457 = vector.broadcast %455 : vector<1x8xf32> to vector<8x8xf32>
    %458 = arith.subf %456, %457 : vector<8x8xf32>
    %459 = math.absf %458 : vector<8x8xf32>
    %460 = arith.addf %453, %459 : vector<8x8xf32>
    %461 = vector.extract_strided_slice %367 {offsets = [0, 13], sizes = [8, 1], strides = [1, 1]} : vector<8x16xf32> to vector<8x1xf32>
    %462 = vector.extract_strided_slice %368 {offsets = [13, 0], sizes = [1, 8], strides = [1, 1]} : vector<16x8xf32> to vector<1x8xf32>
    %463 = vector.broadcast %461 : vector<8x1xf32> to vector<8x8xf32>
    %464 = vector.broadcast %462 : vector<1x8xf32> to vector<8x8xf32>
    %465 = arith.subf %463, %464 : vector<8x8xf32>
    %466 = math.absf %465 : vector<8x8xf32>
    %467 = arith.addf %460, %466 : vector<8x8xf32>
    %468 = vector.extract_strided_slice %367 {offsets = [0, 14], sizes = [8, 1], strides = [1, 1]} : vector<8x16xf32> to vector<8x1xf32>
    %469 = vector.extract_strided_slice %368 {offsets = [14, 0], sizes = [1, 8], strides = [1, 1]} : vector<16x8xf32> to vector<1x8xf32>
    %470 = vector.broadcast %468 : vector<8x1xf32> to vector<8x8xf32>
    %471 = vector.broadcast %469 : vector<1x8xf32> to vector<8x8xf32>
    %472 = arith.subf %470, %471 : vector<8x8xf32>
    %473 = math.absf %472 : vector<8x8xf32>
    %474 = arith.addf %467, %473 : vector<8x8xf32>
    %475 = vector.extract_strided_slice %367 {offsets = [0, 15], sizes = [8, 1], strides = [1, 1]} : vector<8x16xf32> to vector<8x1xf32>
    %476 = vector.extract_strided_slice %368 {offsets = [15, 0], sizes = [1, 8], strides = [1, 1]} : vector<16x8xf32> to vector<1x8xf32>
    %477 = vector.broadcast %475 : vector<8x1xf32> to vector<8x8xf32>
    %478 = vector.broadcast %476 : vector<1x8xf32> to vector<8x8xf32>
    %479 = arith.subf %477, %478 : vector<8x8xf32>
    %480 = math.absf %479 : vector<8x8xf32>
    %481 = arith.addf %474, %480 : vector<8x8xf32>
    %cst_16 = arith.constant 0.000000e+00 : f32
    %482 = vector.broadcast %cst_16 : f32 to vector<8x8xf32>
    %483 = arith.subf %482, %481 : vector<8x8xf32>
    %484 = math.exp %483 : vector<8x8xf32>
    %cst_17 = arith.constant dense<0.000000e+00> : vector<8xf32>
    %485 = vector.multi_reduction <add>, %484, %cst_17 [1] : vector<8x8xf32> to vector<8xf32>
    %486 = vector.shape_cast %485 : vector<8xf32> to vector<8x1xf32>
    %487 = vector.extract_strided_slice %6 {offsets = [0, 64], sizes = [8, 16], strides = [1, 1]} : vector<8x256xf32> to vector<8x16xf32>
    %488 = vector.extract_strided_slice %5 {offsets = [64, 0], sizes = [16, 8], strides = [1, 1]} : vector<256x8xf32> to vector<16x8xf32>
    %cst_18 = arith.constant 0.000000e+00 : f32
    %489 = vector.broadcast %cst_18 : f32 to vector<8x8xf32>
    %490 = vector.extract_strided_slice %487 {offsets = [0, 0], sizes = [8, 1], strides = [1, 1]} : vector<8x16xf32> to vector<8x1xf32>
    %491 = vector.extract_strided_slice %488 {offsets = [0, 0], sizes = [1, 8], strides = [1, 1]} : vector<16x8xf32> to vector<1x8xf32>
    %492 = vector.broadcast %490 : vector<8x1xf32> to vector<8x8xf32>
    %493 = vector.broadcast %491 : vector<1x8xf32> to vector<8x8xf32>
    %494 = arith.subf %492, %493 : vector<8x8xf32>
    %495 = math.absf %494 : vector<8x8xf32>
    %496 = arith.addf %489, %495 : vector<8x8xf32>
    %497 = vector.extract_strided_slice %487 {offsets = [0, 1], sizes = [8, 1], strides = [1, 1]} : vector<8x16xf32> to vector<8x1xf32>
    %498 = vector.extract_strided_slice %488 {offsets = [1, 0], sizes = [1, 8], strides = [1, 1]} : vector<16x8xf32> to vector<1x8xf32>
    %499 = vector.broadcast %497 : vector<8x1xf32> to vector<8x8xf32>
    %500 = vector.broadcast %498 : vector<1x8xf32> to vector<8x8xf32>
    %501 = arith.subf %499, %500 : vector<8x8xf32>
    %502 = math.absf %501 : vector<8x8xf32>
    %503 = arith.addf %496, %502 : vector<8x8xf32>
    %504 = vector.extract_strided_slice %487 {offsets = [0, 2], sizes = [8, 1], strides = [1, 1]} : vector<8x16xf32> to vector<8x1xf32>
    %505 = vector.extract_strided_slice %488 {offsets = [2, 0], sizes = [1, 8], strides = [1, 1]} : vector<16x8xf32> to vector<1x8xf32>
    %506 = vector.broadcast %504 : vector<8x1xf32> to vector<8x8xf32>
    %507 = vector.broadcast %505 : vector<1x8xf32> to vector<8x8xf32>
    %508 = arith.subf %506, %507 : vector<8x8xf32>
    %509 = math.absf %508 : vector<8x8xf32>
    %510 = arith.addf %503, %509 : vector<8x8xf32>
    %511 = vector.extract_strided_slice %487 {offsets = [0, 3], sizes = [8, 1], strides = [1, 1]} : vector<8x16xf32> to vector<8x1xf32>
    %512 = vector.extract_strided_slice %488 {offsets = [3, 0], sizes = [1, 8], strides = [1, 1]} : vector<16x8xf32> to vector<1x8xf32>
    %513 = vector.broadcast %511 : vector<8x1xf32> to vector<8x8xf32>
    %514 = vector.broadcast %512 : vector<1x8xf32> to vector<8x8xf32>
    %515 = arith.subf %513, %514 : vector<8x8xf32>
    %516 = math.absf %515 : vector<8x8xf32>
    %517 = arith.addf %510, %516 : vector<8x8xf32>
    %518 = vector.extract_strided_slice %487 {offsets = [0, 4], sizes = [8, 1], strides = [1, 1]} : vector<8x16xf32> to vector<8x1xf32>
    %519 = vector.extract_strided_slice %488 {offsets = [4, 0], sizes = [1, 8], strides = [1, 1]} : vector<16x8xf32> to vector<1x8xf32>
    %520 = vector.broadcast %518 : vector<8x1xf32> to vector<8x8xf32>
    %521 = vector.broadcast %519 : vector<1x8xf32> to vector<8x8xf32>
    %522 = arith.subf %520, %521 : vector<8x8xf32>
    %523 = math.absf %522 : vector<8x8xf32>
    %524 = arith.addf %517, %523 : vector<8x8xf32>
    %525 = vector.extract_strided_slice %487 {offsets = [0, 5], sizes = [8, 1], strides = [1, 1]} : vector<8x16xf32> to vector<8x1xf32>
    %526 = vector.extract_strided_slice %488 {offsets = [5, 0], sizes = [1, 8], strides = [1, 1]} : vector<16x8xf32> to vector<1x8xf32>
    %527 = vector.broadcast %525 : vector<8x1xf32> to vector<8x8xf32>
    %528 = vector.broadcast %526 : vector<1x8xf32> to vector<8x8xf32>
    %529 = arith.subf %527, %528 : vector<8x8xf32>
    %530 = math.absf %529 : vector<8x8xf32>
    %531 = arith.addf %524, %530 : vector<8x8xf32>
    %532 = vector.extract_strided_slice %487 {offsets = [0, 6], sizes = [8, 1], strides = [1, 1]} : vector<8x16xf32> to vector<8x1xf32>
    %533 = vector.extract_strided_slice %488 {offsets = [6, 0], sizes = [1, 8], strides = [1, 1]} : vector<16x8xf32> to vector<1x8xf32>
    %534 = vector.broadcast %532 : vector<8x1xf32> to vector<8x8xf32>
    %535 = vector.broadcast %533 : vector<1x8xf32> to vector<8x8xf32>
    %536 = arith.subf %534, %535 : vector<8x8xf32>
    %537 = math.absf %536 : vector<8x8xf32>
    %538 = arith.addf %531, %537 : vector<8x8xf32>
    %539 = vector.extract_strided_slice %487 {offsets = [0, 7], sizes = [8, 1], strides = [1, 1]} : vector<8x16xf32> to vector<8x1xf32>
    %540 = vector.extract_strided_slice %488 {offsets = [7, 0], sizes = [1, 8], strides = [1, 1]} : vector<16x8xf32> to vector<1x8xf32>
    %541 = vector.broadcast %539 : vector<8x1xf32> to vector<8x8xf32>
    %542 = vector.broadcast %540 : vector<1x8xf32> to vector<8x8xf32>
    %543 = arith.subf %541, %542 : vector<8x8xf32>
    %544 = math.absf %543 : vector<8x8xf32>
    %545 = arith.addf %538, %544 : vector<8x8xf32>
    %546 = vector.extract_strided_slice %487 {offsets = [0, 8], sizes = [8, 1], strides = [1, 1]} : vector<8x16xf32> to vector<8x1xf32>
    %547 = vector.extract_strided_slice %488 {offsets = [8, 0], sizes = [1, 8], strides = [1, 1]} : vector<16x8xf32> to vector<1x8xf32>
    %548 = vector.broadcast %546 : vector<8x1xf32> to vector<8x8xf32>
    %549 = vector.broadcast %547 : vector<1x8xf32> to vector<8x8xf32>
    %550 = arith.subf %548, %549 : vector<8x8xf32>
    %551 = math.absf %550 : vector<8x8xf32>
    %552 = arith.addf %545, %551 : vector<8x8xf32>
    %553 = vector.extract_strided_slice %487 {offsets = [0, 9], sizes = [8, 1], strides = [1, 1]} : vector<8x16xf32> to vector<8x1xf32>
    %554 = vector.extract_strided_slice %488 {offsets = [9, 0], sizes = [1, 8], strides = [1, 1]} : vector<16x8xf32> to vector<1x8xf32>
    %555 = vector.broadcast %553 : vector<8x1xf32> to vector<8x8xf32>
    %556 = vector.broadcast %554 : vector<1x8xf32> to vector<8x8xf32>
    %557 = arith.subf %555, %556 : vector<8x8xf32>
    %558 = math.absf %557 : vector<8x8xf32>
    %559 = arith.addf %552, %558 : vector<8x8xf32>
    %560 = vector.extract_strided_slice %487 {offsets = [0, 10], sizes = [8, 1], strides = [1, 1]} : vector<8x16xf32> to vector<8x1xf32>
    %561 = vector.extract_strided_slice %488 {offsets = [10, 0], sizes = [1, 8], strides = [1, 1]} : vector<16x8xf32> to vector<1x8xf32>
    %562 = vector.broadcast %560 : vector<8x1xf32> to vector<8x8xf32>
    %563 = vector.broadcast %561 : vector<1x8xf32> to vector<8x8xf32>
    %564 = arith.subf %562, %563 : vector<8x8xf32>
    %565 = math.absf %564 : vector<8x8xf32>
    %566 = arith.addf %559, %565 : vector<8x8xf32>
    %567 = vector.extract_strided_slice %487 {offsets = [0, 11], sizes = [8, 1], strides = [1, 1]} : vector<8x16xf32> to vector<8x1xf32>
    %568 = vector.extract_strided_slice %488 {offsets = [11, 0], sizes = [1, 8], strides = [1, 1]} : vector<16x8xf32> to vector<1x8xf32>
    %569 = vector.broadcast %567 : vector<8x1xf32> to vector<8x8xf32>
    %570 = vector.broadcast %568 : vector<1x8xf32> to vector<8x8xf32>
    %571 = arith.subf %569, %570 : vector<8x8xf32>
    %572 = math.absf %571 : vector<8x8xf32>
    %573 = arith.addf %566, %572 : vector<8x8xf32>
    %574 = vector.extract_strided_slice %487 {offsets = [0, 12], sizes = [8, 1], strides = [1, 1]} : vector<8x16xf32> to vector<8x1xf32>
    %575 = vector.extract_strided_slice %488 {offsets = [12, 0], sizes = [1, 8], strides = [1, 1]} : vector<16x8xf32> to vector<1x8xf32>
    %576 = vector.broadcast %574 : vector<8x1xf32> to vector<8x8xf32>
    %577 = vector.broadcast %575 : vector<1x8xf32> to vector<8x8xf32>
    %578 = arith.subf %576, %577 : vector<8x8xf32>
    %579 = math.absf %578 : vector<8x8xf32>
    %580 = arith.addf %573, %579 : vector<8x8xf32>
    %581 = vector.extract_strided_slice %487 {offsets = [0, 13], sizes = [8, 1], strides = [1, 1]} : vector<8x16xf32> to vector<8x1xf32>
    %582 = vector.extract_strided_slice %488 {offsets = [13, 0], sizes = [1, 8], strides = [1, 1]} : vector<16x8xf32> to vector<1x8xf32>
    %583 = vector.broadcast %581 : vector<8x1xf32> to vector<8x8xf32>
    %584 = vector.broadcast %582 : vector<1x8xf32> to vector<8x8xf32>
    %585 = arith.subf %583, %584 : vector<8x8xf32>
    %586 = math.absf %585 : vector<8x8xf32>
    %587 = arith.addf %580, %586 : vector<8x8xf32>
    %588 = vector.extract_strided_slice %487 {offsets = [0, 14], sizes = [8, 1], strides = [1, 1]} : vector<8x16xf32> to vector<8x1xf32>
    %589 = vector.extract_strided_slice %488 {offsets = [14, 0], sizes = [1, 8], strides = [1, 1]} : vector<16x8xf32> to vector<1x8xf32>
    %590 = vector.broadcast %588 : vector<8x1xf32> to vector<8x8xf32>
    %591 = vector.broadcast %589 : vector<1x8xf32> to vector<8x8xf32>
    %592 = arith.subf %590, %591 : vector<8x8xf32>
    %593 = math.absf %592 : vector<8x8xf32>
    %594 = arith.addf %587, %593 : vector<8x8xf32>
    %595 = vector.extract_strided_slice %487 {offsets = [0, 15], sizes = [8, 1], strides = [1, 1]} : vector<8x16xf32> to vector<8x1xf32>
    %596 = vector.extract_strided_slice %488 {offsets = [15, 0], sizes = [1, 8], strides = [1, 1]} : vector<16x8xf32> to vector<1x8xf32>
    %597 = vector.broadcast %595 : vector<8x1xf32> to vector<8x8xf32>
    %598 = vector.broadcast %596 : vector<1x8xf32> to vector<8x8xf32>
    %599 = arith.subf %597, %598 : vector<8x8xf32>
    %600 = math.absf %599 : vector<8x8xf32>
    %601 = arith.addf %594, %600 : vector<8x8xf32>
    %cst_19 = arith.constant 0.000000e+00 : f32
    %602 = vector.broadcast %cst_19 : f32 to vector<8x8xf32>
    %603 = arith.subf %602, %601 : vector<8x8xf32>
    %604 = math.exp %603 : vector<8x8xf32>
    %cst_20 = arith.constant dense<0.000000e+00> : vector<8xf32>
    %605 = vector.multi_reduction <add>, %604, %cst_20 [1] : vector<8x8xf32> to vector<8xf32>
    %606 = vector.shape_cast %605 : vector<8xf32> to vector<8x1xf32>
    %607 = vector.extract_strided_slice %6 {offsets = [0, 80], sizes = [8, 16], strides = [1, 1]} : vector<8x256xf32> to vector<8x16xf32>
    %608 = vector.extract_strided_slice %5 {offsets = [80, 0], sizes = [16, 8], strides = [1, 1]} : vector<256x8xf32> to vector<16x8xf32>
    %cst_21 = arith.constant 0.000000e+00 : f32
    %609 = vector.broadcast %cst_21 : f32 to vector<8x8xf32>
    %610 = vector.extract_strided_slice %607 {offsets = [0, 0], sizes = [8, 1], strides = [1, 1]} : vector<8x16xf32> to vector<8x1xf32>
    %611 = vector.extract_strided_slice %608 {offsets = [0, 0], sizes = [1, 8], strides = [1, 1]} : vector<16x8xf32> to vector<1x8xf32>
    %612 = vector.broadcast %610 : vector<8x1xf32> to vector<8x8xf32>
    %613 = vector.broadcast %611 : vector<1x8xf32> to vector<8x8xf32>
    %614 = arith.subf %612, %613 : vector<8x8xf32>
    %615 = math.absf %614 : vector<8x8xf32>
    %616 = arith.addf %609, %615 : vector<8x8xf32>
    %617 = vector.extract_strided_slice %607 {offsets = [0, 1], sizes = [8, 1], strides = [1, 1]} : vector<8x16xf32> to vector<8x1xf32>
    %618 = vector.extract_strided_slice %608 {offsets = [1, 0], sizes = [1, 8], strides = [1, 1]} : vector<16x8xf32> to vector<1x8xf32>
    %619 = vector.broadcast %617 : vector<8x1xf32> to vector<8x8xf32>
    %620 = vector.broadcast %618 : vector<1x8xf32> to vector<8x8xf32>
    %621 = arith.subf %619, %620 : vector<8x8xf32>
    %622 = math.absf %621 : vector<8x8xf32>
    %623 = arith.addf %616, %622 : vector<8x8xf32>
    %624 = vector.extract_strided_slice %607 {offsets = [0, 2], sizes = [8, 1], strides = [1, 1]} : vector<8x16xf32> to vector<8x1xf32>
    %625 = vector.extract_strided_slice %608 {offsets = [2, 0], sizes = [1, 8], strides = [1, 1]} : vector<16x8xf32> to vector<1x8xf32>
    %626 = vector.broadcast %624 : vector<8x1xf32> to vector<8x8xf32>
    %627 = vector.broadcast %625 : vector<1x8xf32> to vector<8x8xf32>
    %628 = arith.subf %626, %627 : vector<8x8xf32>
    %629 = math.absf %628 : vector<8x8xf32>
    %630 = arith.addf %623, %629 : vector<8x8xf32>
    %631 = vector.extract_strided_slice %607 {offsets = [0, 3], sizes = [8, 1], strides = [1, 1]} : vector<8x16xf32> to vector<8x1xf32>
    %632 = vector.extract_strided_slice %608 {offsets = [3, 0], sizes = [1, 8], strides = [1, 1]} : vector<16x8xf32> to vector<1x8xf32>
    %633 = vector.broadcast %631 : vector<8x1xf32> to vector<8x8xf32>
    %634 = vector.broadcast %632 : vector<1x8xf32> to vector<8x8xf32>
    %635 = arith.subf %633, %634 : vector<8x8xf32>
    %636 = math.absf %635 : vector<8x8xf32>
    %637 = arith.addf %630, %636 : vector<8x8xf32>
    %638 = vector.extract_strided_slice %607 {offsets = [0, 4], sizes = [8, 1], strides = [1, 1]} : vector<8x16xf32> to vector<8x1xf32>
    %639 = vector.extract_strided_slice %608 {offsets = [4, 0], sizes = [1, 8], strides = [1, 1]} : vector<16x8xf32> to vector<1x8xf32>
    %640 = vector.broadcast %638 : vector<8x1xf32> to vector<8x8xf32>
    %641 = vector.broadcast %639 : vector<1x8xf32> to vector<8x8xf32>
    %642 = arith.subf %640, %641 : vector<8x8xf32>
    %643 = math.absf %642 : vector<8x8xf32>
    %644 = arith.addf %637, %643 : vector<8x8xf32>
    %645 = vector.extract_strided_slice %607 {offsets = [0, 5], sizes = [8, 1], strides = [1, 1]} : vector<8x16xf32> to vector<8x1xf32>
    %646 = vector.extract_strided_slice %608 {offsets = [5, 0], sizes = [1, 8], strides = [1, 1]} : vector<16x8xf32> to vector<1x8xf32>
    %647 = vector.broadcast %645 : vector<8x1xf32> to vector<8x8xf32>
    %648 = vector.broadcast %646 : vector<1x8xf32> to vector<8x8xf32>
    %649 = arith.subf %647, %648 : vector<8x8xf32>
    %650 = math.absf %649 : vector<8x8xf32>
    %651 = arith.addf %644, %650 : vector<8x8xf32>
    %652 = vector.extract_strided_slice %607 {offsets = [0, 6], sizes = [8, 1], strides = [1, 1]} : vector<8x16xf32> to vector<8x1xf32>
    %653 = vector.extract_strided_slice %608 {offsets = [6, 0], sizes = [1, 8], strides = [1, 1]} : vector<16x8xf32> to vector<1x8xf32>
    %654 = vector.broadcast %652 : vector<8x1xf32> to vector<8x8xf32>
    %655 = vector.broadcast %653 : vector<1x8xf32> to vector<8x8xf32>
    %656 = arith.subf %654, %655 : vector<8x8xf32>
    %657 = math.absf %656 : vector<8x8xf32>
    %658 = arith.addf %651, %657 : vector<8x8xf32>
    %659 = vector.extract_strided_slice %607 {offsets = [0, 7], sizes = [8, 1], strides = [1, 1]} : vector<8x16xf32> to vector<8x1xf32>
    %660 = vector.extract_strided_slice %608 {offsets = [7, 0], sizes = [1, 8], strides = [1, 1]} : vector<16x8xf32> to vector<1x8xf32>
    %661 = vector.broadcast %659 : vector<8x1xf32> to vector<8x8xf32>
    %662 = vector.broadcast %660 : vector<1x8xf32> to vector<8x8xf32>
    %663 = arith.subf %661, %662 : vector<8x8xf32>
    %664 = math.absf %663 : vector<8x8xf32>
    %665 = arith.addf %658, %664 : vector<8x8xf32>
    %666 = vector.extract_strided_slice %607 {offsets = [0, 8], sizes = [8, 1], strides = [1, 1]} : vector<8x16xf32> to vector<8x1xf32>
    %667 = vector.extract_strided_slice %608 {offsets = [8, 0], sizes = [1, 8], strides = [1, 1]} : vector<16x8xf32> to vector<1x8xf32>
    %668 = vector.broadcast %666 : vector<8x1xf32> to vector<8x8xf32>
    %669 = vector.broadcast %667 : vector<1x8xf32> to vector<8x8xf32>
    %670 = arith.subf %668, %669 : vector<8x8xf32>
    %671 = math.absf %670 : vector<8x8xf32>
    %672 = arith.addf %665, %671 : vector<8x8xf32>
    %673 = vector.extract_strided_slice %607 {offsets = [0, 9], sizes = [8, 1], strides = [1, 1]} : vector<8x16xf32> to vector<8x1xf32>
    %674 = vector.extract_strided_slice %608 {offsets = [9, 0], sizes = [1, 8], strides = [1, 1]} : vector<16x8xf32> to vector<1x8xf32>
    %675 = vector.broadcast %673 : vector<8x1xf32> to vector<8x8xf32>
    %676 = vector.broadcast %674 : vector<1x8xf32> to vector<8x8xf32>
    %677 = arith.subf %675, %676 : vector<8x8xf32>
    %678 = math.absf %677 : vector<8x8xf32>
    %679 = arith.addf %672, %678 : vector<8x8xf32>
    %680 = vector.extract_strided_slice %607 {offsets = [0, 10], sizes = [8, 1], strides = [1, 1]} : vector<8x16xf32> to vector<8x1xf32>
    %681 = vector.extract_strided_slice %608 {offsets = [10, 0], sizes = [1, 8], strides = [1, 1]} : vector<16x8xf32> to vector<1x8xf32>
    %682 = vector.broadcast %680 : vector<8x1xf32> to vector<8x8xf32>
    %683 = vector.broadcast %681 : vector<1x8xf32> to vector<8x8xf32>
    %684 = arith.subf %682, %683 : vector<8x8xf32>
    %685 = math.absf %684 : vector<8x8xf32>
    %686 = arith.addf %679, %685 : vector<8x8xf32>
    %687 = vector.extract_strided_slice %607 {offsets = [0, 11], sizes = [8, 1], strides = [1, 1]} : vector<8x16xf32> to vector<8x1xf32>
    %688 = vector.extract_strided_slice %608 {offsets = [11, 0], sizes = [1, 8], strides = [1, 1]} : vector<16x8xf32> to vector<1x8xf32>
    %689 = vector.broadcast %687 : vector<8x1xf32> to vector<8x8xf32>
    %690 = vector.broadcast %688 : vector<1x8xf32> to vector<8x8xf32>
    %691 = arith.subf %689, %690 : vector<8x8xf32>
    %692 = math.absf %691 : vector<8x8xf32>
    %693 = arith.addf %686, %692 : vector<8x8xf32>
    %694 = vector.extract_strided_slice %607 {offsets = [0, 12], sizes = [8, 1], strides = [1, 1]} : vector<8x16xf32> to vector<8x1xf32>
    %695 = vector.extract_strided_slice %608 {offsets = [12, 0], sizes = [1, 8], strides = [1, 1]} : vector<16x8xf32> to vector<1x8xf32>
    %696 = vector.broadcast %694 : vector<8x1xf32> to vector<8x8xf32>
    %697 = vector.broadcast %695 : vector<1x8xf32> to vector<8x8xf32>
    %698 = arith.subf %696, %697 : vector<8x8xf32>
    %699 = math.absf %698 : vector<8x8xf32>
    %700 = arith.addf %693, %699 : vector<8x8xf32>
    %701 = vector.extract_strided_slice %607 {offsets = [0, 13], sizes = [8, 1], strides = [1, 1]} : vector<8x16xf32> to vector<8x1xf32>
    %702 = vector.extract_strided_slice %608 {offsets = [13, 0], sizes = [1, 8], strides = [1, 1]} : vector<16x8xf32> to vector<1x8xf32>
    %703 = vector.broadcast %701 : vector<8x1xf32> to vector<8x8xf32>
    %704 = vector.broadcast %702 : vector<1x8xf32> to vector<8x8xf32>
    %705 = arith.subf %703, %704 : vector<8x8xf32>
    %706 = math.absf %705 : vector<8x8xf32>
    %707 = arith.addf %700, %706 : vector<8x8xf32>
    %708 = vector.extract_strided_slice %607 {offsets = [0, 14], sizes = [8, 1], strides = [1, 1]} : vector<8x16xf32> to vector<8x1xf32>
    %709 = vector.extract_strided_slice %608 {offsets = [14, 0], sizes = [1, 8], strides = [1, 1]} : vector<16x8xf32> to vector<1x8xf32>
    %710 = vector.broadcast %708 : vector<8x1xf32> to vector<8x8xf32>
    %711 = vector.broadcast %709 : vector<1x8xf32> to vector<8x8xf32>
    %712 = arith.subf %710, %711 : vector<8x8xf32>
    %713 = math.absf %712 : vector<8x8xf32>
    %714 = arith.addf %707, %713 : vector<8x8xf32>
    %715 = vector.extract_strided_slice %607 {offsets = [0, 15], sizes = [8, 1], strides = [1, 1]} : vector<8x16xf32> to vector<8x1xf32>
    %716 = vector.extract_strided_slice %608 {offsets = [15, 0], sizes = [1, 8], strides = [1, 1]} : vector<16x8xf32> to vector<1x8xf32>
    %717 = vector.broadcast %715 : vector<8x1xf32> to vector<8x8xf32>
    %718 = vector.broadcast %716 : vector<1x8xf32> to vector<8x8xf32>
    %719 = arith.subf %717, %718 : vector<8x8xf32>
    %720 = math.absf %719 : vector<8x8xf32>
    %721 = arith.addf %714, %720 : vector<8x8xf32>
    %cst_22 = arith.constant 0.000000e+00 : f32
    %722 = vector.broadcast %cst_22 : f32 to vector<8x8xf32>
    %723 = arith.subf %722, %721 : vector<8x8xf32>
    %724 = math.exp %723 : vector<8x8xf32>
    %cst_23 = arith.constant dense<0.000000e+00> : vector<8xf32>
    %725 = vector.multi_reduction <add>, %724, %cst_23 [1] : vector<8x8xf32> to vector<8xf32>
    %726 = vector.shape_cast %725 : vector<8xf32> to vector<8x1xf32>
    %727 = vector.extract_strided_slice %6 {offsets = [0, 96], sizes = [8, 16], strides = [1, 1]} : vector<8x256xf32> to vector<8x16xf32>
    %728 = vector.extract_strided_slice %5 {offsets = [96, 0], sizes = [16, 8], strides = [1, 1]} : vector<256x8xf32> to vector<16x8xf32>
    %cst_24 = arith.constant 0.000000e+00 : f32
    %729 = vector.broadcast %cst_24 : f32 to vector<8x8xf32>
    %730 = vector.extract_strided_slice %727 {offsets = [0, 0], sizes = [8, 1], strides = [1, 1]} : vector<8x16xf32> to vector<8x1xf32>
    %731 = vector.extract_strided_slice %728 {offsets = [0, 0], sizes = [1, 8], strides = [1, 1]} : vector<16x8xf32> to vector<1x8xf32>
    %732 = vector.broadcast %730 : vector<8x1xf32> to vector<8x8xf32>
    %733 = vector.broadcast %731 : vector<1x8xf32> to vector<8x8xf32>
    %734 = arith.subf %732, %733 : vector<8x8xf32>
    %735 = math.absf %734 : vector<8x8xf32>
    %736 = arith.addf %729, %735 : vector<8x8xf32>
    %737 = vector.extract_strided_slice %727 {offsets = [0, 1], sizes = [8, 1], strides = [1, 1]} : vector<8x16xf32> to vector<8x1xf32>
    %738 = vector.extract_strided_slice %728 {offsets = [1, 0], sizes = [1, 8], strides = [1, 1]} : vector<16x8xf32> to vector<1x8xf32>
    %739 = vector.broadcast %737 : vector<8x1xf32> to vector<8x8xf32>
    %740 = vector.broadcast %738 : vector<1x8xf32> to vector<8x8xf32>
    %741 = arith.subf %739, %740 : vector<8x8xf32>
    %742 = math.absf %741 : vector<8x8xf32>
    %743 = arith.addf %736, %742 : vector<8x8xf32>
    %744 = vector.extract_strided_slice %727 {offsets = [0, 2], sizes = [8, 1], strides = [1, 1]} : vector<8x16xf32> to vector<8x1xf32>
    %745 = vector.extract_strided_slice %728 {offsets = [2, 0], sizes = [1, 8], strides = [1, 1]} : vector<16x8xf32> to vector<1x8xf32>
    %746 = vector.broadcast %744 : vector<8x1xf32> to vector<8x8xf32>
    %747 = vector.broadcast %745 : vector<1x8xf32> to vector<8x8xf32>
    %748 = arith.subf %746, %747 : vector<8x8xf32>
    %749 = math.absf %748 : vector<8x8xf32>
    %750 = arith.addf %743, %749 : vector<8x8xf32>
    %751 = vector.extract_strided_slice %727 {offsets = [0, 3], sizes = [8, 1], strides = [1, 1]} : vector<8x16xf32> to vector<8x1xf32>
    %752 = vector.extract_strided_slice %728 {offsets = [3, 0], sizes = [1, 8], strides = [1, 1]} : vector<16x8xf32> to vector<1x8xf32>
    %753 = vector.broadcast %751 : vector<8x1xf32> to vector<8x8xf32>
    %754 = vector.broadcast %752 : vector<1x8xf32> to vector<8x8xf32>
    %755 = arith.subf %753, %754 : vector<8x8xf32>
    %756 = math.absf %755 : vector<8x8xf32>
    %757 = arith.addf %750, %756 : vector<8x8xf32>
    %758 = vector.extract_strided_slice %727 {offsets = [0, 4], sizes = [8, 1], strides = [1, 1]} : vector<8x16xf32> to vector<8x1xf32>
    %759 = vector.extract_strided_slice %728 {offsets = [4, 0], sizes = [1, 8], strides = [1, 1]} : vector<16x8xf32> to vector<1x8xf32>
    %760 = vector.broadcast %758 : vector<8x1xf32> to vector<8x8xf32>
    %761 = vector.broadcast %759 : vector<1x8xf32> to vector<8x8xf32>
    %762 = arith.subf %760, %761 : vector<8x8xf32>
    %763 = math.absf %762 : vector<8x8xf32>
    %764 = arith.addf %757, %763 : vector<8x8xf32>
    %765 = vector.extract_strided_slice %727 {offsets = [0, 5], sizes = [8, 1], strides = [1, 1]} : vector<8x16xf32> to vector<8x1xf32>
    %766 = vector.extract_strided_slice %728 {offsets = [5, 0], sizes = [1, 8], strides = [1, 1]} : vector<16x8xf32> to vector<1x8xf32>
    %767 = vector.broadcast %765 : vector<8x1xf32> to vector<8x8xf32>
    %768 = vector.broadcast %766 : vector<1x8xf32> to vector<8x8xf32>
    %769 = arith.subf %767, %768 : vector<8x8xf32>
    %770 = math.absf %769 : vector<8x8xf32>
    %771 = arith.addf %764, %770 : vector<8x8xf32>
    %772 = vector.extract_strided_slice %727 {offsets = [0, 6], sizes = [8, 1], strides = [1, 1]} : vector<8x16xf32> to vector<8x1xf32>
    %773 = vector.extract_strided_slice %728 {offsets = [6, 0], sizes = [1, 8], strides = [1, 1]} : vector<16x8xf32> to vector<1x8xf32>
    %774 = vector.broadcast %772 : vector<8x1xf32> to vector<8x8xf32>
    %775 = vector.broadcast %773 : vector<1x8xf32> to vector<8x8xf32>
    %776 = arith.subf %774, %775 : vector<8x8xf32>
    %777 = math.absf %776 : vector<8x8xf32>
    %778 = arith.addf %771, %777 : vector<8x8xf32>
    %779 = vector.extract_strided_slice %727 {offsets = [0, 7], sizes = [8, 1], strides = [1, 1]} : vector<8x16xf32> to vector<8x1xf32>
    %780 = vector.extract_strided_slice %728 {offsets = [7, 0], sizes = [1, 8], strides = [1, 1]} : vector<16x8xf32> to vector<1x8xf32>
    %781 = vector.broadcast %779 : vector<8x1xf32> to vector<8x8xf32>
    %782 = vector.broadcast %780 : vector<1x8xf32> to vector<8x8xf32>
    %783 = arith.subf %781, %782 : vector<8x8xf32>
    %784 = math.absf %783 : vector<8x8xf32>
    %785 = arith.addf %778, %784 : vector<8x8xf32>
    %786 = vector.extract_strided_slice %727 {offsets = [0, 8], sizes = [8, 1], strides = [1, 1]} : vector<8x16xf32> to vector<8x1xf32>
    %787 = vector.extract_strided_slice %728 {offsets = [8, 0], sizes = [1, 8], strides = [1, 1]} : vector<16x8xf32> to vector<1x8xf32>
    %788 = vector.broadcast %786 : vector<8x1xf32> to vector<8x8xf32>
    %789 = vector.broadcast %787 : vector<1x8xf32> to vector<8x8xf32>
    %790 = arith.subf %788, %789 : vector<8x8xf32>
    %791 = math.absf %790 : vector<8x8xf32>
    %792 = arith.addf %785, %791 : vector<8x8xf32>
    %793 = vector.extract_strided_slice %727 {offsets = [0, 9], sizes = [8, 1], strides = [1, 1]} : vector<8x16xf32> to vector<8x1xf32>
    %794 = vector.extract_strided_slice %728 {offsets = [9, 0], sizes = [1, 8], strides = [1, 1]} : vector<16x8xf32> to vector<1x8xf32>
    %795 = vector.broadcast %793 : vector<8x1xf32> to vector<8x8xf32>
    %796 = vector.broadcast %794 : vector<1x8xf32> to vector<8x8xf32>
    %797 = arith.subf %795, %796 : vector<8x8xf32>
    %798 = math.absf %797 : vector<8x8xf32>
    %799 = arith.addf %792, %798 : vector<8x8xf32>
    %800 = vector.extract_strided_slice %727 {offsets = [0, 10], sizes = [8, 1], strides = [1, 1]} : vector<8x16xf32> to vector<8x1xf32>
    %801 = vector.extract_strided_slice %728 {offsets = [10, 0], sizes = [1, 8], strides = [1, 1]} : vector<16x8xf32> to vector<1x8xf32>
    %802 = vector.broadcast %800 : vector<8x1xf32> to vector<8x8xf32>
    %803 = vector.broadcast %801 : vector<1x8xf32> to vector<8x8xf32>
    %804 = arith.subf %802, %803 : vector<8x8xf32>
    %805 = math.absf %804 : vector<8x8xf32>
    %806 = arith.addf %799, %805 : vector<8x8xf32>
    %807 = vector.extract_strided_slice %727 {offsets = [0, 11], sizes = [8, 1], strides = [1, 1]} : vector<8x16xf32> to vector<8x1xf32>
    %808 = vector.extract_strided_slice %728 {offsets = [11, 0], sizes = [1, 8], strides = [1, 1]} : vector<16x8xf32> to vector<1x8xf32>
    %809 = vector.broadcast %807 : vector<8x1xf32> to vector<8x8xf32>
    %810 = vector.broadcast %808 : vector<1x8xf32> to vector<8x8xf32>
    %811 = arith.subf %809, %810 : vector<8x8xf32>
    %812 = math.absf %811 : vector<8x8xf32>
    %813 = arith.addf %806, %812 : vector<8x8xf32>
    %814 = vector.extract_strided_slice %727 {offsets = [0, 12], sizes = [8, 1], strides = [1, 1]} : vector<8x16xf32> to vector<8x1xf32>
    %815 = vector.extract_strided_slice %728 {offsets = [12, 0], sizes = [1, 8], strides = [1, 1]} : vector<16x8xf32> to vector<1x8xf32>
    %816 = vector.broadcast %814 : vector<8x1xf32> to vector<8x8xf32>
    %817 = vector.broadcast %815 : vector<1x8xf32> to vector<8x8xf32>
    %818 = arith.subf %816, %817 : vector<8x8xf32>
    %819 = math.absf %818 : vector<8x8xf32>
    %820 = arith.addf %813, %819 : vector<8x8xf32>
    %821 = vector.extract_strided_slice %727 {offsets = [0, 13], sizes = [8, 1], strides = [1, 1]} : vector<8x16xf32> to vector<8x1xf32>
    %822 = vector.extract_strided_slice %728 {offsets = [13, 0], sizes = [1, 8], strides = [1, 1]} : vector<16x8xf32> to vector<1x8xf32>
    %823 = vector.broadcast %821 : vector<8x1xf32> to vector<8x8xf32>
    %824 = vector.broadcast %822 : vector<1x8xf32> to vector<8x8xf32>
    %825 = arith.subf %823, %824 : vector<8x8xf32>
    %826 = math.absf %825 : vector<8x8xf32>
    %827 = arith.addf %820, %826 : vector<8x8xf32>
    %828 = vector.extract_strided_slice %727 {offsets = [0, 14], sizes = [8, 1], strides = [1, 1]} : vector<8x16xf32> to vector<8x1xf32>
    %829 = vector.extract_strided_slice %728 {offsets = [14, 0], sizes = [1, 8], strides = [1, 1]} : vector<16x8xf32> to vector<1x8xf32>
    %830 = vector.broadcast %828 : vector<8x1xf32> to vector<8x8xf32>
    %831 = vector.broadcast %829 : vector<1x8xf32> to vector<8x8xf32>
    %832 = arith.subf %830, %831 : vector<8x8xf32>
    %833 = math.absf %832 : vector<8x8xf32>
    %834 = arith.addf %827, %833 : vector<8x8xf32>
    %835 = vector.extract_strided_slice %727 {offsets = [0, 15], sizes = [8, 1], strides = [1, 1]} : vector<8x16xf32> to vector<8x1xf32>
    %836 = vector.extract_strided_slice %728 {offsets = [15, 0], sizes = [1, 8], strides = [1, 1]} : vector<16x8xf32> to vector<1x8xf32>
    %837 = vector.broadcast %835 : vector<8x1xf32> to vector<8x8xf32>
    %838 = vector.broadcast %836 : vector<1x8xf32> to vector<8x8xf32>
    %839 = arith.subf %837, %838 : vector<8x8xf32>
    %840 = math.absf %839 : vector<8x8xf32>
    %841 = arith.addf %834, %840 : vector<8x8xf32>
    %cst_25 = arith.constant 0.000000e+00 : f32
    %842 = vector.broadcast %cst_25 : f32 to vector<8x8xf32>
    %843 = arith.subf %842, %841 : vector<8x8xf32>
    %844 = math.exp %843 : vector<8x8xf32>
    %cst_26 = arith.constant dense<0.000000e+00> : vector<8xf32>
    %845 = vector.multi_reduction <add>, %844, %cst_26 [1] : vector<8x8xf32> to vector<8xf32>
    %846 = vector.shape_cast %845 : vector<8xf32> to vector<8x1xf32>
    %847 = vector.extract_strided_slice %6 {offsets = [0, 112], sizes = [8, 16], strides = [1, 1]} : vector<8x256xf32> to vector<8x16xf32>
    %848 = vector.extract_strided_slice %5 {offsets = [112, 0], sizes = [16, 8], strides = [1, 1]} : vector<256x8xf32> to vector<16x8xf32>
    %cst_27 = arith.constant 0.000000e+00 : f32
    %849 = vector.broadcast %cst_27 : f32 to vector<8x8xf32>
    %850 = vector.extract_strided_slice %847 {offsets = [0, 0], sizes = [8, 1], strides = [1, 1]} : vector<8x16xf32> to vector<8x1xf32>
    %851 = vector.extract_strided_slice %848 {offsets = [0, 0], sizes = [1, 8], strides = [1, 1]} : vector<16x8xf32> to vector<1x8xf32>
    %852 = vector.broadcast %850 : vector<8x1xf32> to vector<8x8xf32>
    %853 = vector.broadcast %851 : vector<1x8xf32> to vector<8x8xf32>
    %854 = arith.subf %852, %853 : vector<8x8xf32>
    %855 = math.absf %854 : vector<8x8xf32>
    %856 = arith.addf %849, %855 : vector<8x8xf32>
    %857 = vector.extract_strided_slice %847 {offsets = [0, 1], sizes = [8, 1], strides = [1, 1]} : vector<8x16xf32> to vector<8x1xf32>
    %858 = vector.extract_strided_slice %848 {offsets = [1, 0], sizes = [1, 8], strides = [1, 1]} : vector<16x8xf32> to vector<1x8xf32>
    %859 = vector.broadcast %857 : vector<8x1xf32> to vector<8x8xf32>
    %860 = vector.broadcast %858 : vector<1x8xf32> to vector<8x8xf32>
    %861 = arith.subf %859, %860 : vector<8x8xf32>
    %862 = math.absf %861 : vector<8x8xf32>
    %863 = arith.addf %856, %862 : vector<8x8xf32>
    %864 = vector.extract_strided_slice %847 {offsets = [0, 2], sizes = [8, 1], strides = [1, 1]} : vector<8x16xf32> to vector<8x1xf32>
    %865 = vector.extract_strided_slice %848 {offsets = [2, 0], sizes = [1, 8], strides = [1, 1]} : vector<16x8xf32> to vector<1x8xf32>
    %866 = vector.broadcast %864 : vector<8x1xf32> to vector<8x8xf32>
    %867 = vector.broadcast %865 : vector<1x8xf32> to vector<8x8xf32>
    %868 = arith.subf %866, %867 : vector<8x8xf32>
    %869 = math.absf %868 : vector<8x8xf32>
    %870 = arith.addf %863, %869 : vector<8x8xf32>
    %871 = vector.extract_strided_slice %847 {offsets = [0, 3], sizes = [8, 1], strides = [1, 1]} : vector<8x16xf32> to vector<8x1xf32>
    %872 = vector.extract_strided_slice %848 {offsets = [3, 0], sizes = [1, 8], strides = [1, 1]} : vector<16x8xf32> to vector<1x8xf32>
    %873 = vector.broadcast %871 : vector<8x1xf32> to vector<8x8xf32>
    %874 = vector.broadcast %872 : vector<1x8xf32> to vector<8x8xf32>
    %875 = arith.subf %873, %874 : vector<8x8xf32>
    %876 = math.absf %875 : vector<8x8xf32>
    %877 = arith.addf %870, %876 : vector<8x8xf32>
    %878 = vector.extract_strided_slice %847 {offsets = [0, 4], sizes = [8, 1], strides = [1, 1]} : vector<8x16xf32> to vector<8x1xf32>
    %879 = vector.extract_strided_slice %848 {offsets = [4, 0], sizes = [1, 8], strides = [1, 1]} : vector<16x8xf32> to vector<1x8xf32>
    %880 = vector.broadcast %878 : vector<8x1xf32> to vector<8x8xf32>
    %881 = vector.broadcast %879 : vector<1x8xf32> to vector<8x8xf32>
    %882 = arith.subf %880, %881 : vector<8x8xf32>
    %883 = math.absf %882 : vector<8x8xf32>
    %884 = arith.addf %877, %883 : vector<8x8xf32>
    %885 = vector.extract_strided_slice %847 {offsets = [0, 5], sizes = [8, 1], strides = [1, 1]} : vector<8x16xf32> to vector<8x1xf32>
    %886 = vector.extract_strided_slice %848 {offsets = [5, 0], sizes = [1, 8], strides = [1, 1]} : vector<16x8xf32> to vector<1x8xf32>
    %887 = vector.broadcast %885 : vector<8x1xf32> to vector<8x8xf32>
    %888 = vector.broadcast %886 : vector<1x8xf32> to vector<8x8xf32>
    %889 = arith.subf %887, %888 : vector<8x8xf32>
    %890 = math.absf %889 : vector<8x8xf32>
    %891 = arith.addf %884, %890 : vector<8x8xf32>
    %892 = vector.extract_strided_slice %847 {offsets = [0, 6], sizes = [8, 1], strides = [1, 1]} : vector<8x16xf32> to vector<8x1xf32>
    %893 = vector.extract_strided_slice %848 {offsets = [6, 0], sizes = [1, 8], strides = [1, 1]} : vector<16x8xf32> to vector<1x8xf32>
    %894 = vector.broadcast %892 : vector<8x1xf32> to vector<8x8xf32>
    %895 = vector.broadcast %893 : vector<1x8xf32> to vector<8x8xf32>
    %896 = arith.subf %894, %895 : vector<8x8xf32>
    %897 = math.absf %896 : vector<8x8xf32>
    %898 = arith.addf %891, %897 : vector<8x8xf32>
    %899 = vector.extract_strided_slice %847 {offsets = [0, 7], sizes = [8, 1], strides = [1, 1]} : vector<8x16xf32> to vector<8x1xf32>
    %900 = vector.extract_strided_slice %848 {offsets = [7, 0], sizes = [1, 8], strides = [1, 1]} : vector<16x8xf32> to vector<1x8xf32>
    %901 = vector.broadcast %899 : vector<8x1xf32> to vector<8x8xf32>
    %902 = vector.broadcast %900 : vector<1x8xf32> to vector<8x8xf32>
    %903 = arith.subf %901, %902 : vector<8x8xf32>
    %904 = math.absf %903 : vector<8x8xf32>
    %905 = arith.addf %898, %904 : vector<8x8xf32>
    %906 = vector.extract_strided_slice %847 {offsets = [0, 8], sizes = [8, 1], strides = [1, 1]} : vector<8x16xf32> to vector<8x1xf32>
    %907 = vector.extract_strided_slice %848 {offsets = [8, 0], sizes = [1, 8], strides = [1, 1]} : vector<16x8xf32> to vector<1x8xf32>
    %908 = vector.broadcast %906 : vector<8x1xf32> to vector<8x8xf32>
    %909 = vector.broadcast %907 : vector<1x8xf32> to vector<8x8xf32>
    %910 = arith.subf %908, %909 : vector<8x8xf32>
    %911 = math.absf %910 : vector<8x8xf32>
    %912 = arith.addf %905, %911 : vector<8x8xf32>
    %913 = vector.extract_strided_slice %847 {offsets = [0, 9], sizes = [8, 1], strides = [1, 1]} : vector<8x16xf32> to vector<8x1xf32>
    %914 = vector.extract_strided_slice %848 {offsets = [9, 0], sizes = [1, 8], strides = [1, 1]} : vector<16x8xf32> to vector<1x8xf32>
    %915 = vector.broadcast %913 : vector<8x1xf32> to vector<8x8xf32>
    %916 = vector.broadcast %914 : vector<1x8xf32> to vector<8x8xf32>
    %917 = arith.subf %915, %916 : vector<8x8xf32>
    %918 = math.absf %917 : vector<8x8xf32>
    %919 = arith.addf %912, %918 : vector<8x8xf32>
    %920 = vector.extract_strided_slice %847 {offsets = [0, 10], sizes = [8, 1], strides = [1, 1]} : vector<8x16xf32> to vector<8x1xf32>
    %921 = vector.extract_strided_slice %848 {offsets = [10, 0], sizes = [1, 8], strides = [1, 1]} : vector<16x8xf32> to vector<1x8xf32>
    %922 = vector.broadcast %920 : vector<8x1xf32> to vector<8x8xf32>
    %923 = vector.broadcast %921 : vector<1x8xf32> to vector<8x8xf32>
    %924 = arith.subf %922, %923 : vector<8x8xf32>
    %925 = math.absf %924 : vector<8x8xf32>
    %926 = arith.addf %919, %925 : vector<8x8xf32>
    %927 = vector.extract_strided_slice %847 {offsets = [0, 11], sizes = [8, 1], strides = [1, 1]} : vector<8x16xf32> to vector<8x1xf32>
    %928 = vector.extract_strided_slice %848 {offsets = [11, 0], sizes = [1, 8], strides = [1, 1]} : vector<16x8xf32> to vector<1x8xf32>
    %929 = vector.broadcast %927 : vector<8x1xf32> to vector<8x8xf32>
    %930 = vector.broadcast %928 : vector<1x8xf32> to vector<8x8xf32>
    %931 = arith.subf %929, %930 : vector<8x8xf32>
    %932 = math.absf %931 : vector<8x8xf32>
    %933 = arith.addf %926, %932 : vector<8x8xf32>
    %934 = vector.extract_strided_slice %847 {offsets = [0, 12], sizes = [8, 1], strides = [1, 1]} : vector<8x16xf32> to vector<8x1xf32>
    %935 = vector.extract_strided_slice %848 {offsets = [12, 0], sizes = [1, 8], strides = [1, 1]} : vector<16x8xf32> to vector<1x8xf32>
    %936 = vector.broadcast %934 : vector<8x1xf32> to vector<8x8xf32>
    %937 = vector.broadcast %935 : vector<1x8xf32> to vector<8x8xf32>
    %938 = arith.subf %936, %937 : vector<8x8xf32>
    %939 = math.absf %938 : vector<8x8xf32>
    %940 = arith.addf %933, %939 : vector<8x8xf32>
    %941 = vector.extract_strided_slice %847 {offsets = [0, 13], sizes = [8, 1], strides = [1, 1]} : vector<8x16xf32> to vector<8x1xf32>
    %942 = vector.extract_strided_slice %848 {offsets = [13, 0], sizes = [1, 8], strides = [1, 1]} : vector<16x8xf32> to vector<1x8xf32>
    %943 = vector.broadcast %941 : vector<8x1xf32> to vector<8x8xf32>
    %944 = vector.broadcast %942 : vector<1x8xf32> to vector<8x8xf32>
    %945 = arith.subf %943, %944 : vector<8x8xf32>
    %946 = math.absf %945 : vector<8x8xf32>
    %947 = arith.addf %940, %946 : vector<8x8xf32>
    %948 = vector.extract_strided_slice %847 {offsets = [0, 14], sizes = [8, 1], strides = [1, 1]} : vector<8x16xf32> to vector<8x1xf32>
    %949 = vector.extract_strided_slice %848 {offsets = [14, 0], sizes = [1, 8], strides = [1, 1]} : vector<16x8xf32> to vector<1x8xf32>
    %950 = vector.broadcast %948 : vector<8x1xf32> to vector<8x8xf32>
    %951 = vector.broadcast %949 : vector<1x8xf32> to vector<8x8xf32>
    %952 = arith.subf %950, %951 : vector<8x8xf32>
    %953 = math.absf %952 : vector<8x8xf32>
    %954 = arith.addf %947, %953 : vector<8x8xf32>
    %955 = vector.extract_strided_slice %847 {offsets = [0, 15], sizes = [8, 1], strides = [1, 1]} : vector<8x16xf32> to vector<8x1xf32>
    %956 = vector.extract_strided_slice %848 {offsets = [15, 0], sizes = [1, 8], strides = [1, 1]} : vector<16x8xf32> to vector<1x8xf32>
    %957 = vector.broadcast %955 : vector<8x1xf32> to vector<8x8xf32>
    %958 = vector.broadcast %956 : vector<1x8xf32> to vector<8x8xf32>
    %959 = arith.subf %957, %958 : vector<8x8xf32>
    %960 = math.absf %959 : vector<8x8xf32>
    %961 = arith.addf %954, %960 : vector<8x8xf32>
    %cst_28 = arith.constant 0.000000e+00 : f32
    %962 = vector.broadcast %cst_28 : f32 to vector<8x8xf32>
    %963 = arith.subf %962, %961 : vector<8x8xf32>
    %964 = math.exp %963 : vector<8x8xf32>
    %cst_29 = arith.constant dense<0.000000e+00> : vector<8xf32>
    %965 = vector.multi_reduction <add>, %964, %cst_29 [1] : vector<8x8xf32> to vector<8xf32>
    %966 = vector.shape_cast %965 : vector<8xf32> to vector<8x1xf32>
    %967 = vector.extract_strided_slice %6 {offsets = [0, 128], sizes = [8, 16], strides = [1, 1]} : vector<8x256xf32> to vector<8x16xf32>
    %968 = vector.extract_strided_slice %5 {offsets = [128, 0], sizes = [16, 8], strides = [1, 1]} : vector<256x8xf32> to vector<16x8xf32>
    %cst_30 = arith.constant 0.000000e+00 : f32
    %969 = vector.broadcast %cst_30 : f32 to vector<8x8xf32>
    %970 = vector.extract_strided_slice %967 {offsets = [0, 0], sizes = [8, 1], strides = [1, 1]} : vector<8x16xf32> to vector<8x1xf32>
    %971 = vector.extract_strided_slice %968 {offsets = [0, 0], sizes = [1, 8], strides = [1, 1]} : vector<16x8xf32> to vector<1x8xf32>
    %972 = vector.broadcast %970 : vector<8x1xf32> to vector<8x8xf32>
    %973 = vector.broadcast %971 : vector<1x8xf32> to vector<8x8xf32>
    %974 = arith.subf %972, %973 : vector<8x8xf32>
    %975 = math.absf %974 : vector<8x8xf32>
    %976 = arith.addf %969, %975 : vector<8x8xf32>
    %977 = vector.extract_strided_slice %967 {offsets = [0, 1], sizes = [8, 1], strides = [1, 1]} : vector<8x16xf32> to vector<8x1xf32>
    %978 = vector.extract_strided_slice %968 {offsets = [1, 0], sizes = [1, 8], strides = [1, 1]} : vector<16x8xf32> to vector<1x8xf32>
    %979 = vector.broadcast %977 : vector<8x1xf32> to vector<8x8xf32>
    %980 = vector.broadcast %978 : vector<1x8xf32> to vector<8x8xf32>
    %981 = arith.subf %979, %980 : vector<8x8xf32>
    %982 = math.absf %981 : vector<8x8xf32>
    %983 = arith.addf %976, %982 : vector<8x8xf32>
    %984 = vector.extract_strided_slice %967 {offsets = [0, 2], sizes = [8, 1], strides = [1, 1]} : vector<8x16xf32> to vector<8x1xf32>
    %985 = vector.extract_strided_slice %968 {offsets = [2, 0], sizes = [1, 8], strides = [1, 1]} : vector<16x8xf32> to vector<1x8xf32>
    %986 = vector.broadcast %984 : vector<8x1xf32> to vector<8x8xf32>
    %987 = vector.broadcast %985 : vector<1x8xf32> to vector<8x8xf32>
    %988 = arith.subf %986, %987 : vector<8x8xf32>
    %989 = math.absf %988 : vector<8x8xf32>
    %990 = arith.addf %983, %989 : vector<8x8xf32>
    %991 = vector.extract_strided_slice %967 {offsets = [0, 3], sizes = [8, 1], strides = [1, 1]} : vector<8x16xf32> to vector<8x1xf32>
    %992 = vector.extract_strided_slice %968 {offsets = [3, 0], sizes = [1, 8], strides = [1, 1]} : vector<16x8xf32> to vector<1x8xf32>
    %993 = vector.broadcast %991 : vector<8x1xf32> to vector<8x8xf32>
    %994 = vector.broadcast %992 : vector<1x8xf32> to vector<8x8xf32>
    %995 = arith.subf %993, %994 : vector<8x8xf32>
    %996 = math.absf %995 : vector<8x8xf32>
    %997 = arith.addf %990, %996 : vector<8x8xf32>
    %998 = vector.extract_strided_slice %967 {offsets = [0, 4], sizes = [8, 1], strides = [1, 1]} : vector<8x16xf32> to vector<8x1xf32>
    %999 = vector.extract_strided_slice %968 {offsets = [4, 0], sizes = [1, 8], strides = [1, 1]} : vector<16x8xf32> to vector<1x8xf32>
    %1000 = vector.broadcast %998 : vector<8x1xf32> to vector<8x8xf32>
    %1001 = vector.broadcast %999 : vector<1x8xf32> to vector<8x8xf32>
    %1002 = arith.subf %1000, %1001 : vector<8x8xf32>
    %1003 = math.absf %1002 : vector<8x8xf32>
    %1004 = arith.addf %997, %1003 : vector<8x8xf32>
    %1005 = vector.extract_strided_slice %967 {offsets = [0, 5], sizes = [8, 1], strides = [1, 1]} : vector<8x16xf32> to vector<8x1xf32>
    %1006 = vector.extract_strided_slice %968 {offsets = [5, 0], sizes = [1, 8], strides = [1, 1]} : vector<16x8xf32> to vector<1x8xf32>
    %1007 = vector.broadcast %1005 : vector<8x1xf32> to vector<8x8xf32>
    %1008 = vector.broadcast %1006 : vector<1x8xf32> to vector<8x8xf32>
    %1009 = arith.subf %1007, %1008 : vector<8x8xf32>
    %1010 = math.absf %1009 : vector<8x8xf32>
    %1011 = arith.addf %1004, %1010 : vector<8x8xf32>
    %1012 = vector.extract_strided_slice %967 {offsets = [0, 6], sizes = [8, 1], strides = [1, 1]} : vector<8x16xf32> to vector<8x1xf32>
    %1013 = vector.extract_strided_slice %968 {offsets = [6, 0], sizes = [1, 8], strides = [1, 1]} : vector<16x8xf32> to vector<1x8xf32>
    %1014 = vector.broadcast %1012 : vector<8x1xf32> to vector<8x8xf32>
    %1015 = vector.broadcast %1013 : vector<1x8xf32> to vector<8x8xf32>
    %1016 = arith.subf %1014, %1015 : vector<8x8xf32>
    %1017 = math.absf %1016 : vector<8x8xf32>
    %1018 = arith.addf %1011, %1017 : vector<8x8xf32>
    %1019 = vector.extract_strided_slice %967 {offsets = [0, 7], sizes = [8, 1], strides = [1, 1]} : vector<8x16xf32> to vector<8x1xf32>
    %1020 = vector.extract_strided_slice %968 {offsets = [7, 0], sizes = [1, 8], strides = [1, 1]} : vector<16x8xf32> to vector<1x8xf32>
    %1021 = vector.broadcast %1019 : vector<8x1xf32> to vector<8x8xf32>
    %1022 = vector.broadcast %1020 : vector<1x8xf32> to vector<8x8xf32>
    %1023 = arith.subf %1021, %1022 : vector<8x8xf32>
    %1024 = math.absf %1023 : vector<8x8xf32>
    %1025 = arith.addf %1018, %1024 : vector<8x8xf32>
    %1026 = vector.extract_strided_slice %967 {offsets = [0, 8], sizes = [8, 1], strides = [1, 1]} : vector<8x16xf32> to vector<8x1xf32>
    %1027 = vector.extract_strided_slice %968 {offsets = [8, 0], sizes = [1, 8], strides = [1, 1]} : vector<16x8xf32> to vector<1x8xf32>
    %1028 = vector.broadcast %1026 : vector<8x1xf32> to vector<8x8xf32>
    %1029 = vector.broadcast %1027 : vector<1x8xf32> to vector<8x8xf32>
    %1030 = arith.subf %1028, %1029 : vector<8x8xf32>
    %1031 = math.absf %1030 : vector<8x8xf32>
    %1032 = arith.addf %1025, %1031 : vector<8x8xf32>
    %1033 = vector.extract_strided_slice %967 {offsets = [0, 9], sizes = [8, 1], strides = [1, 1]} : vector<8x16xf32> to vector<8x1xf32>
    %1034 = vector.extract_strided_slice %968 {offsets = [9, 0], sizes = [1, 8], strides = [1, 1]} : vector<16x8xf32> to vector<1x8xf32>
    %1035 = vector.broadcast %1033 : vector<8x1xf32> to vector<8x8xf32>
    %1036 = vector.broadcast %1034 : vector<1x8xf32> to vector<8x8xf32>
    %1037 = arith.subf %1035, %1036 : vector<8x8xf32>
    %1038 = math.absf %1037 : vector<8x8xf32>
    %1039 = arith.addf %1032, %1038 : vector<8x8xf32>
    %1040 = vector.extract_strided_slice %967 {offsets = [0, 10], sizes = [8, 1], strides = [1, 1]} : vector<8x16xf32> to vector<8x1xf32>
    %1041 = vector.extract_strided_slice %968 {offsets = [10, 0], sizes = [1, 8], strides = [1, 1]} : vector<16x8xf32> to vector<1x8xf32>
    %1042 = vector.broadcast %1040 : vector<8x1xf32> to vector<8x8xf32>
    %1043 = vector.broadcast %1041 : vector<1x8xf32> to vector<8x8xf32>
    %1044 = arith.subf %1042, %1043 : vector<8x8xf32>
    %1045 = math.absf %1044 : vector<8x8xf32>
    %1046 = arith.addf %1039, %1045 : vector<8x8xf32>
    %1047 = vector.extract_strided_slice %967 {offsets = [0, 11], sizes = [8, 1], strides = [1, 1]} : vector<8x16xf32> to vector<8x1xf32>
    %1048 = vector.extract_strided_slice %968 {offsets = [11, 0], sizes = [1, 8], strides = [1, 1]} : vector<16x8xf32> to vector<1x8xf32>
    %1049 = vector.broadcast %1047 : vector<8x1xf32> to vector<8x8xf32>
    %1050 = vector.broadcast %1048 : vector<1x8xf32> to vector<8x8xf32>
    %1051 = arith.subf %1049, %1050 : vector<8x8xf32>
    %1052 = math.absf %1051 : vector<8x8xf32>
    %1053 = arith.addf %1046, %1052 : vector<8x8xf32>
    %1054 = vector.extract_strided_slice %967 {offsets = [0, 12], sizes = [8, 1], strides = [1, 1]} : vector<8x16xf32> to vector<8x1xf32>
    %1055 = vector.extract_strided_slice %968 {offsets = [12, 0], sizes = [1, 8], strides = [1, 1]} : vector<16x8xf32> to vector<1x8xf32>
    %1056 = vector.broadcast %1054 : vector<8x1xf32> to vector<8x8xf32>
    %1057 = vector.broadcast %1055 : vector<1x8xf32> to vector<8x8xf32>
    %1058 = arith.subf %1056, %1057 : vector<8x8xf32>
    %1059 = math.absf %1058 : vector<8x8xf32>
    %1060 = arith.addf %1053, %1059 : vector<8x8xf32>
    %1061 = vector.extract_strided_slice %967 {offsets = [0, 13], sizes = [8, 1], strides = [1, 1]} : vector<8x16xf32> to vector<8x1xf32>
    %1062 = vector.extract_strided_slice %968 {offsets = [13, 0], sizes = [1, 8], strides = [1, 1]} : vector<16x8xf32> to vector<1x8xf32>
    %1063 = vector.broadcast %1061 : vector<8x1xf32> to vector<8x8xf32>
    %1064 = vector.broadcast %1062 : vector<1x8xf32> to vector<8x8xf32>
    %1065 = arith.subf %1063, %1064 : vector<8x8xf32>
    %1066 = math.absf %1065 : vector<8x8xf32>
    %1067 = arith.addf %1060, %1066 : vector<8x8xf32>
    %1068 = vector.extract_strided_slice %967 {offsets = [0, 14], sizes = [8, 1], strides = [1, 1]} : vector<8x16xf32> to vector<8x1xf32>
    %1069 = vector.extract_strided_slice %968 {offsets = [14, 0], sizes = [1, 8], strides = [1, 1]} : vector<16x8xf32> to vector<1x8xf32>
    %1070 = vector.broadcast %1068 : vector<8x1xf32> to vector<8x8xf32>
    %1071 = vector.broadcast %1069 : vector<1x8xf32> to vector<8x8xf32>
    %1072 = arith.subf %1070, %1071 : vector<8x8xf32>
    %1073 = math.absf %1072 : vector<8x8xf32>
    %1074 = arith.addf %1067, %1073 : vector<8x8xf32>
    %1075 = vector.extract_strided_slice %967 {offsets = [0, 15], sizes = [8, 1], strides = [1, 1]} : vector<8x16xf32> to vector<8x1xf32>
    %1076 = vector.extract_strided_slice %968 {offsets = [15, 0], sizes = [1, 8], strides = [1, 1]} : vector<16x8xf32> to vector<1x8xf32>
    %1077 = vector.broadcast %1075 : vector<8x1xf32> to vector<8x8xf32>
    %1078 = vector.broadcast %1076 : vector<1x8xf32> to vector<8x8xf32>
    %1079 = arith.subf %1077, %1078 : vector<8x8xf32>
    %1080 = math.absf %1079 : vector<8x8xf32>
    %1081 = arith.addf %1074, %1080 : vector<8x8xf32>
    %cst_31 = arith.constant 0.000000e+00 : f32
    %1082 = vector.broadcast %cst_31 : f32 to vector<8x8xf32>
    %1083 = arith.subf %1082, %1081 : vector<8x8xf32>
    %1084 = math.exp %1083 : vector<8x8xf32>
    %cst_32 = arith.constant dense<0.000000e+00> : vector<8xf32>
    %1085 = vector.multi_reduction <add>, %1084, %cst_32 [1] : vector<8x8xf32> to vector<8xf32>
    %1086 = vector.shape_cast %1085 : vector<8xf32> to vector<8x1xf32>
    %1087 = vector.extract_strided_slice %6 {offsets = [0, 144], sizes = [8, 16], strides = [1, 1]} : vector<8x256xf32> to vector<8x16xf32>
    %1088 = vector.extract_strided_slice %5 {offsets = [144, 0], sizes = [16, 8], strides = [1, 1]} : vector<256x8xf32> to vector<16x8xf32>
    %cst_33 = arith.constant 0.000000e+00 : f32
    %1089 = vector.broadcast %cst_33 : f32 to vector<8x8xf32>
    %1090 = vector.extract_strided_slice %1087 {offsets = [0, 0], sizes = [8, 1], strides = [1, 1]} : vector<8x16xf32> to vector<8x1xf32>
    %1091 = vector.extract_strided_slice %1088 {offsets = [0, 0], sizes = [1, 8], strides = [1, 1]} : vector<16x8xf32> to vector<1x8xf32>
    %1092 = vector.broadcast %1090 : vector<8x1xf32> to vector<8x8xf32>
    %1093 = vector.broadcast %1091 : vector<1x8xf32> to vector<8x8xf32>
    %1094 = arith.subf %1092, %1093 : vector<8x8xf32>
    %1095 = math.absf %1094 : vector<8x8xf32>
    %1096 = arith.addf %1089, %1095 : vector<8x8xf32>
    %1097 = vector.extract_strided_slice %1087 {offsets = [0, 1], sizes = [8, 1], strides = [1, 1]} : vector<8x16xf32> to vector<8x1xf32>
    %1098 = vector.extract_strided_slice %1088 {offsets = [1, 0], sizes = [1, 8], strides = [1, 1]} : vector<16x8xf32> to vector<1x8xf32>
    %1099 = vector.broadcast %1097 : vector<8x1xf32> to vector<8x8xf32>
    %1100 = vector.broadcast %1098 : vector<1x8xf32> to vector<8x8xf32>
    %1101 = arith.subf %1099, %1100 : vector<8x8xf32>
    %1102 = math.absf %1101 : vector<8x8xf32>
    %1103 = arith.addf %1096, %1102 : vector<8x8xf32>
    %1104 = vector.extract_strided_slice %1087 {offsets = [0, 2], sizes = [8, 1], strides = [1, 1]} : vector<8x16xf32> to vector<8x1xf32>
    %1105 = vector.extract_strided_slice %1088 {offsets = [2, 0], sizes = [1, 8], strides = [1, 1]} : vector<16x8xf32> to vector<1x8xf32>
    %1106 = vector.broadcast %1104 : vector<8x1xf32> to vector<8x8xf32>
    %1107 = vector.broadcast %1105 : vector<1x8xf32> to vector<8x8xf32>
    %1108 = arith.subf %1106, %1107 : vector<8x8xf32>
    %1109 = math.absf %1108 : vector<8x8xf32>
    %1110 = arith.addf %1103, %1109 : vector<8x8xf32>
    %1111 = vector.extract_strided_slice %1087 {offsets = [0, 3], sizes = [8, 1], strides = [1, 1]} : vector<8x16xf32> to vector<8x1xf32>
    %1112 = vector.extract_strided_slice %1088 {offsets = [3, 0], sizes = [1, 8], strides = [1, 1]} : vector<16x8xf32> to vector<1x8xf32>
    %1113 = vector.broadcast %1111 : vector<8x1xf32> to vector<8x8xf32>
    %1114 = vector.broadcast %1112 : vector<1x8xf32> to vector<8x8xf32>
    %1115 = arith.subf %1113, %1114 : vector<8x8xf32>
    %1116 = math.absf %1115 : vector<8x8xf32>
    %1117 = arith.addf %1110, %1116 : vector<8x8xf32>
    %1118 = vector.extract_strided_slice %1087 {offsets = [0, 4], sizes = [8, 1], strides = [1, 1]} : vector<8x16xf32> to vector<8x1xf32>
    %1119 = vector.extract_strided_slice %1088 {offsets = [4, 0], sizes = [1, 8], strides = [1, 1]} : vector<16x8xf32> to vector<1x8xf32>
    %1120 = vector.broadcast %1118 : vector<8x1xf32> to vector<8x8xf32>
    %1121 = vector.broadcast %1119 : vector<1x8xf32> to vector<8x8xf32>
    %1122 = arith.subf %1120, %1121 : vector<8x8xf32>
    %1123 = math.absf %1122 : vector<8x8xf32>
    %1124 = arith.addf %1117, %1123 : vector<8x8xf32>
    %1125 = vector.extract_strided_slice %1087 {offsets = [0, 5], sizes = [8, 1], strides = [1, 1]} : vector<8x16xf32> to vector<8x1xf32>
    %1126 = vector.extract_strided_slice %1088 {offsets = [5, 0], sizes = [1, 8], strides = [1, 1]} : vector<16x8xf32> to vector<1x8xf32>
    %1127 = vector.broadcast %1125 : vector<8x1xf32> to vector<8x8xf32>
    %1128 = vector.broadcast %1126 : vector<1x8xf32> to vector<8x8xf32>
    %1129 = arith.subf %1127, %1128 : vector<8x8xf32>
    %1130 = math.absf %1129 : vector<8x8xf32>
    %1131 = arith.addf %1124, %1130 : vector<8x8xf32>
    %1132 = vector.extract_strided_slice %1087 {offsets = [0, 6], sizes = [8, 1], strides = [1, 1]} : vector<8x16xf32> to vector<8x1xf32>
    %1133 = vector.extract_strided_slice %1088 {offsets = [6, 0], sizes = [1, 8], strides = [1, 1]} : vector<16x8xf32> to vector<1x8xf32>
    %1134 = vector.broadcast %1132 : vector<8x1xf32> to vector<8x8xf32>
    %1135 = vector.broadcast %1133 : vector<1x8xf32> to vector<8x8xf32>
    %1136 = arith.subf %1134, %1135 : vector<8x8xf32>
    %1137 = math.absf %1136 : vector<8x8xf32>
    %1138 = arith.addf %1131, %1137 : vector<8x8xf32>
    %1139 = vector.extract_strided_slice %1087 {offsets = [0, 7], sizes = [8, 1], strides = [1, 1]} : vector<8x16xf32> to vector<8x1xf32>
    %1140 = vector.extract_strided_slice %1088 {offsets = [7, 0], sizes = [1, 8], strides = [1, 1]} : vector<16x8xf32> to vector<1x8xf32>
    %1141 = vector.broadcast %1139 : vector<8x1xf32> to vector<8x8xf32>
    %1142 = vector.broadcast %1140 : vector<1x8xf32> to vector<8x8xf32>
    %1143 = arith.subf %1141, %1142 : vector<8x8xf32>
    %1144 = math.absf %1143 : vector<8x8xf32>
    %1145 = arith.addf %1138, %1144 : vector<8x8xf32>
    %1146 = vector.extract_strided_slice %1087 {offsets = [0, 8], sizes = [8, 1], strides = [1, 1]} : vector<8x16xf32> to vector<8x1xf32>
    %1147 = vector.extract_strided_slice %1088 {offsets = [8, 0], sizes = [1, 8], strides = [1, 1]} : vector<16x8xf32> to vector<1x8xf32>
    %1148 = vector.broadcast %1146 : vector<8x1xf32> to vector<8x8xf32>
    %1149 = vector.broadcast %1147 : vector<1x8xf32> to vector<8x8xf32>
    %1150 = arith.subf %1148, %1149 : vector<8x8xf32>
    %1151 = math.absf %1150 : vector<8x8xf32>
    %1152 = arith.addf %1145, %1151 : vector<8x8xf32>
    %1153 = vector.extract_strided_slice %1087 {offsets = [0, 9], sizes = [8, 1], strides = [1, 1]} : vector<8x16xf32> to vector<8x1xf32>
    %1154 = vector.extract_strided_slice %1088 {offsets = [9, 0], sizes = [1, 8], strides = [1, 1]} : vector<16x8xf32> to vector<1x8xf32>
    %1155 = vector.broadcast %1153 : vector<8x1xf32> to vector<8x8xf32>
    %1156 = vector.broadcast %1154 : vector<1x8xf32> to vector<8x8xf32>
    %1157 = arith.subf %1155, %1156 : vector<8x8xf32>
    %1158 = math.absf %1157 : vector<8x8xf32>
    %1159 = arith.addf %1152, %1158 : vector<8x8xf32>
    %1160 = vector.extract_strided_slice %1087 {offsets = [0, 10], sizes = [8, 1], strides = [1, 1]} : vector<8x16xf32> to vector<8x1xf32>
    %1161 = vector.extract_strided_slice %1088 {offsets = [10, 0], sizes = [1, 8], strides = [1, 1]} : vector<16x8xf32> to vector<1x8xf32>
    %1162 = vector.broadcast %1160 : vector<8x1xf32> to vector<8x8xf32>
    %1163 = vector.broadcast %1161 : vector<1x8xf32> to vector<8x8xf32>
    %1164 = arith.subf %1162, %1163 : vector<8x8xf32>
    %1165 = math.absf %1164 : vector<8x8xf32>
    %1166 = arith.addf %1159, %1165 : vector<8x8xf32>
    %1167 = vector.extract_strided_slice %1087 {offsets = [0, 11], sizes = [8, 1], strides = [1, 1]} : vector<8x16xf32> to vector<8x1xf32>
    %1168 = vector.extract_strided_slice %1088 {offsets = [11, 0], sizes = [1, 8], strides = [1, 1]} : vector<16x8xf32> to vector<1x8xf32>
    %1169 = vector.broadcast %1167 : vector<8x1xf32> to vector<8x8xf32>
    %1170 = vector.broadcast %1168 : vector<1x8xf32> to vector<8x8xf32>
    %1171 = arith.subf %1169, %1170 : vector<8x8xf32>
    %1172 = math.absf %1171 : vector<8x8xf32>
    %1173 = arith.addf %1166, %1172 : vector<8x8xf32>
    %1174 = vector.extract_strided_slice %1087 {offsets = [0, 12], sizes = [8, 1], strides = [1, 1]} : vector<8x16xf32> to vector<8x1xf32>
    %1175 = vector.extract_strided_slice %1088 {offsets = [12, 0], sizes = [1, 8], strides = [1, 1]} : vector<16x8xf32> to vector<1x8xf32>
    %1176 = vector.broadcast %1174 : vector<8x1xf32> to vector<8x8xf32>
    %1177 = vector.broadcast %1175 : vector<1x8xf32> to vector<8x8xf32>
    %1178 = arith.subf %1176, %1177 : vector<8x8xf32>
    %1179 = math.absf %1178 : vector<8x8xf32>
    %1180 = arith.addf %1173, %1179 : vector<8x8xf32>
    %1181 = vector.extract_strided_slice %1087 {offsets = [0, 13], sizes = [8, 1], strides = [1, 1]} : vector<8x16xf32> to vector<8x1xf32>
    %1182 = vector.extract_strided_slice %1088 {offsets = [13, 0], sizes = [1, 8], strides = [1, 1]} : vector<16x8xf32> to vector<1x8xf32>
    %1183 = vector.broadcast %1181 : vector<8x1xf32> to vector<8x8xf32>
    %1184 = vector.broadcast %1182 : vector<1x8xf32> to vector<8x8xf32>
    %1185 = arith.subf %1183, %1184 : vector<8x8xf32>
    %1186 = math.absf %1185 : vector<8x8xf32>
    %1187 = arith.addf %1180, %1186 : vector<8x8xf32>
    %1188 = vector.extract_strided_slice %1087 {offsets = [0, 14], sizes = [8, 1], strides = [1, 1]} : vector<8x16xf32> to vector<8x1xf32>
    %1189 = vector.extract_strided_slice %1088 {offsets = [14, 0], sizes = [1, 8], strides = [1, 1]} : vector<16x8xf32> to vector<1x8xf32>
    %1190 = vector.broadcast %1188 : vector<8x1xf32> to vector<8x8xf32>
    %1191 = vector.broadcast %1189 : vector<1x8xf32> to vector<8x8xf32>
    %1192 = arith.subf %1190, %1191 : vector<8x8xf32>
    %1193 = math.absf %1192 : vector<8x8xf32>
    %1194 = arith.addf %1187, %1193 : vector<8x8xf32>
    %1195 = vector.extract_strided_slice %1087 {offsets = [0, 15], sizes = [8, 1], strides = [1, 1]} : vector<8x16xf32> to vector<8x1xf32>
    %1196 = vector.extract_strided_slice %1088 {offsets = [15, 0], sizes = [1, 8], strides = [1, 1]} : vector<16x8xf32> to vector<1x8xf32>
    %1197 = vector.broadcast %1195 : vector<8x1xf32> to vector<8x8xf32>
    %1198 = vector.broadcast %1196 : vector<1x8xf32> to vector<8x8xf32>
    %1199 = arith.subf %1197, %1198 : vector<8x8xf32>
    %1200 = math.absf %1199 : vector<8x8xf32>
    %1201 = arith.addf %1194, %1200 : vector<8x8xf32>
    %cst_34 = arith.constant 0.000000e+00 : f32
    %1202 = vector.broadcast %cst_34 : f32 to vector<8x8xf32>
    %1203 = arith.subf %1202, %1201 : vector<8x8xf32>
    %1204 = math.exp %1203 : vector<8x8xf32>
    %cst_35 = arith.constant dense<0.000000e+00> : vector<8xf32>
    %1205 = vector.multi_reduction <add>, %1204, %cst_35 [1] : vector<8x8xf32> to vector<8xf32>
    %1206 = vector.shape_cast %1205 : vector<8xf32> to vector<8x1xf32>
    %1207 = vector.extract_strided_slice %6 {offsets = [0, 160], sizes = [8, 16], strides = [1, 1]} : vector<8x256xf32> to vector<8x16xf32>
    %1208 = vector.extract_strided_slice %5 {offsets = [160, 0], sizes = [16, 8], strides = [1, 1]} : vector<256x8xf32> to vector<16x8xf32>
    %cst_36 = arith.constant 0.000000e+00 : f32
    %1209 = vector.broadcast %cst_36 : f32 to vector<8x8xf32>
    %1210 = vector.extract_strided_slice %1207 {offsets = [0, 0], sizes = [8, 1], strides = [1, 1]} : vector<8x16xf32> to vector<8x1xf32>
    %1211 = vector.extract_strided_slice %1208 {offsets = [0, 0], sizes = [1, 8], strides = [1, 1]} : vector<16x8xf32> to vector<1x8xf32>
    %1212 = vector.broadcast %1210 : vector<8x1xf32> to vector<8x8xf32>
    %1213 = vector.broadcast %1211 : vector<1x8xf32> to vector<8x8xf32>
    %1214 = arith.subf %1212, %1213 : vector<8x8xf32>
    %1215 = math.absf %1214 : vector<8x8xf32>
    %1216 = arith.addf %1209, %1215 : vector<8x8xf32>
    %1217 = vector.extract_strided_slice %1207 {offsets = [0, 1], sizes = [8, 1], strides = [1, 1]} : vector<8x16xf32> to vector<8x1xf32>
    %1218 = vector.extract_strided_slice %1208 {offsets = [1, 0], sizes = [1, 8], strides = [1, 1]} : vector<16x8xf32> to vector<1x8xf32>
    %1219 = vector.broadcast %1217 : vector<8x1xf32> to vector<8x8xf32>
    %1220 = vector.broadcast %1218 : vector<1x8xf32> to vector<8x8xf32>
    %1221 = arith.subf %1219, %1220 : vector<8x8xf32>
    %1222 = math.absf %1221 : vector<8x8xf32>
    %1223 = arith.addf %1216, %1222 : vector<8x8xf32>
    %1224 = vector.extract_strided_slice %1207 {offsets = [0, 2], sizes = [8, 1], strides = [1, 1]} : vector<8x16xf32> to vector<8x1xf32>
    %1225 = vector.extract_strided_slice %1208 {offsets = [2, 0], sizes = [1, 8], strides = [1, 1]} : vector<16x8xf32> to vector<1x8xf32>
    %1226 = vector.broadcast %1224 : vector<8x1xf32> to vector<8x8xf32>
    %1227 = vector.broadcast %1225 : vector<1x8xf32> to vector<8x8xf32>
    %1228 = arith.subf %1226, %1227 : vector<8x8xf32>
    %1229 = math.absf %1228 : vector<8x8xf32>
    %1230 = arith.addf %1223, %1229 : vector<8x8xf32>
    %1231 = vector.extract_strided_slice %1207 {offsets = [0, 3], sizes = [8, 1], strides = [1, 1]} : vector<8x16xf32> to vector<8x1xf32>
    %1232 = vector.extract_strided_slice %1208 {offsets = [3, 0], sizes = [1, 8], strides = [1, 1]} : vector<16x8xf32> to vector<1x8xf32>
    %1233 = vector.broadcast %1231 : vector<8x1xf32> to vector<8x8xf32>
    %1234 = vector.broadcast %1232 : vector<1x8xf32> to vector<8x8xf32>
    %1235 = arith.subf %1233, %1234 : vector<8x8xf32>
    %1236 = math.absf %1235 : vector<8x8xf32>
    %1237 = arith.addf %1230, %1236 : vector<8x8xf32>
    %1238 = vector.extract_strided_slice %1207 {offsets = [0, 4], sizes = [8, 1], strides = [1, 1]} : vector<8x16xf32> to vector<8x1xf32>
    %1239 = vector.extract_strided_slice %1208 {offsets = [4, 0], sizes = [1, 8], strides = [1, 1]} : vector<16x8xf32> to vector<1x8xf32>
    %1240 = vector.broadcast %1238 : vector<8x1xf32> to vector<8x8xf32>
    %1241 = vector.broadcast %1239 : vector<1x8xf32> to vector<8x8xf32>
    %1242 = arith.subf %1240, %1241 : vector<8x8xf32>
    %1243 = math.absf %1242 : vector<8x8xf32>
    %1244 = arith.addf %1237, %1243 : vector<8x8xf32>
    %1245 = vector.extract_strided_slice %1207 {offsets = [0, 5], sizes = [8, 1], strides = [1, 1]} : vector<8x16xf32> to vector<8x1xf32>
    %1246 = vector.extract_strided_slice %1208 {offsets = [5, 0], sizes = [1, 8], strides = [1, 1]} : vector<16x8xf32> to vector<1x8xf32>
    %1247 = vector.broadcast %1245 : vector<8x1xf32> to vector<8x8xf32>
    %1248 = vector.broadcast %1246 : vector<1x8xf32> to vector<8x8xf32>
    %1249 = arith.subf %1247, %1248 : vector<8x8xf32>
    %1250 = math.absf %1249 : vector<8x8xf32>
    %1251 = arith.addf %1244, %1250 : vector<8x8xf32>
    %1252 = vector.extract_strided_slice %1207 {offsets = [0, 6], sizes = [8, 1], strides = [1, 1]} : vector<8x16xf32> to vector<8x1xf32>
    %1253 = vector.extract_strided_slice %1208 {offsets = [6, 0], sizes = [1, 8], strides = [1, 1]} : vector<16x8xf32> to vector<1x8xf32>
    %1254 = vector.broadcast %1252 : vector<8x1xf32> to vector<8x8xf32>
    %1255 = vector.broadcast %1253 : vector<1x8xf32> to vector<8x8xf32>
    %1256 = arith.subf %1254, %1255 : vector<8x8xf32>
    %1257 = math.absf %1256 : vector<8x8xf32>
    %1258 = arith.addf %1251, %1257 : vector<8x8xf32>
    %1259 = vector.extract_strided_slice %1207 {offsets = [0, 7], sizes = [8, 1], strides = [1, 1]} : vector<8x16xf32> to vector<8x1xf32>
    %1260 = vector.extract_strided_slice %1208 {offsets = [7, 0], sizes = [1, 8], strides = [1, 1]} : vector<16x8xf32> to vector<1x8xf32>
    %1261 = vector.broadcast %1259 : vector<8x1xf32> to vector<8x8xf32>
    %1262 = vector.broadcast %1260 : vector<1x8xf32> to vector<8x8xf32>
    %1263 = arith.subf %1261, %1262 : vector<8x8xf32>
    %1264 = math.absf %1263 : vector<8x8xf32>
    %1265 = arith.addf %1258, %1264 : vector<8x8xf32>
    %1266 = vector.extract_strided_slice %1207 {offsets = [0, 8], sizes = [8, 1], strides = [1, 1]} : vector<8x16xf32> to vector<8x1xf32>
    %1267 = vector.extract_strided_slice %1208 {offsets = [8, 0], sizes = [1, 8], strides = [1, 1]} : vector<16x8xf32> to vector<1x8xf32>
    %1268 = vector.broadcast %1266 : vector<8x1xf32> to vector<8x8xf32>
    %1269 = vector.broadcast %1267 : vector<1x8xf32> to vector<8x8xf32>
    %1270 = arith.subf %1268, %1269 : vector<8x8xf32>
    %1271 = math.absf %1270 : vector<8x8xf32>
    %1272 = arith.addf %1265, %1271 : vector<8x8xf32>
    %1273 = vector.extract_strided_slice %1207 {offsets = [0, 9], sizes = [8, 1], strides = [1, 1]} : vector<8x16xf32> to vector<8x1xf32>
    %1274 = vector.extract_strided_slice %1208 {offsets = [9, 0], sizes = [1, 8], strides = [1, 1]} : vector<16x8xf32> to vector<1x8xf32>
    %1275 = vector.broadcast %1273 : vector<8x1xf32> to vector<8x8xf32>
    %1276 = vector.broadcast %1274 : vector<1x8xf32> to vector<8x8xf32>
    %1277 = arith.subf %1275, %1276 : vector<8x8xf32>
    %1278 = math.absf %1277 : vector<8x8xf32>
    %1279 = arith.addf %1272, %1278 : vector<8x8xf32>
    %1280 = vector.extract_strided_slice %1207 {offsets = [0, 10], sizes = [8, 1], strides = [1, 1]} : vector<8x16xf32> to vector<8x1xf32>
    %1281 = vector.extract_strided_slice %1208 {offsets = [10, 0], sizes = [1, 8], strides = [1, 1]} : vector<16x8xf32> to vector<1x8xf32>
    %1282 = vector.broadcast %1280 : vector<8x1xf32> to vector<8x8xf32>
    %1283 = vector.broadcast %1281 : vector<1x8xf32> to vector<8x8xf32>
    %1284 = arith.subf %1282, %1283 : vector<8x8xf32>
    %1285 = math.absf %1284 : vector<8x8xf32>
    %1286 = arith.addf %1279, %1285 : vector<8x8xf32>
    %1287 = vector.extract_strided_slice %1207 {offsets = [0, 11], sizes = [8, 1], strides = [1, 1]} : vector<8x16xf32> to vector<8x1xf32>
    %1288 = vector.extract_strided_slice %1208 {offsets = [11, 0], sizes = [1, 8], strides = [1, 1]} : vector<16x8xf32> to vector<1x8xf32>
    %1289 = vector.broadcast %1287 : vector<8x1xf32> to vector<8x8xf32>
    %1290 = vector.broadcast %1288 : vector<1x8xf32> to vector<8x8xf32>
    %1291 = arith.subf %1289, %1290 : vector<8x8xf32>
    %1292 = math.absf %1291 : vector<8x8xf32>
    %1293 = arith.addf %1286, %1292 : vector<8x8xf32>
    %1294 = vector.extract_strided_slice %1207 {offsets = [0, 12], sizes = [8, 1], strides = [1, 1]} : vector<8x16xf32> to vector<8x1xf32>
    %1295 = vector.extract_strided_slice %1208 {offsets = [12, 0], sizes = [1, 8], strides = [1, 1]} : vector<16x8xf32> to vector<1x8xf32>
    %1296 = vector.broadcast %1294 : vector<8x1xf32> to vector<8x8xf32>
    %1297 = vector.broadcast %1295 : vector<1x8xf32> to vector<8x8xf32>
    %1298 = arith.subf %1296, %1297 : vector<8x8xf32>
    %1299 = math.absf %1298 : vector<8x8xf32>
    %1300 = arith.addf %1293, %1299 : vector<8x8xf32>
    %1301 = vector.extract_strided_slice %1207 {offsets = [0, 13], sizes = [8, 1], strides = [1, 1]} : vector<8x16xf32> to vector<8x1xf32>
    %1302 = vector.extract_strided_slice %1208 {offsets = [13, 0], sizes = [1, 8], strides = [1, 1]} : vector<16x8xf32> to vector<1x8xf32>
    %1303 = vector.broadcast %1301 : vector<8x1xf32> to vector<8x8xf32>
    %1304 = vector.broadcast %1302 : vector<1x8xf32> to vector<8x8xf32>
    %1305 = arith.subf %1303, %1304 : vector<8x8xf32>
    %1306 = math.absf %1305 : vector<8x8xf32>
    %1307 = arith.addf %1300, %1306 : vector<8x8xf32>
    %1308 = vector.extract_strided_slice %1207 {offsets = [0, 14], sizes = [8, 1], strides = [1, 1]} : vector<8x16xf32> to vector<8x1xf32>
    %1309 = vector.extract_strided_slice %1208 {offsets = [14, 0], sizes = [1, 8], strides = [1, 1]} : vector<16x8xf32> to vector<1x8xf32>
    %1310 = vector.broadcast %1308 : vector<8x1xf32> to vector<8x8xf32>
    %1311 = vector.broadcast %1309 : vector<1x8xf32> to vector<8x8xf32>
    %1312 = arith.subf %1310, %1311 : vector<8x8xf32>
    %1313 = math.absf %1312 : vector<8x8xf32>
    %1314 = arith.addf %1307, %1313 : vector<8x8xf32>
    %1315 = vector.extract_strided_slice %1207 {offsets = [0, 15], sizes = [8, 1], strides = [1, 1]} : vector<8x16xf32> to vector<8x1xf32>
    %1316 = vector.extract_strided_slice %1208 {offsets = [15, 0], sizes = [1, 8], strides = [1, 1]} : vector<16x8xf32> to vector<1x8xf32>
    %1317 = vector.broadcast %1315 : vector<8x1xf32> to vector<8x8xf32>
    %1318 = vector.broadcast %1316 : vector<1x8xf32> to vector<8x8xf32>
    %1319 = arith.subf %1317, %1318 : vector<8x8xf32>
    %1320 = math.absf %1319 : vector<8x8xf32>
    %1321 = arith.addf %1314, %1320 : vector<8x8xf32>
    %cst_37 = arith.constant 0.000000e+00 : f32
    %1322 = vector.broadcast %cst_37 : f32 to vector<8x8xf32>
    %1323 = arith.subf %1322, %1321 : vector<8x8xf32>
    %1324 = math.exp %1323 : vector<8x8xf32>
    %cst_38 = arith.constant dense<0.000000e+00> : vector<8xf32>
    %1325 = vector.multi_reduction <add>, %1324, %cst_38 [1] : vector<8x8xf32> to vector<8xf32>
    %1326 = vector.shape_cast %1325 : vector<8xf32> to vector<8x1xf32>
    %1327 = vector.extract_strided_slice %6 {offsets = [0, 176], sizes = [8, 16], strides = [1, 1]} : vector<8x256xf32> to vector<8x16xf32>
    %1328 = vector.extract_strided_slice %5 {offsets = [176, 0], sizes = [16, 8], strides = [1, 1]} : vector<256x8xf32> to vector<16x8xf32>
    %cst_39 = arith.constant 0.000000e+00 : f32
    %1329 = vector.broadcast %cst_39 : f32 to vector<8x8xf32>
    %1330 = vector.extract_strided_slice %1327 {offsets = [0, 0], sizes = [8, 1], strides = [1, 1]} : vector<8x16xf32> to vector<8x1xf32>
    %1331 = vector.extract_strided_slice %1328 {offsets = [0, 0], sizes = [1, 8], strides = [1, 1]} : vector<16x8xf32> to vector<1x8xf32>
    %1332 = vector.broadcast %1330 : vector<8x1xf32> to vector<8x8xf32>
    %1333 = vector.broadcast %1331 : vector<1x8xf32> to vector<8x8xf32>
    %1334 = arith.subf %1332, %1333 : vector<8x8xf32>
    %1335 = math.absf %1334 : vector<8x8xf32>
    %1336 = arith.addf %1329, %1335 : vector<8x8xf32>
    %1337 = vector.extract_strided_slice %1327 {offsets = [0, 1], sizes = [8, 1], strides = [1, 1]} : vector<8x16xf32> to vector<8x1xf32>
    %1338 = vector.extract_strided_slice %1328 {offsets = [1, 0], sizes = [1, 8], strides = [1, 1]} : vector<16x8xf32> to vector<1x8xf32>
    %1339 = vector.broadcast %1337 : vector<8x1xf32> to vector<8x8xf32>
    %1340 = vector.broadcast %1338 : vector<1x8xf32> to vector<8x8xf32>
    %1341 = arith.subf %1339, %1340 : vector<8x8xf32>
    %1342 = math.absf %1341 : vector<8x8xf32>
    %1343 = arith.addf %1336, %1342 : vector<8x8xf32>
    %1344 = vector.extract_strided_slice %1327 {offsets = [0, 2], sizes = [8, 1], strides = [1, 1]} : vector<8x16xf32> to vector<8x1xf32>
    %1345 = vector.extract_strided_slice %1328 {offsets = [2, 0], sizes = [1, 8], strides = [1, 1]} : vector<16x8xf32> to vector<1x8xf32>
    %1346 = vector.broadcast %1344 : vector<8x1xf32> to vector<8x8xf32>
    %1347 = vector.broadcast %1345 : vector<1x8xf32> to vector<8x8xf32>
    %1348 = arith.subf %1346, %1347 : vector<8x8xf32>
    %1349 = math.absf %1348 : vector<8x8xf32>
    %1350 = arith.addf %1343, %1349 : vector<8x8xf32>
    %1351 = vector.extract_strided_slice %1327 {offsets = [0, 3], sizes = [8, 1], strides = [1, 1]} : vector<8x16xf32> to vector<8x1xf32>
    %1352 = vector.extract_strided_slice %1328 {offsets = [3, 0], sizes = [1, 8], strides = [1, 1]} : vector<16x8xf32> to vector<1x8xf32>
    %1353 = vector.broadcast %1351 : vector<8x1xf32> to vector<8x8xf32>
    %1354 = vector.broadcast %1352 : vector<1x8xf32> to vector<8x8xf32>
    %1355 = arith.subf %1353, %1354 : vector<8x8xf32>
    %1356 = math.absf %1355 : vector<8x8xf32>
    %1357 = arith.addf %1350, %1356 : vector<8x8xf32>
    %1358 = vector.extract_strided_slice %1327 {offsets = [0, 4], sizes = [8, 1], strides = [1, 1]} : vector<8x16xf32> to vector<8x1xf32>
    %1359 = vector.extract_strided_slice %1328 {offsets = [4, 0], sizes = [1, 8], strides = [1, 1]} : vector<16x8xf32> to vector<1x8xf32>
    %1360 = vector.broadcast %1358 : vector<8x1xf32> to vector<8x8xf32>
    %1361 = vector.broadcast %1359 : vector<1x8xf32> to vector<8x8xf32>
    %1362 = arith.subf %1360, %1361 : vector<8x8xf32>
    %1363 = math.absf %1362 : vector<8x8xf32>
    %1364 = arith.addf %1357, %1363 : vector<8x8xf32>
    %1365 = vector.extract_strided_slice %1327 {offsets = [0, 5], sizes = [8, 1], strides = [1, 1]} : vector<8x16xf32> to vector<8x1xf32>
    %1366 = vector.extract_strided_slice %1328 {offsets = [5, 0], sizes = [1, 8], strides = [1, 1]} : vector<16x8xf32> to vector<1x8xf32>
    %1367 = vector.broadcast %1365 : vector<8x1xf32> to vector<8x8xf32>
    %1368 = vector.broadcast %1366 : vector<1x8xf32> to vector<8x8xf32>
    %1369 = arith.subf %1367, %1368 : vector<8x8xf32>
    %1370 = math.absf %1369 : vector<8x8xf32>
    %1371 = arith.addf %1364, %1370 : vector<8x8xf32>
    %1372 = vector.extract_strided_slice %1327 {offsets = [0, 6], sizes = [8, 1], strides = [1, 1]} : vector<8x16xf32> to vector<8x1xf32>
    %1373 = vector.extract_strided_slice %1328 {offsets = [6, 0], sizes = [1, 8], strides = [1, 1]} : vector<16x8xf32> to vector<1x8xf32>
    %1374 = vector.broadcast %1372 : vector<8x1xf32> to vector<8x8xf32>
    %1375 = vector.broadcast %1373 : vector<1x8xf32> to vector<8x8xf32>
    %1376 = arith.subf %1374, %1375 : vector<8x8xf32>
    %1377 = math.absf %1376 : vector<8x8xf32>
    %1378 = arith.addf %1371, %1377 : vector<8x8xf32>
    %1379 = vector.extract_strided_slice %1327 {offsets = [0, 7], sizes = [8, 1], strides = [1, 1]} : vector<8x16xf32> to vector<8x1xf32>
    %1380 = vector.extract_strided_slice %1328 {offsets = [7, 0], sizes = [1, 8], strides = [1, 1]} : vector<16x8xf32> to vector<1x8xf32>
    %1381 = vector.broadcast %1379 : vector<8x1xf32> to vector<8x8xf32>
    %1382 = vector.broadcast %1380 : vector<1x8xf32> to vector<8x8xf32>
    %1383 = arith.subf %1381, %1382 : vector<8x8xf32>
    %1384 = math.absf %1383 : vector<8x8xf32>
    %1385 = arith.addf %1378, %1384 : vector<8x8xf32>
    %1386 = vector.extract_strided_slice %1327 {offsets = [0, 8], sizes = [8, 1], strides = [1, 1]} : vector<8x16xf32> to vector<8x1xf32>
    %1387 = vector.extract_strided_slice %1328 {offsets = [8, 0], sizes = [1, 8], strides = [1, 1]} : vector<16x8xf32> to vector<1x8xf32>
    %1388 = vector.broadcast %1386 : vector<8x1xf32> to vector<8x8xf32>
    %1389 = vector.broadcast %1387 : vector<1x8xf32> to vector<8x8xf32>
    %1390 = arith.subf %1388, %1389 : vector<8x8xf32>
    %1391 = math.absf %1390 : vector<8x8xf32>
    %1392 = arith.addf %1385, %1391 : vector<8x8xf32>
    %1393 = vector.extract_strided_slice %1327 {offsets = [0, 9], sizes = [8, 1], strides = [1, 1]} : vector<8x16xf32> to vector<8x1xf32>
    %1394 = vector.extract_strided_slice %1328 {offsets = [9, 0], sizes = [1, 8], strides = [1, 1]} : vector<16x8xf32> to vector<1x8xf32>
    %1395 = vector.broadcast %1393 : vector<8x1xf32> to vector<8x8xf32>
    %1396 = vector.broadcast %1394 : vector<1x8xf32> to vector<8x8xf32>
    %1397 = arith.subf %1395, %1396 : vector<8x8xf32>
    %1398 = math.absf %1397 : vector<8x8xf32>
    %1399 = arith.addf %1392, %1398 : vector<8x8xf32>
    %1400 = vector.extract_strided_slice %1327 {offsets = [0, 10], sizes = [8, 1], strides = [1, 1]} : vector<8x16xf32> to vector<8x1xf32>
    %1401 = vector.extract_strided_slice %1328 {offsets = [10, 0], sizes = [1, 8], strides = [1, 1]} : vector<16x8xf32> to vector<1x8xf32>
    %1402 = vector.broadcast %1400 : vector<8x1xf32> to vector<8x8xf32>
    %1403 = vector.broadcast %1401 : vector<1x8xf32> to vector<8x8xf32>
    %1404 = arith.subf %1402, %1403 : vector<8x8xf32>
    %1405 = math.absf %1404 : vector<8x8xf32>
    %1406 = arith.addf %1399, %1405 : vector<8x8xf32>
    %1407 = vector.extract_strided_slice %1327 {offsets = [0, 11], sizes = [8, 1], strides = [1, 1]} : vector<8x16xf32> to vector<8x1xf32>
    %1408 = vector.extract_strided_slice %1328 {offsets = [11, 0], sizes = [1, 8], strides = [1, 1]} : vector<16x8xf32> to vector<1x8xf32>
    %1409 = vector.broadcast %1407 : vector<8x1xf32> to vector<8x8xf32>
    %1410 = vector.broadcast %1408 : vector<1x8xf32> to vector<8x8xf32>
    %1411 = arith.subf %1409, %1410 : vector<8x8xf32>
    %1412 = math.absf %1411 : vector<8x8xf32>
    %1413 = arith.addf %1406, %1412 : vector<8x8xf32>
    %1414 = vector.extract_strided_slice %1327 {offsets = [0, 12], sizes = [8, 1], strides = [1, 1]} : vector<8x16xf32> to vector<8x1xf32>
    %1415 = vector.extract_strided_slice %1328 {offsets = [12, 0], sizes = [1, 8], strides = [1, 1]} : vector<16x8xf32> to vector<1x8xf32>
    %1416 = vector.broadcast %1414 : vector<8x1xf32> to vector<8x8xf32>
    %1417 = vector.broadcast %1415 : vector<1x8xf32> to vector<8x8xf32>
    %1418 = arith.subf %1416, %1417 : vector<8x8xf32>
    %1419 = math.absf %1418 : vector<8x8xf32>
    %1420 = arith.addf %1413, %1419 : vector<8x8xf32>
    %1421 = vector.extract_strided_slice %1327 {offsets = [0, 13], sizes = [8, 1], strides = [1, 1]} : vector<8x16xf32> to vector<8x1xf32>
    %1422 = vector.extract_strided_slice %1328 {offsets = [13, 0], sizes = [1, 8], strides = [1, 1]} : vector<16x8xf32> to vector<1x8xf32>
    %1423 = vector.broadcast %1421 : vector<8x1xf32> to vector<8x8xf32>
    %1424 = vector.broadcast %1422 : vector<1x8xf32> to vector<8x8xf32>
    %1425 = arith.subf %1423, %1424 : vector<8x8xf32>
    %1426 = math.absf %1425 : vector<8x8xf32>
    %1427 = arith.addf %1420, %1426 : vector<8x8xf32>
    %1428 = vector.extract_strided_slice %1327 {offsets = [0, 14], sizes = [8, 1], strides = [1, 1]} : vector<8x16xf32> to vector<8x1xf32>
    %1429 = vector.extract_strided_slice %1328 {offsets = [14, 0], sizes = [1, 8], strides = [1, 1]} : vector<16x8xf32> to vector<1x8xf32>
    %1430 = vector.broadcast %1428 : vector<8x1xf32> to vector<8x8xf32>
    %1431 = vector.broadcast %1429 : vector<1x8xf32> to vector<8x8xf32>
    %1432 = arith.subf %1430, %1431 : vector<8x8xf32>
    %1433 = math.absf %1432 : vector<8x8xf32>
    %1434 = arith.addf %1427, %1433 : vector<8x8xf32>
    %1435 = vector.extract_strided_slice %1327 {offsets = [0, 15], sizes = [8, 1], strides = [1, 1]} : vector<8x16xf32> to vector<8x1xf32>
    %1436 = vector.extract_strided_slice %1328 {offsets = [15, 0], sizes = [1, 8], strides = [1, 1]} : vector<16x8xf32> to vector<1x8xf32>
    %1437 = vector.broadcast %1435 : vector<8x1xf32> to vector<8x8xf32>
    %1438 = vector.broadcast %1436 : vector<1x8xf32> to vector<8x8xf32>
    %1439 = arith.subf %1437, %1438 : vector<8x8xf32>
    %1440 = math.absf %1439 : vector<8x8xf32>
    %1441 = arith.addf %1434, %1440 : vector<8x8xf32>
    %cst_40 = arith.constant 0.000000e+00 : f32
    %1442 = vector.broadcast %cst_40 : f32 to vector<8x8xf32>
    %1443 = arith.subf %1442, %1441 : vector<8x8xf32>
    %1444 = math.exp %1443 : vector<8x8xf32>
    %cst_41 = arith.constant dense<0.000000e+00> : vector<8xf32>
    %1445 = vector.multi_reduction <add>, %1444, %cst_41 [1] : vector<8x8xf32> to vector<8xf32>
    %1446 = vector.shape_cast %1445 : vector<8xf32> to vector<8x1xf32>
    %1447 = vector.extract_strided_slice %6 {offsets = [0, 192], sizes = [8, 16], strides = [1, 1]} : vector<8x256xf32> to vector<8x16xf32>
    %1448 = vector.extract_strided_slice %5 {offsets = [192, 0], sizes = [16, 8], strides = [1, 1]} : vector<256x8xf32> to vector<16x8xf32>
    %cst_42 = arith.constant 0.000000e+00 : f32
    %1449 = vector.broadcast %cst_42 : f32 to vector<8x8xf32>
    %1450 = vector.extract_strided_slice %1447 {offsets = [0, 0], sizes = [8, 1], strides = [1, 1]} : vector<8x16xf32> to vector<8x1xf32>
    %1451 = vector.extract_strided_slice %1448 {offsets = [0, 0], sizes = [1, 8], strides = [1, 1]} : vector<16x8xf32> to vector<1x8xf32>
    %1452 = vector.broadcast %1450 : vector<8x1xf32> to vector<8x8xf32>
    %1453 = vector.broadcast %1451 : vector<1x8xf32> to vector<8x8xf32>
    %1454 = arith.subf %1452, %1453 : vector<8x8xf32>
    %1455 = math.absf %1454 : vector<8x8xf32>
    %1456 = arith.addf %1449, %1455 : vector<8x8xf32>
    %1457 = vector.extract_strided_slice %1447 {offsets = [0, 1], sizes = [8, 1], strides = [1, 1]} : vector<8x16xf32> to vector<8x1xf32>
    %1458 = vector.extract_strided_slice %1448 {offsets = [1, 0], sizes = [1, 8], strides = [1, 1]} : vector<16x8xf32> to vector<1x8xf32>
    %1459 = vector.broadcast %1457 : vector<8x1xf32> to vector<8x8xf32>
    %1460 = vector.broadcast %1458 : vector<1x8xf32> to vector<8x8xf32>
    %1461 = arith.subf %1459, %1460 : vector<8x8xf32>
    %1462 = math.absf %1461 : vector<8x8xf32>
    %1463 = arith.addf %1456, %1462 : vector<8x8xf32>
    %1464 = vector.extract_strided_slice %1447 {offsets = [0, 2], sizes = [8, 1], strides = [1, 1]} : vector<8x16xf32> to vector<8x1xf32>
    %1465 = vector.extract_strided_slice %1448 {offsets = [2, 0], sizes = [1, 8], strides = [1, 1]} : vector<16x8xf32> to vector<1x8xf32>
    %1466 = vector.broadcast %1464 : vector<8x1xf32> to vector<8x8xf32>
    %1467 = vector.broadcast %1465 : vector<1x8xf32> to vector<8x8xf32>
    %1468 = arith.subf %1466, %1467 : vector<8x8xf32>
    %1469 = math.absf %1468 : vector<8x8xf32>
    %1470 = arith.addf %1463, %1469 : vector<8x8xf32>
    %1471 = vector.extract_strided_slice %1447 {offsets = [0, 3], sizes = [8, 1], strides = [1, 1]} : vector<8x16xf32> to vector<8x1xf32>
    %1472 = vector.extract_strided_slice %1448 {offsets = [3, 0], sizes = [1, 8], strides = [1, 1]} : vector<16x8xf32> to vector<1x8xf32>
    %1473 = vector.broadcast %1471 : vector<8x1xf32> to vector<8x8xf32>
    %1474 = vector.broadcast %1472 : vector<1x8xf32> to vector<8x8xf32>
    %1475 = arith.subf %1473, %1474 : vector<8x8xf32>
    %1476 = math.absf %1475 : vector<8x8xf32>
    %1477 = arith.addf %1470, %1476 : vector<8x8xf32>
    %1478 = vector.extract_strided_slice %1447 {offsets = [0, 4], sizes = [8, 1], strides = [1, 1]} : vector<8x16xf32> to vector<8x1xf32>
    %1479 = vector.extract_strided_slice %1448 {offsets = [4, 0], sizes = [1, 8], strides = [1, 1]} : vector<16x8xf32> to vector<1x8xf32>
    %1480 = vector.broadcast %1478 : vector<8x1xf32> to vector<8x8xf32>
    %1481 = vector.broadcast %1479 : vector<1x8xf32> to vector<8x8xf32>
    %1482 = arith.subf %1480, %1481 : vector<8x8xf32>
    %1483 = math.absf %1482 : vector<8x8xf32>
    %1484 = arith.addf %1477, %1483 : vector<8x8xf32>
    %1485 = vector.extract_strided_slice %1447 {offsets = [0, 5], sizes = [8, 1], strides = [1, 1]} : vector<8x16xf32> to vector<8x1xf32>
    %1486 = vector.extract_strided_slice %1448 {offsets = [5, 0], sizes = [1, 8], strides = [1, 1]} : vector<16x8xf32> to vector<1x8xf32>
    %1487 = vector.broadcast %1485 : vector<8x1xf32> to vector<8x8xf32>
    %1488 = vector.broadcast %1486 : vector<1x8xf32> to vector<8x8xf32>
    %1489 = arith.subf %1487, %1488 : vector<8x8xf32>
    %1490 = math.absf %1489 : vector<8x8xf32>
    %1491 = arith.addf %1484, %1490 : vector<8x8xf32>
    %1492 = vector.extract_strided_slice %1447 {offsets = [0, 6], sizes = [8, 1], strides = [1, 1]} : vector<8x16xf32> to vector<8x1xf32>
    %1493 = vector.extract_strided_slice %1448 {offsets = [6, 0], sizes = [1, 8], strides = [1, 1]} : vector<16x8xf32> to vector<1x8xf32>
    %1494 = vector.broadcast %1492 : vector<8x1xf32> to vector<8x8xf32>
    %1495 = vector.broadcast %1493 : vector<1x8xf32> to vector<8x8xf32>
    %1496 = arith.subf %1494, %1495 : vector<8x8xf32>
    %1497 = math.absf %1496 : vector<8x8xf32>
    %1498 = arith.addf %1491, %1497 : vector<8x8xf32>
    %1499 = vector.extract_strided_slice %1447 {offsets = [0, 7], sizes = [8, 1], strides = [1, 1]} : vector<8x16xf32> to vector<8x1xf32>
    %1500 = vector.extract_strided_slice %1448 {offsets = [7, 0], sizes = [1, 8], strides = [1, 1]} : vector<16x8xf32> to vector<1x8xf32>
    %1501 = vector.broadcast %1499 : vector<8x1xf32> to vector<8x8xf32>
    %1502 = vector.broadcast %1500 : vector<1x8xf32> to vector<8x8xf32>
    %1503 = arith.subf %1501, %1502 : vector<8x8xf32>
    %1504 = math.absf %1503 : vector<8x8xf32>
    %1505 = arith.addf %1498, %1504 : vector<8x8xf32>
    %1506 = vector.extract_strided_slice %1447 {offsets = [0, 8], sizes = [8, 1], strides = [1, 1]} : vector<8x16xf32> to vector<8x1xf32>
    %1507 = vector.extract_strided_slice %1448 {offsets = [8, 0], sizes = [1, 8], strides = [1, 1]} : vector<16x8xf32> to vector<1x8xf32>
    %1508 = vector.broadcast %1506 : vector<8x1xf32> to vector<8x8xf32>
    %1509 = vector.broadcast %1507 : vector<1x8xf32> to vector<8x8xf32>
    %1510 = arith.subf %1508, %1509 : vector<8x8xf32>
    %1511 = math.absf %1510 : vector<8x8xf32>
    %1512 = arith.addf %1505, %1511 : vector<8x8xf32>
    %1513 = vector.extract_strided_slice %1447 {offsets = [0, 9], sizes = [8, 1], strides = [1, 1]} : vector<8x16xf32> to vector<8x1xf32>
    %1514 = vector.extract_strided_slice %1448 {offsets = [9, 0], sizes = [1, 8], strides = [1, 1]} : vector<16x8xf32> to vector<1x8xf32>
    %1515 = vector.broadcast %1513 : vector<8x1xf32> to vector<8x8xf32>
    %1516 = vector.broadcast %1514 : vector<1x8xf32> to vector<8x8xf32>
    %1517 = arith.subf %1515, %1516 : vector<8x8xf32>
    %1518 = math.absf %1517 : vector<8x8xf32>
    %1519 = arith.addf %1512, %1518 : vector<8x8xf32>
    %1520 = vector.extract_strided_slice %1447 {offsets = [0, 10], sizes = [8, 1], strides = [1, 1]} : vector<8x16xf32> to vector<8x1xf32>
    %1521 = vector.extract_strided_slice %1448 {offsets = [10, 0], sizes = [1, 8], strides = [1, 1]} : vector<16x8xf32> to vector<1x8xf32>
    %1522 = vector.broadcast %1520 : vector<8x1xf32> to vector<8x8xf32>
    %1523 = vector.broadcast %1521 : vector<1x8xf32> to vector<8x8xf32>
    %1524 = arith.subf %1522, %1523 : vector<8x8xf32>
    %1525 = math.absf %1524 : vector<8x8xf32>
    %1526 = arith.addf %1519, %1525 : vector<8x8xf32>
    %1527 = vector.extract_strided_slice %1447 {offsets = [0, 11], sizes = [8, 1], strides = [1, 1]} : vector<8x16xf32> to vector<8x1xf32>
    %1528 = vector.extract_strided_slice %1448 {offsets = [11, 0], sizes = [1, 8], strides = [1, 1]} : vector<16x8xf32> to vector<1x8xf32>
    %1529 = vector.broadcast %1527 : vector<8x1xf32> to vector<8x8xf32>
    %1530 = vector.broadcast %1528 : vector<1x8xf32> to vector<8x8xf32>
    %1531 = arith.subf %1529, %1530 : vector<8x8xf32>
    %1532 = math.absf %1531 : vector<8x8xf32>
    %1533 = arith.addf %1526, %1532 : vector<8x8xf32>
    %1534 = vector.extract_strided_slice %1447 {offsets = [0, 12], sizes = [8, 1], strides = [1, 1]} : vector<8x16xf32> to vector<8x1xf32>
    %1535 = vector.extract_strided_slice %1448 {offsets = [12, 0], sizes = [1, 8], strides = [1, 1]} : vector<16x8xf32> to vector<1x8xf32>
    %1536 = vector.broadcast %1534 : vector<8x1xf32> to vector<8x8xf32>
    %1537 = vector.broadcast %1535 : vector<1x8xf32> to vector<8x8xf32>
    %1538 = arith.subf %1536, %1537 : vector<8x8xf32>
    %1539 = math.absf %1538 : vector<8x8xf32>
    %1540 = arith.addf %1533, %1539 : vector<8x8xf32>
    %1541 = vector.extract_strided_slice %1447 {offsets = [0, 13], sizes = [8, 1], strides = [1, 1]} : vector<8x16xf32> to vector<8x1xf32>
    %1542 = vector.extract_strided_slice %1448 {offsets = [13, 0], sizes = [1, 8], strides = [1, 1]} : vector<16x8xf32> to vector<1x8xf32>
    %1543 = vector.broadcast %1541 : vector<8x1xf32> to vector<8x8xf32>
    %1544 = vector.broadcast %1542 : vector<1x8xf32> to vector<8x8xf32>
    %1545 = arith.subf %1543, %1544 : vector<8x8xf32>
    %1546 = math.absf %1545 : vector<8x8xf32>
    %1547 = arith.addf %1540, %1546 : vector<8x8xf32>
    %1548 = vector.extract_strided_slice %1447 {offsets = [0, 14], sizes = [8, 1], strides = [1, 1]} : vector<8x16xf32> to vector<8x1xf32>
    %1549 = vector.extract_strided_slice %1448 {offsets = [14, 0], sizes = [1, 8], strides = [1, 1]} : vector<16x8xf32> to vector<1x8xf32>
    %1550 = vector.broadcast %1548 : vector<8x1xf32> to vector<8x8xf32>
    %1551 = vector.broadcast %1549 : vector<1x8xf32> to vector<8x8xf32>
    %1552 = arith.subf %1550, %1551 : vector<8x8xf32>
    %1553 = math.absf %1552 : vector<8x8xf32>
    %1554 = arith.addf %1547, %1553 : vector<8x8xf32>
    %1555 = vector.extract_strided_slice %1447 {offsets = [0, 15], sizes = [8, 1], strides = [1, 1]} : vector<8x16xf32> to vector<8x1xf32>
    %1556 = vector.extract_strided_slice %1448 {offsets = [15, 0], sizes = [1, 8], strides = [1, 1]} : vector<16x8xf32> to vector<1x8xf32>
    %1557 = vector.broadcast %1555 : vector<8x1xf32> to vector<8x8xf32>
    %1558 = vector.broadcast %1556 : vector<1x8xf32> to vector<8x8xf32>
    %1559 = arith.subf %1557, %1558 : vector<8x8xf32>
    %1560 = math.absf %1559 : vector<8x8xf32>
    %1561 = arith.addf %1554, %1560 : vector<8x8xf32>
    %cst_43 = arith.constant 0.000000e+00 : f32
    %1562 = vector.broadcast %cst_43 : f32 to vector<8x8xf32>
    %1563 = arith.subf %1562, %1561 : vector<8x8xf32>
    %1564 = math.exp %1563 : vector<8x8xf32>
    %cst_44 = arith.constant dense<0.000000e+00> : vector<8xf32>
    %1565 = vector.multi_reduction <add>, %1564, %cst_44 [1] : vector<8x8xf32> to vector<8xf32>
    %1566 = vector.shape_cast %1565 : vector<8xf32> to vector<8x1xf32>
    %1567 = vector.extract_strided_slice %6 {offsets = [0, 208], sizes = [8, 16], strides = [1, 1]} : vector<8x256xf32> to vector<8x16xf32>
    %1568 = vector.extract_strided_slice %5 {offsets = [208, 0], sizes = [16, 8], strides = [1, 1]} : vector<256x8xf32> to vector<16x8xf32>
    %cst_45 = arith.constant 0.000000e+00 : f32
    %1569 = vector.broadcast %cst_45 : f32 to vector<8x8xf32>
    %1570 = vector.extract_strided_slice %1567 {offsets = [0, 0], sizes = [8, 1], strides = [1, 1]} : vector<8x16xf32> to vector<8x1xf32>
    %1571 = vector.extract_strided_slice %1568 {offsets = [0, 0], sizes = [1, 8], strides = [1, 1]} : vector<16x8xf32> to vector<1x8xf32>
    %1572 = vector.broadcast %1570 : vector<8x1xf32> to vector<8x8xf32>
    %1573 = vector.broadcast %1571 : vector<1x8xf32> to vector<8x8xf32>
    %1574 = arith.subf %1572, %1573 : vector<8x8xf32>
    %1575 = math.absf %1574 : vector<8x8xf32>
    %1576 = arith.addf %1569, %1575 : vector<8x8xf32>
    %1577 = vector.extract_strided_slice %1567 {offsets = [0, 1], sizes = [8, 1], strides = [1, 1]} : vector<8x16xf32> to vector<8x1xf32>
    %1578 = vector.extract_strided_slice %1568 {offsets = [1, 0], sizes = [1, 8], strides = [1, 1]} : vector<16x8xf32> to vector<1x8xf32>
    %1579 = vector.broadcast %1577 : vector<8x1xf32> to vector<8x8xf32>
    %1580 = vector.broadcast %1578 : vector<1x8xf32> to vector<8x8xf32>
    %1581 = arith.subf %1579, %1580 : vector<8x8xf32>
    %1582 = math.absf %1581 : vector<8x8xf32>
    %1583 = arith.addf %1576, %1582 : vector<8x8xf32>
    %1584 = vector.extract_strided_slice %1567 {offsets = [0, 2], sizes = [8, 1], strides = [1, 1]} : vector<8x16xf32> to vector<8x1xf32>
    %1585 = vector.extract_strided_slice %1568 {offsets = [2, 0], sizes = [1, 8], strides = [1, 1]} : vector<16x8xf32> to vector<1x8xf32>
    %1586 = vector.broadcast %1584 : vector<8x1xf32> to vector<8x8xf32>
    %1587 = vector.broadcast %1585 : vector<1x8xf32> to vector<8x8xf32>
    %1588 = arith.subf %1586, %1587 : vector<8x8xf32>
    %1589 = math.absf %1588 : vector<8x8xf32>
    %1590 = arith.addf %1583, %1589 : vector<8x8xf32>
    %1591 = vector.extract_strided_slice %1567 {offsets = [0, 3], sizes = [8, 1], strides = [1, 1]} : vector<8x16xf32> to vector<8x1xf32>
    %1592 = vector.extract_strided_slice %1568 {offsets = [3, 0], sizes = [1, 8], strides = [1, 1]} : vector<16x8xf32> to vector<1x8xf32>
    %1593 = vector.broadcast %1591 : vector<8x1xf32> to vector<8x8xf32>
    %1594 = vector.broadcast %1592 : vector<1x8xf32> to vector<8x8xf32>
    %1595 = arith.subf %1593, %1594 : vector<8x8xf32>
    %1596 = math.absf %1595 : vector<8x8xf32>
    %1597 = arith.addf %1590, %1596 : vector<8x8xf32>
    %1598 = vector.extract_strided_slice %1567 {offsets = [0, 4], sizes = [8, 1], strides = [1, 1]} : vector<8x16xf32> to vector<8x1xf32>
    %1599 = vector.extract_strided_slice %1568 {offsets = [4, 0], sizes = [1, 8], strides = [1, 1]} : vector<16x8xf32> to vector<1x8xf32>
    %1600 = vector.broadcast %1598 : vector<8x1xf32> to vector<8x8xf32>
    %1601 = vector.broadcast %1599 : vector<1x8xf32> to vector<8x8xf32>
    %1602 = arith.subf %1600, %1601 : vector<8x8xf32>
    %1603 = math.absf %1602 : vector<8x8xf32>
    %1604 = arith.addf %1597, %1603 : vector<8x8xf32>
    %1605 = vector.extract_strided_slice %1567 {offsets = [0, 5], sizes = [8, 1], strides = [1, 1]} : vector<8x16xf32> to vector<8x1xf32>
    %1606 = vector.extract_strided_slice %1568 {offsets = [5, 0], sizes = [1, 8], strides = [1, 1]} : vector<16x8xf32> to vector<1x8xf32>
    %1607 = vector.broadcast %1605 : vector<8x1xf32> to vector<8x8xf32>
    %1608 = vector.broadcast %1606 : vector<1x8xf32> to vector<8x8xf32>
    %1609 = arith.subf %1607, %1608 : vector<8x8xf32>
    %1610 = math.absf %1609 : vector<8x8xf32>
    %1611 = arith.addf %1604, %1610 : vector<8x8xf32>
    %1612 = vector.extract_strided_slice %1567 {offsets = [0, 6], sizes = [8, 1], strides = [1, 1]} : vector<8x16xf32> to vector<8x1xf32>
    %1613 = vector.extract_strided_slice %1568 {offsets = [6, 0], sizes = [1, 8], strides = [1, 1]} : vector<16x8xf32> to vector<1x8xf32>
    %1614 = vector.broadcast %1612 : vector<8x1xf32> to vector<8x8xf32>
    %1615 = vector.broadcast %1613 : vector<1x8xf32> to vector<8x8xf32>
    %1616 = arith.subf %1614, %1615 : vector<8x8xf32>
    %1617 = math.absf %1616 : vector<8x8xf32>
    %1618 = arith.addf %1611, %1617 : vector<8x8xf32>
    %1619 = vector.extract_strided_slice %1567 {offsets = [0, 7], sizes = [8, 1], strides = [1, 1]} : vector<8x16xf32> to vector<8x1xf32>
    %1620 = vector.extract_strided_slice %1568 {offsets = [7, 0], sizes = [1, 8], strides = [1, 1]} : vector<16x8xf32> to vector<1x8xf32>
    %1621 = vector.broadcast %1619 : vector<8x1xf32> to vector<8x8xf32>
    %1622 = vector.broadcast %1620 : vector<1x8xf32> to vector<8x8xf32>
    %1623 = arith.subf %1621, %1622 : vector<8x8xf32>
    %1624 = math.absf %1623 : vector<8x8xf32>
    %1625 = arith.addf %1618, %1624 : vector<8x8xf32>
    %1626 = vector.extract_strided_slice %1567 {offsets = [0, 8], sizes = [8, 1], strides = [1, 1]} : vector<8x16xf32> to vector<8x1xf32>
    %1627 = vector.extract_strided_slice %1568 {offsets = [8, 0], sizes = [1, 8], strides = [1, 1]} : vector<16x8xf32> to vector<1x8xf32>
    %1628 = vector.broadcast %1626 : vector<8x1xf32> to vector<8x8xf32>
    %1629 = vector.broadcast %1627 : vector<1x8xf32> to vector<8x8xf32>
    %1630 = arith.subf %1628, %1629 : vector<8x8xf32>
    %1631 = math.absf %1630 : vector<8x8xf32>
    %1632 = arith.addf %1625, %1631 : vector<8x8xf32>
    %1633 = vector.extract_strided_slice %1567 {offsets = [0, 9], sizes = [8, 1], strides = [1, 1]} : vector<8x16xf32> to vector<8x1xf32>
    %1634 = vector.extract_strided_slice %1568 {offsets = [9, 0], sizes = [1, 8], strides = [1, 1]} : vector<16x8xf32> to vector<1x8xf32>
    %1635 = vector.broadcast %1633 : vector<8x1xf32> to vector<8x8xf32>
    %1636 = vector.broadcast %1634 : vector<1x8xf32> to vector<8x8xf32>
    %1637 = arith.subf %1635, %1636 : vector<8x8xf32>
    %1638 = math.absf %1637 : vector<8x8xf32>
    %1639 = arith.addf %1632, %1638 : vector<8x8xf32>
    %1640 = vector.extract_strided_slice %1567 {offsets = [0, 10], sizes = [8, 1], strides = [1, 1]} : vector<8x16xf32> to vector<8x1xf32>
    %1641 = vector.extract_strided_slice %1568 {offsets = [10, 0], sizes = [1, 8], strides = [1, 1]} : vector<16x8xf32> to vector<1x8xf32>
    %1642 = vector.broadcast %1640 : vector<8x1xf32> to vector<8x8xf32>
    %1643 = vector.broadcast %1641 : vector<1x8xf32> to vector<8x8xf32>
    %1644 = arith.subf %1642, %1643 : vector<8x8xf32>
    %1645 = math.absf %1644 : vector<8x8xf32>
    %1646 = arith.addf %1639, %1645 : vector<8x8xf32>
    %1647 = vector.extract_strided_slice %1567 {offsets = [0, 11], sizes = [8, 1], strides = [1, 1]} : vector<8x16xf32> to vector<8x1xf32>
    %1648 = vector.extract_strided_slice %1568 {offsets = [11, 0], sizes = [1, 8], strides = [1, 1]} : vector<16x8xf32> to vector<1x8xf32>
    %1649 = vector.broadcast %1647 : vector<8x1xf32> to vector<8x8xf32>
    %1650 = vector.broadcast %1648 : vector<1x8xf32> to vector<8x8xf32>
    %1651 = arith.subf %1649, %1650 : vector<8x8xf32>
    %1652 = math.absf %1651 : vector<8x8xf32>
    %1653 = arith.addf %1646, %1652 : vector<8x8xf32>
    %1654 = vector.extract_strided_slice %1567 {offsets = [0, 12], sizes = [8, 1], strides = [1, 1]} : vector<8x16xf32> to vector<8x1xf32>
    %1655 = vector.extract_strided_slice %1568 {offsets = [12, 0], sizes = [1, 8], strides = [1, 1]} : vector<16x8xf32> to vector<1x8xf32>
    %1656 = vector.broadcast %1654 : vector<8x1xf32> to vector<8x8xf32>
    %1657 = vector.broadcast %1655 : vector<1x8xf32> to vector<8x8xf32>
    %1658 = arith.subf %1656, %1657 : vector<8x8xf32>
    %1659 = math.absf %1658 : vector<8x8xf32>
    %1660 = arith.addf %1653, %1659 : vector<8x8xf32>
    %1661 = vector.extract_strided_slice %1567 {offsets = [0, 13], sizes = [8, 1], strides = [1, 1]} : vector<8x16xf32> to vector<8x1xf32>
    %1662 = vector.extract_strided_slice %1568 {offsets = [13, 0], sizes = [1, 8], strides = [1, 1]} : vector<16x8xf32> to vector<1x8xf32>
    %1663 = vector.broadcast %1661 : vector<8x1xf32> to vector<8x8xf32>
    %1664 = vector.broadcast %1662 : vector<1x8xf32> to vector<8x8xf32>
    %1665 = arith.subf %1663, %1664 : vector<8x8xf32>
    %1666 = math.absf %1665 : vector<8x8xf32>
    %1667 = arith.addf %1660, %1666 : vector<8x8xf32>
    %1668 = vector.extract_strided_slice %1567 {offsets = [0, 14], sizes = [8, 1], strides = [1, 1]} : vector<8x16xf32> to vector<8x1xf32>
    %1669 = vector.extract_strided_slice %1568 {offsets = [14, 0], sizes = [1, 8], strides = [1, 1]} : vector<16x8xf32> to vector<1x8xf32>
    %1670 = vector.broadcast %1668 : vector<8x1xf32> to vector<8x8xf32>
    %1671 = vector.broadcast %1669 : vector<1x8xf32> to vector<8x8xf32>
    %1672 = arith.subf %1670, %1671 : vector<8x8xf32>
    %1673 = math.absf %1672 : vector<8x8xf32>
    %1674 = arith.addf %1667, %1673 : vector<8x8xf32>
    %1675 = vector.extract_strided_slice %1567 {offsets = [0, 15], sizes = [8, 1], strides = [1, 1]} : vector<8x16xf32> to vector<8x1xf32>
    %1676 = vector.extract_strided_slice %1568 {offsets = [15, 0], sizes = [1, 8], strides = [1, 1]} : vector<16x8xf32> to vector<1x8xf32>
    %1677 = vector.broadcast %1675 : vector<8x1xf32> to vector<8x8xf32>
    %1678 = vector.broadcast %1676 : vector<1x8xf32> to vector<8x8xf32>
    %1679 = arith.subf %1677, %1678 : vector<8x8xf32>
    %1680 = math.absf %1679 : vector<8x8xf32>
    %1681 = arith.addf %1674, %1680 : vector<8x8xf32>
    %cst_46 = arith.constant 0.000000e+00 : f32
    %1682 = vector.broadcast %cst_46 : f32 to vector<8x8xf32>
    %1683 = arith.subf %1682, %1681 : vector<8x8xf32>
    %1684 = math.exp %1683 : vector<8x8xf32>
    %cst_47 = arith.constant dense<0.000000e+00> : vector<8xf32>
    %1685 = vector.multi_reduction <add>, %1684, %cst_47 [1] : vector<8x8xf32> to vector<8xf32>
    %1686 = vector.shape_cast %1685 : vector<8xf32> to vector<8x1xf32>
    %1687 = vector.extract_strided_slice %6 {offsets = [0, 224], sizes = [8, 16], strides = [1, 1]} : vector<8x256xf32> to vector<8x16xf32>
    %1688 = vector.extract_strided_slice %5 {offsets = [224, 0], sizes = [16, 8], strides = [1, 1]} : vector<256x8xf32> to vector<16x8xf32>
    %cst_48 = arith.constant 0.000000e+00 : f32
    %1689 = vector.broadcast %cst_48 : f32 to vector<8x8xf32>
    %1690 = vector.extract_strided_slice %1687 {offsets = [0, 0], sizes = [8, 1], strides = [1, 1]} : vector<8x16xf32> to vector<8x1xf32>
    %1691 = vector.extract_strided_slice %1688 {offsets = [0, 0], sizes = [1, 8], strides = [1, 1]} : vector<16x8xf32> to vector<1x8xf32>
    %1692 = vector.broadcast %1690 : vector<8x1xf32> to vector<8x8xf32>
    %1693 = vector.broadcast %1691 : vector<1x8xf32> to vector<8x8xf32>
    %1694 = arith.subf %1692, %1693 : vector<8x8xf32>
    %1695 = math.absf %1694 : vector<8x8xf32>
    %1696 = arith.addf %1689, %1695 : vector<8x8xf32>
    %1697 = vector.extract_strided_slice %1687 {offsets = [0, 1], sizes = [8, 1], strides = [1, 1]} : vector<8x16xf32> to vector<8x1xf32>
    %1698 = vector.extract_strided_slice %1688 {offsets = [1, 0], sizes = [1, 8], strides = [1, 1]} : vector<16x8xf32> to vector<1x8xf32>
    %1699 = vector.broadcast %1697 : vector<8x1xf32> to vector<8x8xf32>
    %1700 = vector.broadcast %1698 : vector<1x8xf32> to vector<8x8xf32>
    %1701 = arith.subf %1699, %1700 : vector<8x8xf32>
    %1702 = math.absf %1701 : vector<8x8xf32>
    %1703 = arith.addf %1696, %1702 : vector<8x8xf32>
    %1704 = vector.extract_strided_slice %1687 {offsets = [0, 2], sizes = [8, 1], strides = [1, 1]} : vector<8x16xf32> to vector<8x1xf32>
    %1705 = vector.extract_strided_slice %1688 {offsets = [2, 0], sizes = [1, 8], strides = [1, 1]} : vector<16x8xf32> to vector<1x8xf32>
    %1706 = vector.broadcast %1704 : vector<8x1xf32> to vector<8x8xf32>
    %1707 = vector.broadcast %1705 : vector<1x8xf32> to vector<8x8xf32>
    %1708 = arith.subf %1706, %1707 : vector<8x8xf32>
    %1709 = math.absf %1708 : vector<8x8xf32>
    %1710 = arith.addf %1703, %1709 : vector<8x8xf32>
    %1711 = vector.extract_strided_slice %1687 {offsets = [0, 3], sizes = [8, 1], strides = [1, 1]} : vector<8x16xf32> to vector<8x1xf32>
    %1712 = vector.extract_strided_slice %1688 {offsets = [3, 0], sizes = [1, 8], strides = [1, 1]} : vector<16x8xf32> to vector<1x8xf32>
    %1713 = vector.broadcast %1711 : vector<8x1xf32> to vector<8x8xf32>
    %1714 = vector.broadcast %1712 : vector<1x8xf32> to vector<8x8xf32>
    %1715 = arith.subf %1713, %1714 : vector<8x8xf32>
    %1716 = math.absf %1715 : vector<8x8xf32>
    %1717 = arith.addf %1710, %1716 : vector<8x8xf32>
    %1718 = vector.extract_strided_slice %1687 {offsets = [0, 4], sizes = [8, 1], strides = [1, 1]} : vector<8x16xf32> to vector<8x1xf32>
    %1719 = vector.extract_strided_slice %1688 {offsets = [4, 0], sizes = [1, 8], strides = [1, 1]} : vector<16x8xf32> to vector<1x8xf32>
    %1720 = vector.broadcast %1718 : vector<8x1xf32> to vector<8x8xf32>
    %1721 = vector.broadcast %1719 : vector<1x8xf32> to vector<8x8xf32>
    %1722 = arith.subf %1720, %1721 : vector<8x8xf32>
    %1723 = math.absf %1722 : vector<8x8xf32>
    %1724 = arith.addf %1717, %1723 : vector<8x8xf32>
    %1725 = vector.extract_strided_slice %1687 {offsets = [0, 5], sizes = [8, 1], strides = [1, 1]} : vector<8x16xf32> to vector<8x1xf32>
    %1726 = vector.extract_strided_slice %1688 {offsets = [5, 0], sizes = [1, 8], strides = [1, 1]} : vector<16x8xf32> to vector<1x8xf32>
    %1727 = vector.broadcast %1725 : vector<8x1xf32> to vector<8x8xf32>
    %1728 = vector.broadcast %1726 : vector<1x8xf32> to vector<8x8xf32>
    %1729 = arith.subf %1727, %1728 : vector<8x8xf32>
    %1730 = math.absf %1729 : vector<8x8xf32>
    %1731 = arith.addf %1724, %1730 : vector<8x8xf32>
    %1732 = vector.extract_strided_slice %1687 {offsets = [0, 6], sizes = [8, 1], strides = [1, 1]} : vector<8x16xf32> to vector<8x1xf32>
    %1733 = vector.extract_strided_slice %1688 {offsets = [6, 0], sizes = [1, 8], strides = [1, 1]} : vector<16x8xf32> to vector<1x8xf32>
    %1734 = vector.broadcast %1732 : vector<8x1xf32> to vector<8x8xf32>
    %1735 = vector.broadcast %1733 : vector<1x8xf32> to vector<8x8xf32>
    %1736 = arith.subf %1734, %1735 : vector<8x8xf32>
    %1737 = math.absf %1736 : vector<8x8xf32>
    %1738 = arith.addf %1731, %1737 : vector<8x8xf32>
    %1739 = vector.extract_strided_slice %1687 {offsets = [0, 7], sizes = [8, 1], strides = [1, 1]} : vector<8x16xf32> to vector<8x1xf32>
    %1740 = vector.extract_strided_slice %1688 {offsets = [7, 0], sizes = [1, 8], strides = [1, 1]} : vector<16x8xf32> to vector<1x8xf32>
    %1741 = vector.broadcast %1739 : vector<8x1xf32> to vector<8x8xf32>
    %1742 = vector.broadcast %1740 : vector<1x8xf32> to vector<8x8xf32>
    %1743 = arith.subf %1741, %1742 : vector<8x8xf32>
    %1744 = math.absf %1743 : vector<8x8xf32>
    %1745 = arith.addf %1738, %1744 : vector<8x8xf32>
    %1746 = vector.extract_strided_slice %1687 {offsets = [0, 8], sizes = [8, 1], strides = [1, 1]} : vector<8x16xf32> to vector<8x1xf32>
    %1747 = vector.extract_strided_slice %1688 {offsets = [8, 0], sizes = [1, 8], strides = [1, 1]} : vector<16x8xf32> to vector<1x8xf32>
    %1748 = vector.broadcast %1746 : vector<8x1xf32> to vector<8x8xf32>
    %1749 = vector.broadcast %1747 : vector<1x8xf32> to vector<8x8xf32>
    %1750 = arith.subf %1748, %1749 : vector<8x8xf32>
    %1751 = math.absf %1750 : vector<8x8xf32>
    %1752 = arith.addf %1745, %1751 : vector<8x8xf32>
    %1753 = vector.extract_strided_slice %1687 {offsets = [0, 9], sizes = [8, 1], strides = [1, 1]} : vector<8x16xf32> to vector<8x1xf32>
    %1754 = vector.extract_strided_slice %1688 {offsets = [9, 0], sizes = [1, 8], strides = [1, 1]} : vector<16x8xf32> to vector<1x8xf32>
    %1755 = vector.broadcast %1753 : vector<8x1xf32> to vector<8x8xf32>
    %1756 = vector.broadcast %1754 : vector<1x8xf32> to vector<8x8xf32>
    %1757 = arith.subf %1755, %1756 : vector<8x8xf32>
    %1758 = math.absf %1757 : vector<8x8xf32>
    %1759 = arith.addf %1752, %1758 : vector<8x8xf32>
    %1760 = vector.extract_strided_slice %1687 {offsets = [0, 10], sizes = [8, 1], strides = [1, 1]} : vector<8x16xf32> to vector<8x1xf32>
    %1761 = vector.extract_strided_slice %1688 {offsets = [10, 0], sizes = [1, 8], strides = [1, 1]} : vector<16x8xf32> to vector<1x8xf32>
    %1762 = vector.broadcast %1760 : vector<8x1xf32> to vector<8x8xf32>
    %1763 = vector.broadcast %1761 : vector<1x8xf32> to vector<8x8xf32>
    %1764 = arith.subf %1762, %1763 : vector<8x8xf32>
    %1765 = math.absf %1764 : vector<8x8xf32>
    %1766 = arith.addf %1759, %1765 : vector<8x8xf32>
    %1767 = vector.extract_strided_slice %1687 {offsets = [0, 11], sizes = [8, 1], strides = [1, 1]} : vector<8x16xf32> to vector<8x1xf32>
    %1768 = vector.extract_strided_slice %1688 {offsets = [11, 0], sizes = [1, 8], strides = [1, 1]} : vector<16x8xf32> to vector<1x8xf32>
    %1769 = vector.broadcast %1767 : vector<8x1xf32> to vector<8x8xf32>
    %1770 = vector.broadcast %1768 : vector<1x8xf32> to vector<8x8xf32>
    %1771 = arith.subf %1769, %1770 : vector<8x8xf32>
    %1772 = math.absf %1771 : vector<8x8xf32>
    %1773 = arith.addf %1766, %1772 : vector<8x8xf32>
    %1774 = vector.extract_strided_slice %1687 {offsets = [0, 12], sizes = [8, 1], strides = [1, 1]} : vector<8x16xf32> to vector<8x1xf32>
    %1775 = vector.extract_strided_slice %1688 {offsets = [12, 0], sizes = [1, 8], strides = [1, 1]} : vector<16x8xf32> to vector<1x8xf32>
    %1776 = vector.broadcast %1774 : vector<8x1xf32> to vector<8x8xf32>
    %1777 = vector.broadcast %1775 : vector<1x8xf32> to vector<8x8xf32>
    %1778 = arith.subf %1776, %1777 : vector<8x8xf32>
    %1779 = math.absf %1778 : vector<8x8xf32>
    %1780 = arith.addf %1773, %1779 : vector<8x8xf32>
    %1781 = vector.extract_strided_slice %1687 {offsets = [0, 13], sizes = [8, 1], strides = [1, 1]} : vector<8x16xf32> to vector<8x1xf32>
    %1782 = vector.extract_strided_slice %1688 {offsets = [13, 0], sizes = [1, 8], strides = [1, 1]} : vector<16x8xf32> to vector<1x8xf32>
    %1783 = vector.broadcast %1781 : vector<8x1xf32> to vector<8x8xf32>
    %1784 = vector.broadcast %1782 : vector<1x8xf32> to vector<8x8xf32>
    %1785 = arith.subf %1783, %1784 : vector<8x8xf32>
    %1786 = math.absf %1785 : vector<8x8xf32>
    %1787 = arith.addf %1780, %1786 : vector<8x8xf32>
    %1788 = vector.extract_strided_slice %1687 {offsets = [0, 14], sizes = [8, 1], strides = [1, 1]} : vector<8x16xf32> to vector<8x1xf32>
    %1789 = vector.extract_strided_slice %1688 {offsets = [14, 0], sizes = [1, 8], strides = [1, 1]} : vector<16x8xf32> to vector<1x8xf32>
    %1790 = vector.broadcast %1788 : vector<8x1xf32> to vector<8x8xf32>
    %1791 = vector.broadcast %1789 : vector<1x8xf32> to vector<8x8xf32>
    %1792 = arith.subf %1790, %1791 : vector<8x8xf32>
    %1793 = math.absf %1792 : vector<8x8xf32>
    %1794 = arith.addf %1787, %1793 : vector<8x8xf32>
    %1795 = vector.extract_strided_slice %1687 {offsets = [0, 15], sizes = [8, 1], strides = [1, 1]} : vector<8x16xf32> to vector<8x1xf32>
    %1796 = vector.extract_strided_slice %1688 {offsets = [15, 0], sizes = [1, 8], strides = [1, 1]} : vector<16x8xf32> to vector<1x8xf32>
    %1797 = vector.broadcast %1795 : vector<8x1xf32> to vector<8x8xf32>
    %1798 = vector.broadcast %1796 : vector<1x8xf32> to vector<8x8xf32>
    %1799 = arith.subf %1797, %1798 : vector<8x8xf32>
    %1800 = math.absf %1799 : vector<8x8xf32>
    %1801 = arith.addf %1794, %1800 : vector<8x8xf32>
    %cst_49 = arith.constant 0.000000e+00 : f32
    %1802 = vector.broadcast %cst_49 : f32 to vector<8x8xf32>
    %1803 = arith.subf %1802, %1801 : vector<8x8xf32>
    %1804 = math.exp %1803 : vector<8x8xf32>
    %cst_50 = arith.constant dense<0.000000e+00> : vector<8xf32>
    %1805 = vector.multi_reduction <add>, %1804, %cst_50 [1] : vector<8x8xf32> to vector<8xf32>
    %1806 = vector.shape_cast %1805 : vector<8xf32> to vector<8x1xf32>
    %1807 = vector.extract_strided_slice %6 {offsets = [0, 240], sizes = [8, 16], strides = [1, 1]} : vector<8x256xf32> to vector<8x16xf32>
    %1808 = vector.extract_strided_slice %5 {offsets = [240, 0], sizes = [16, 8], strides = [1, 1]} : vector<256x8xf32> to vector<16x8xf32>
    %cst_51 = arith.constant 0.000000e+00 : f32
    %1809 = vector.broadcast %cst_51 : f32 to vector<8x8xf32>
    %1810 = vector.extract_strided_slice %1807 {offsets = [0, 0], sizes = [8, 1], strides = [1, 1]} : vector<8x16xf32> to vector<8x1xf32>
    %1811 = vector.extract_strided_slice %1808 {offsets = [0, 0], sizes = [1, 8], strides = [1, 1]} : vector<16x8xf32> to vector<1x8xf32>
    %1812 = vector.broadcast %1810 : vector<8x1xf32> to vector<8x8xf32>
    %1813 = vector.broadcast %1811 : vector<1x8xf32> to vector<8x8xf32>
    %1814 = arith.subf %1812, %1813 : vector<8x8xf32>
    %1815 = math.absf %1814 : vector<8x8xf32>
    %1816 = arith.addf %1809, %1815 : vector<8x8xf32>
    %1817 = vector.extract_strided_slice %1807 {offsets = [0, 1], sizes = [8, 1], strides = [1, 1]} : vector<8x16xf32> to vector<8x1xf32>
    %1818 = vector.extract_strided_slice %1808 {offsets = [1, 0], sizes = [1, 8], strides = [1, 1]} : vector<16x8xf32> to vector<1x8xf32>
    %1819 = vector.broadcast %1817 : vector<8x1xf32> to vector<8x8xf32>
    %1820 = vector.broadcast %1818 : vector<1x8xf32> to vector<8x8xf32>
    %1821 = arith.subf %1819, %1820 : vector<8x8xf32>
    %1822 = math.absf %1821 : vector<8x8xf32>
    %1823 = arith.addf %1816, %1822 : vector<8x8xf32>
    %1824 = vector.extract_strided_slice %1807 {offsets = [0, 2], sizes = [8, 1], strides = [1, 1]} : vector<8x16xf32> to vector<8x1xf32>
    %1825 = vector.extract_strided_slice %1808 {offsets = [2, 0], sizes = [1, 8], strides = [1, 1]} : vector<16x8xf32> to vector<1x8xf32>
    %1826 = vector.broadcast %1824 : vector<8x1xf32> to vector<8x8xf32>
    %1827 = vector.broadcast %1825 : vector<1x8xf32> to vector<8x8xf32>
    %1828 = arith.subf %1826, %1827 : vector<8x8xf32>
    %1829 = math.absf %1828 : vector<8x8xf32>
    %1830 = arith.addf %1823, %1829 : vector<8x8xf32>
    %1831 = vector.extract_strided_slice %1807 {offsets = [0, 3], sizes = [8, 1], strides = [1, 1]} : vector<8x16xf32> to vector<8x1xf32>
    %1832 = vector.extract_strided_slice %1808 {offsets = [3, 0], sizes = [1, 8], strides = [1, 1]} : vector<16x8xf32> to vector<1x8xf32>
    %1833 = vector.broadcast %1831 : vector<8x1xf32> to vector<8x8xf32>
    %1834 = vector.broadcast %1832 : vector<1x8xf32> to vector<8x8xf32>
    %1835 = arith.subf %1833, %1834 : vector<8x8xf32>
    %1836 = math.absf %1835 : vector<8x8xf32>
    %1837 = arith.addf %1830, %1836 : vector<8x8xf32>
    %1838 = vector.extract_strided_slice %1807 {offsets = [0, 4], sizes = [8, 1], strides = [1, 1]} : vector<8x16xf32> to vector<8x1xf32>
    %1839 = vector.extract_strided_slice %1808 {offsets = [4, 0], sizes = [1, 8], strides = [1, 1]} : vector<16x8xf32> to vector<1x8xf32>
    %1840 = vector.broadcast %1838 : vector<8x1xf32> to vector<8x8xf32>
    %1841 = vector.broadcast %1839 : vector<1x8xf32> to vector<8x8xf32>
    %1842 = arith.subf %1840, %1841 : vector<8x8xf32>
    %1843 = math.absf %1842 : vector<8x8xf32>
    %1844 = arith.addf %1837, %1843 : vector<8x8xf32>
    %1845 = vector.extract_strided_slice %1807 {offsets = [0, 5], sizes = [8, 1], strides = [1, 1]} : vector<8x16xf32> to vector<8x1xf32>
    %1846 = vector.extract_strided_slice %1808 {offsets = [5, 0], sizes = [1, 8], strides = [1, 1]} : vector<16x8xf32> to vector<1x8xf32>
    %1847 = vector.broadcast %1845 : vector<8x1xf32> to vector<8x8xf32>
    %1848 = vector.broadcast %1846 : vector<1x8xf32> to vector<8x8xf32>
    %1849 = arith.subf %1847, %1848 : vector<8x8xf32>
    %1850 = math.absf %1849 : vector<8x8xf32>
    %1851 = arith.addf %1844, %1850 : vector<8x8xf32>
    %1852 = vector.extract_strided_slice %1807 {offsets = [0, 6], sizes = [8, 1], strides = [1, 1]} : vector<8x16xf32> to vector<8x1xf32>
    %1853 = vector.extract_strided_slice %1808 {offsets = [6, 0], sizes = [1, 8], strides = [1, 1]} : vector<16x8xf32> to vector<1x8xf32>
    %1854 = vector.broadcast %1852 : vector<8x1xf32> to vector<8x8xf32>
    %1855 = vector.broadcast %1853 : vector<1x8xf32> to vector<8x8xf32>
    %1856 = arith.subf %1854, %1855 : vector<8x8xf32>
    %1857 = math.absf %1856 : vector<8x8xf32>
    %1858 = arith.addf %1851, %1857 : vector<8x8xf32>
    %1859 = vector.extract_strided_slice %1807 {offsets = [0, 7], sizes = [8, 1], strides = [1, 1]} : vector<8x16xf32> to vector<8x1xf32>
    %1860 = vector.extract_strided_slice %1808 {offsets = [7, 0], sizes = [1, 8], strides = [1, 1]} : vector<16x8xf32> to vector<1x8xf32>
    %1861 = vector.broadcast %1859 : vector<8x1xf32> to vector<8x8xf32>
    %1862 = vector.broadcast %1860 : vector<1x8xf32> to vector<8x8xf32>
    %1863 = arith.subf %1861, %1862 : vector<8x8xf32>
    %1864 = math.absf %1863 : vector<8x8xf32>
    %1865 = arith.addf %1858, %1864 : vector<8x8xf32>
    %1866 = vector.extract_strided_slice %1807 {offsets = [0, 8], sizes = [8, 1], strides = [1, 1]} : vector<8x16xf32> to vector<8x1xf32>
    %1867 = vector.extract_strided_slice %1808 {offsets = [8, 0], sizes = [1, 8], strides = [1, 1]} : vector<16x8xf32> to vector<1x8xf32>
    %1868 = vector.broadcast %1866 : vector<8x1xf32> to vector<8x8xf32>
    %1869 = vector.broadcast %1867 : vector<1x8xf32> to vector<8x8xf32>
    %1870 = arith.subf %1868, %1869 : vector<8x8xf32>
    %1871 = math.absf %1870 : vector<8x8xf32>
    %1872 = arith.addf %1865, %1871 : vector<8x8xf32>
    %1873 = vector.extract_strided_slice %1807 {offsets = [0, 9], sizes = [8, 1], strides = [1, 1]} : vector<8x16xf32> to vector<8x1xf32>
    %1874 = vector.extract_strided_slice %1808 {offsets = [9, 0], sizes = [1, 8], strides = [1, 1]} : vector<16x8xf32> to vector<1x8xf32>
    %1875 = vector.broadcast %1873 : vector<8x1xf32> to vector<8x8xf32>
    %1876 = vector.broadcast %1874 : vector<1x8xf32> to vector<8x8xf32>
    %1877 = arith.subf %1875, %1876 : vector<8x8xf32>
    %1878 = math.absf %1877 : vector<8x8xf32>
    %1879 = arith.addf %1872, %1878 : vector<8x8xf32>
    %1880 = vector.extract_strided_slice %1807 {offsets = [0, 10], sizes = [8, 1], strides = [1, 1]} : vector<8x16xf32> to vector<8x1xf32>
    %1881 = vector.extract_strided_slice %1808 {offsets = [10, 0], sizes = [1, 8], strides = [1, 1]} : vector<16x8xf32> to vector<1x8xf32>
    %1882 = vector.broadcast %1880 : vector<8x1xf32> to vector<8x8xf32>
    %1883 = vector.broadcast %1881 : vector<1x8xf32> to vector<8x8xf32>
    %1884 = arith.subf %1882, %1883 : vector<8x8xf32>
    %1885 = math.absf %1884 : vector<8x8xf32>
    %1886 = arith.addf %1879, %1885 : vector<8x8xf32>
    %1887 = vector.extract_strided_slice %1807 {offsets = [0, 11], sizes = [8, 1], strides = [1, 1]} : vector<8x16xf32> to vector<8x1xf32>
    %1888 = vector.extract_strided_slice %1808 {offsets = [11, 0], sizes = [1, 8], strides = [1, 1]} : vector<16x8xf32> to vector<1x8xf32>
    %1889 = vector.broadcast %1887 : vector<8x1xf32> to vector<8x8xf32>
    %1890 = vector.broadcast %1888 : vector<1x8xf32> to vector<8x8xf32>
    %1891 = arith.subf %1889, %1890 : vector<8x8xf32>
    %1892 = math.absf %1891 : vector<8x8xf32>
    %1893 = arith.addf %1886, %1892 : vector<8x8xf32>
    %1894 = vector.extract_strided_slice %1807 {offsets = [0, 12], sizes = [8, 1], strides = [1, 1]} : vector<8x16xf32> to vector<8x1xf32>
    %1895 = vector.extract_strided_slice %1808 {offsets = [12, 0], sizes = [1, 8], strides = [1, 1]} : vector<16x8xf32> to vector<1x8xf32>
    %1896 = vector.broadcast %1894 : vector<8x1xf32> to vector<8x8xf32>
    %1897 = vector.broadcast %1895 : vector<1x8xf32> to vector<8x8xf32>
    %1898 = arith.subf %1896, %1897 : vector<8x8xf32>
    %1899 = math.absf %1898 : vector<8x8xf32>
    %1900 = arith.addf %1893, %1899 : vector<8x8xf32>
    %1901 = vector.extract_strided_slice %1807 {offsets = [0, 13], sizes = [8, 1], strides = [1, 1]} : vector<8x16xf32> to vector<8x1xf32>
    %1902 = vector.extract_strided_slice %1808 {offsets = [13, 0], sizes = [1, 8], strides = [1, 1]} : vector<16x8xf32> to vector<1x8xf32>
    %1903 = vector.broadcast %1901 : vector<8x1xf32> to vector<8x8xf32>
    %1904 = vector.broadcast %1902 : vector<1x8xf32> to vector<8x8xf32>
    %1905 = arith.subf %1903, %1904 : vector<8x8xf32>
    %1906 = math.absf %1905 : vector<8x8xf32>
    %1907 = arith.addf %1900, %1906 : vector<8x8xf32>
    %1908 = vector.extract_strided_slice %1807 {offsets = [0, 14], sizes = [8, 1], strides = [1, 1]} : vector<8x16xf32> to vector<8x1xf32>
    %1909 = vector.extract_strided_slice %1808 {offsets = [14, 0], sizes = [1, 8], strides = [1, 1]} : vector<16x8xf32> to vector<1x8xf32>
    %1910 = vector.broadcast %1908 : vector<8x1xf32> to vector<8x8xf32>
    %1911 = vector.broadcast %1909 : vector<1x8xf32> to vector<8x8xf32>
    %1912 = arith.subf %1910, %1911 : vector<8x8xf32>
    %1913 = math.absf %1912 : vector<8x8xf32>
    %1914 = arith.addf %1907, %1913 : vector<8x8xf32>
    %1915 = vector.extract_strided_slice %1807 {offsets = [0, 15], sizes = [8, 1], strides = [1, 1]} : vector<8x16xf32> to vector<8x1xf32>
    %1916 = vector.extract_strided_slice %1808 {offsets = [15, 0], sizes = [1, 8], strides = [1, 1]} : vector<16x8xf32> to vector<1x8xf32>
    %1917 = vector.broadcast %1915 : vector<8x1xf32> to vector<8x8xf32>
    %1918 = vector.broadcast %1916 : vector<1x8xf32> to vector<8x8xf32>
    %1919 = arith.subf %1917, %1918 : vector<8x8xf32>
    %1920 = math.absf %1919 : vector<8x8xf32>
    %1921 = arith.addf %1914, %1920 : vector<8x8xf32>
    %cst_52 = arith.constant 0.000000e+00 : f32
    %1922 = vector.broadcast %cst_52 : f32 to vector<8x8xf32>
    %1923 = arith.subf %1922, %1921 : vector<8x8xf32>
    %1924 = math.exp %1923 : vector<8x8xf32>
    %cst_53 = arith.constant dense<0.000000e+00> : vector<8xf32>
    %1925 = vector.multi_reduction <add>, %1924, %cst_53 [1] : vector<8x8xf32> to vector<8xf32>
    %1926 = vector.shape_cast %1925 : vector<8xf32> to vector<8x1xf32>
    %c0_54 = arith.constant 0 : index
    %c0_55 = arith.constant 0 : index
    %1927 = vector.load %arg7[%c0_54, %c0_55] : memref<8x16xf32, #tpu.memory_space<vmem>>, vector<8x16xf32>
    %1928 = tpu.concatenate %126, %246, %366, %486, %606, %726, %846, %966, %1086, %1206, %1326, %1446, %1566, %1686, %1806, %1926 in 1 : vector<8x1xf32>, vector<8x1xf32>, vector<8x1xf32>, vector<8x1xf32>, vector<8x1xf32>, vector<8x1xf32>, vector<8x1xf32>, vector<8x1xf32>, vector<8x1xf32>, vector<8x1xf32>, vector<8x1xf32>, vector<8x1xf32>, vector<8x1xf32>, vector<8x1xf32>, vector<8x1xf32>, vector<8x1xf32> -> vector<8x16xf32>
    %1929 = arith.addf %1927, %1928 : vector<8x16xf32>
    %c0_56 = arith.constant 0 : index
    %c0_57 = arith.constant 0 : index
    %1930 = vector.load %arg7[%c0_56, %c0_57] : memref<8x16xf32, #tpu.memory_space<vmem>>, vector<8x16xf32>
    tpu.vector_store %arg7[%c0_56, %c0_57], %1929 {strides = array<i32>} : memref<8x16xf32, #tpu.memory_space<vmem>>, vector<8x16xf32>,
    %c0_i32_58 = arith.constant 0 : i32
    %1931 = arith.cmpi eq, %arg1, %c0_i32_58 : i32
    %1932 = arith.extui %1931 : i1 to i32
    %c0_i32_59 = arith.constant 0 : i32
    %1933 = arith.cmpi ne, %1932, %c0_i32_59 : i32
    scf.if %1933 {
      %c0_60 = arith.constant 0 : index
      %c0_61 = arith.constant 0 : index
      %1934 = vector.load %arg7[%c0_60, %c0_61] : memref<8x16xf32, #tpu.memory_space<vmem>>, vector<8x16xf32>
      %cst_62 = arith.constant 1.000000e+00 : f32
      %1935 = vector.broadcast %cst_62 : f32 to vector<8x16xf32>
      %1936 = arith.subf %1934, %1935 : vector<8x16xf32>
      %c0_63 = arith.constant 0 : index
      %c0_64 = arith.constant 0 : index
      %1937 = vector.load %arg6[%c0_63, %c0_64] : memref<8x16xf32, #tpu.memory_space<vmem>>, vector<8x16xf32>
      tpu.vector_store %arg6[%c0_63, %c0_64], %1936 {strides = array<i32>} : memref<8x16xf32, #tpu.memory_space<vmem>>, vector<8x16xf32>,
    } else {
    }
    return
  }
  func.func @transform_0(%arg0: i32, %arg1: i32) -> (i32, i32) {
    %c0_i32 = arith.constant 0 : i32
    %c0_i32_0 = arith.constant 0 : i32
    return %arg0, %c0_i32 : i32, i32
  }
  func.func @transform_1(%arg0: i32, %arg1: i32) -> (i32, i32) {
    %c0_i32 = arith.constant 0 : i32
    %c0_i32_0 = arith.constant 0 : i32
    %c0_i32_1 = arith.constant 0 : i32
    return %c0_i32, %c0_i32_0 : i32, i32
  }
  func.func @transform_2(%arg0: i32, %arg1: i32) -> (i32, i32) {
    %c0_i32 = arith.constant 0 : i32
    %c0_i32_0 = arith.constant 0 : i32
    return %c0_i32, %arg1 : i32, i32
  }
  func.func @transform_3(%arg0: i32, %arg1: i32) -> (i32, i32) {
    %c0_i32 = arith.constant 0 : i32
    %c0_i32_0 = arith.constant 0 : i32
    %c0_i32_1 = arith.constant 0 : i32
    return %c0_i32, %c0_i32_0 : i32, i32
  }
  func.func @transform_4(%arg0: i32, %arg1: i32) -> (i32, i32) {
    %c0_i32 = arith.constant 0 : i32
    %c0_i32_0 = arith.constant 0 : i32
    return %arg0, %c0_i32 : i32, i32
  }
}

</mosaic_0001>

<llo_original>
// kernel: tpu_custom_call.1
$region0: #{tpu_custom_call.1}
  #allocation0 [shape = 'u32[]', space=smem, size = 0x4, offset = 0x4, fixed_abs, tag = 'smem constant byte address 0x4 - core index']
  #allocation1 [shape = 'u32[144,128]{1,0:T(1,128)}', space=vmem, size = 0x12000, scoped, tag = 'internal scratch']
  #allocation2 [shape = 'f32[8,16]{1,0:T(8,128)}', space=vmem, size = 0x1000, scoped, tag = 'scratch operand']
  #allocation3 [shape = 'f32[8,256]{1,0:T(8,128)}', space=vmem, size = 0x2000, scoped, tag = 'scratch operand']
  %s0 = inlined_call_operand.vmem [shape: f32[8,32], index: 0, kind: input, shape index: {}]
  %s1 = inlined_call_operand.vmem [shape: f32[32,256], index: 1, kind: input, shape index: {}]
  %s2 = inlined_call_operand.vmem [shape: f32[32,8], index: 2, kind: input, shape index: {}]
  %s3 = inlined_call_operand.vmem [shape: f32[256,32], index: 3, kind: input, shape index: {}]
  %s4 = inlined_call_operand.hbm [shape: f32[8,16], index: 4, kind: output, shape index: {}]
  %s5 = sld [smem:[#allocation0]]
  $region34: #{tpu_custom_call.1} parent=0
    _
  %s7 = ssub.s32 1, %s5
  %s8 = scalar_select 0, %s7, %s5
  $region1: #{tpu_custom_call.1} parent=0
    #allocation4 [shape = 'u8[4096]{0}', space=vmem, size = 0x1000, scoped, tag = 'output window, operand 0, single buffered']
    #allocation5 [shape = 's32[1]{0}', space=sflag, size = 0x4, scoped, tag = 'scoped memory for tpu_custom_call.1']
    %9 = vsyncpa [#allocation5], 0
    // Predicated region
    $region2: #{tpu_custom_call.1} parent=1 // pred_check
      _
    $region3: #{tpu_custom_call.1} parent=1 // pred_check_branch
      %11 = sbr.rel (0) target = $region5
    $region4: #{tpu_custom_call.1} parent=1 // pred_region
      _
    $region5: #{tpu_custom_call.1} parent=1 // pred_fallthru
      _
    // Predicated region
    $region6: #{tpu_custom_call.1} parent=1 // pred_check
      _
    $region7: #{tpu_custom_call.1} parent=1 // pred_check_branch
      %13 = sbr.rel (0) target = $region9
    $region8: #{tpu_custom_call.1} parent=1 // pred_region
      _
    $region9: #{tpu_custom_call.1} parent=1 // pred_fallthru
      _
    // Predicated region
    $region10: #{tpu_custom_call.1} parent=1 // pred_check
      _
    $region11: #{tpu_custom_call.1} parent=1 // pred_check_branch
      %15 = sbr.rel (0) target = $region13
    $region12: #{tpu_custom_call.1} parent=1 // pred_region
      _
    $region13: #{tpu_custom_call.1} parent=1 // pred_fallthru
      _
    // Predicated region
    $region14: #{tpu_custom_call.1} parent=1 // pred_check
      _
    $region15: #{tpu_custom_call.1} parent=1 // pred_check_branch
      %17 = sbr.rel (0) target = $region17
    $region16: #{tpu_custom_call.1} parent=1 // pred_region
      _
    $region17: #{tpu_custom_call.1} parent=1 // pred_fallthru
      _
    %p18 = scmp.eq.s32.totalorder 0, 0
    // Predicated region
    $region18: #{tpu_custom_call.1} parent=1 // pred_check
      %p19 = pneg %p18
    $region19: #{tpu_custom_call.1} parent=1 // pred_check_branch
      %21 = sbr.rel (%p19) target = $region21
    $region20: #{tpu_custom_call.1} parent=1 // pred_region
      %vm22 = vcmask 130048
      %23 = vst.msk [vmem:[#allocation2] sm:$0xff] %vm22, 0.0
      %v24 = vld [vmem:[%s0] sm:$0xff]
      %v25 = vld [vmem:[%s1] sm:$0xff]
      %v26 = vld [vmem:[%s1 + $0x8] sm:$0xff]
      %v27 = vld [vmem:[%s1 + $0x10] sm:$0xff]
      %v28 = vld [vmem:[%s1 + $0x18] sm:$0xff]
      %v29 = vld [vmem:[%s1 + $0x20] sm:$0xff]
      %v30 = vld [vmem:[%s1 + $0x28] sm:$0xff]
      %v31 = vld [vmem:[%s1 + $0x30] sm:$0xff]
      %v32 = vld [vmem:[%s1 + $0x38] sm:$0xff]
      %vm33 = vcmask 261120
      %v35 = vsel %vm33, %v24, 0
      %37 = vmatprep.subr.mxu0 0.0
      %38 = vmatpush1.msra.mxu0 0.0
      %39 = vmatprep.subr.mxu0 0.0
      %40 = vmatpush1.msra.mxu0 0.0
      %41 = vmatprep.subr.mxu0 0.0
      %42 = vmatpush1.msra.mxu0 0.0
      %43 = vmatprep.subr.mxu0 0.0
      %44 = vmatpush1.msra.mxu0 0.0
      %45 = vmatprep.subr.mxu0 0.0
      %46 = vmatpush1.msra.mxu0 0.0
      %47 = vmatprep.subr.mxu0 0.0
      %48 = vmatpush1.msra.mxu0 0.0
      %49 = vmatprep.subr.mxu0 0.0
      %50 = vmatpush1.msra.mxu0 0.0
      %51 = vmatprep.subr.mxu0 0.0
      %52 = vmatpush1.msra.mxu0 0.0
      %53 = vmatprep.subr.mxu0 0.0
      %54 = vmatpush1.msra.mxu0 0.0
      %55 = vmatprep.subr.mxu0 0.0
      %56 = vmatpush1.msra.mxu0 0.0
      %57 = vmatprep.subr.mxu0 0.0
      %58 = vmatpush1.msra.mxu0 0.0
      %59 = vmatprep.subr.mxu0 0.0
      %60 = vmatpush1.msra.mxu0 0.0
      %61 = vmatprep.subr.mxu0 %v32
      %62 = vmatpush1.msra.mxu0 %v31
      %63 = vmatprep.subr.mxu0 %v30
      %64 = vmatpush1.msra.mxu0 %v29
      %65 = vmatprep.subr.mxu0 %v28
      %66 = vmatpush1.msra.mxu0 %v27
      %67 = vmatprep.subr.mxu0 %v26
      %68 = vmatpush1.msra.mxu0 %v25
      %69 = vmatprep.subr.mxu0 0.0
      %70 = vmatpush2.msra.mxu0 0.0
      %71 = vmatprep.subr.mxu0 0.0
      %72 = vmatpush2.msra.mxu0 0.0
      %73 = vmatprep.subr.mxu0 0.0
      %74 = vmatpush2.msra.mxu0 0.0
      %75 = vmatprep.subr.mxu0 0.0
      %76 = vmatpush2.msra.mxu0 0.0
      %77 = vmatprep.subr.mxu0 0.0
      %78 = vmatpush2.msra.mxu0 0.0
      %79 = vmatprep.subr.mxu0 0.0
      %80 = vmatpush2.msra.mxu0 0.0
      %81 = vmatprep.subr.mxu0 0.0
      %82 = vmatpush2.msra.mxu0 0.0
      %83 = vmatprep.subr.mxu0 0.0
      %84 = vmatpush2.msra.mxu0 0.0
      %85 = vmatprep.subr.mxu0 0.0
      %86 = vmatpush2.msra.mxu0 0.0
      %87 = vmatprep.subr.mxu0 0.0
      %88 = vmatpush2.msra.mxu0 0.0
      %89 = vmatprep.subr.mxu0 0.0
      %90 = vmatpush2.msra.mxu0 0.0
      %91 = vmatprep.subr.mxu0 0.0
      %92 = vmatpush2.msra.mxu0 0.0
      %93 = vmatprep.subr.mxu0 0.0
      %94 = vmatpush2.msra.mxu0 0.0
      %95 = vmatprep.subr.mxu0 0.0
      %96 = vmatpush2.msra.mxu0 0.0
      %97 = vmatprep.subr.mxu0 0.0
      %98 = vmatpush2.msra.mxu0 0.0
      %99 = vmatprep.subr.mxu0 0.0
      %100 = vmatpush2.msra.mxu0 0.0
      %101 = vmatprep.mubr.f32.mxu0 0.0
      %102 = vmatmul.mubr.f32.gmra.mxu0 %v35
      %v103 = vpop.f32.mrf.mxu0
      %v104 = vadd.f32 0.0, %v103
      %v105 = vpop.f32.mrf.mxu0
      %v106 = vadd.f32 0.0, %v105
      %107 = vdwg.mxu0
      %108 = vst [vmem:[#allocation3] sm:$0xff] %v104
      %109 = vst [vmem:[#allocation3 + $0x8] sm:$0xff] %v106
    $region21: #{tpu_custom_call.1} parent=1 // pred_fallthru
      _
    %v110 = vld [vmem:[%s3] sm:$0xff]
    %v111 = vld [vmem:[%s3 + $0x8] sm:$0xff]
    %v112 = vld [vmem:[%s3 + $0x10] sm:$0xff]
    %v113 = vld [vmem:[%s3 + $0x18] sm:$0xff]
    %v114 = vld [vmem:[%s3 + $0x20] sm:$0xff]
    %v115 = vld [vmem:[%s3 + $0x28] sm:$0xff]
    %v116 = vld [vmem:[%s3 + $0x30] sm:$0xff]
    %v117 = vld [vmem:[%s3 + $0x38] sm:$0xff]
    %v118 = vld [vmem:[%s3 + $0x40] sm:$0xff]
    %v119 = vld [vmem:[%s3 + $0x48] sm:$0xff]
    %v120 = vld [vmem:[%s3 + $0x50] sm:$0xff]
    %v121 = vld [vmem:[%s3 + $0x58] sm:$0xff]
    %v122 = vld [vmem:[%s3 + $0x60] sm:$0xff]
    %v123 = vld [vmem:[%s3 + $0x68] sm:$0xff]
    %v124 = vld [vmem:[%s3 + $0x70] sm:$0xff]
    %v125 = vld [vmem:[%s3 + $0x78] sm:$0xff]
    %v126 = vld [vmem:[%s3 + $0x80] sm:$0xff]
    %v127 = vld [vmem:[%s3 + $0x88] sm:$0xff]
    %v128 = vld [vmem:[%s3 + $0x90] sm:$0xff]
    %v129 = vld [vmem:[%s3 + $0x98] sm:$0xff]
    %v130 = vld [vmem:[%s3 + $0xa0] sm:$0xff]
    %v131 = vld [vmem:[%s3 + $0xa8] sm:$0xff]
    %v132 = vld [vmem:[%s3 + $0xb0] sm:$0xff]
    %v133 = vld [vmem:[%s3 + $0xb8] sm:$0xff]
    %v134 = vld [vmem:[%s3 + $0xc0] sm:$0xff]
    %v135 = vld [vmem:[%s3 + $0xc8] sm:$0xff]
    %v136 = vld [vmem:[%s3 + $0xd0] sm:$0xff]
    %v137 = vld [vmem:[%s3 + $0xd8] sm:$0xff]
    %v138 = vld [vmem:[%s3 + $0xe0] sm:$0xff]
    %v139 = vld [vmem:[%s3 + $0xe8] sm:$0xff]
    %v140 = vld [vmem:[%s3 + $0xf0] sm:$0xff]
    %v141 = vld [vmem:[%s3 + $0xf8] sm:$0xff]
    %v142 = vld [vmem:[%s2] sm:$0xff]
    %v143 = vld [vmem:[%s2 + $0x8] sm:$0xff]
    %v144 = vld [vmem:[%s2 + $0x10] sm:$0xff]
    %v145 = vld [vmem:[%s2 + $0x18] sm:$0xff]
    %vm146 = vcmask 261120
    %v148 = vsel %vm146, %v110, 0
    %v151 = vsel %vm146, %v111, 0
    %v154 = vsel %vm146, %v112, 0
    %v157 = vsel %vm146, %v113, 0
    %v160 = vsel %vm146, %v114, 0
    %v163 = vsel %vm146, %v115, 0
    %v166 = vsel %vm146, %v116, 0
    %v169 = vsel %vm146, %v117, 0
    %v172 = vsel %vm146, %v118, 0
    %v175 = vsel %vm146, %v119, 0
    %v178 = vsel %vm146, %v120, 0
    %v181 = vsel %vm146, %v121, 0
    %v184 = vsel %vm146, %v122, 0
    %v187 = vsel %vm146, %v123, 0
    %v190 = vsel %vm146, %v124, 0
    %v193 = vsel %vm146, %v125, 0
    %v196 = vsel %vm146, %v126, 0
    %v199 = vsel %vm146, %v127, 0
    %v202 = vsel %vm146, %v128, 0
    %v205 = vsel %vm146, %v129, 0
    %v208 = vsel %vm146, %v130, 0
    %v211 = vsel %vm146, %v131, 0
    %v214 = vsel %vm146, %v132, 0
    %v217 = vsel %vm146, %v133, 0
    %v220 = vsel %vm146, %v134, 0
    %v223 = vsel %vm146, %v135, 0
    %v226 = vsel %vm146, %v136, 0
    %v229 = vsel %vm146, %v137, 0
    %v232 = vsel %vm146, %v138, 0
    %v235 = vsel %vm146, %v139, 0
    %v238 = vsel %vm146, %v140, 0
    %v241 = vsel %vm146, %v141, 0
    %243 = vmatprep.subr.mxu0 0.0
    %244 = vmatpush1.msra.mxu0 0.0
    %245 = vmatprep.subr.mxu0 0.0
    %246 = vmatpush1.msra.mxu0 0.0
    %247 = vmatprep.subr.mxu0 0.0
    %248 = vmatpush1.msra.mxu0 0.0
    %249 = vmatprep.subr.mxu0 0.0
    %250 = vmatpush1.msra.mxu0 0.0
    %251 = vmatprep.subr.mxu0 0.0
    %252 = vmatpush1.msra.mxu0 0.0
    %253 = vmatprep.subr.mxu0 0.0
    %254 = vmatpush1.msra.mxu0 0.0
    %255 = vmatprep.subr.mxu0 0.0
    %256 = vmatpush1.msra.mxu0 0.0
    %257 = vmatprep.subr.mxu0 0.0
    %258 = vmatpush1.msra.mxu0 0.0
    %259 = vmatprep.subr.mxu0 0.0
    %260 = vmatpush1.msra.mxu0 0.0
    %261 = vmatprep.subr.mxu0 0.0
    %262 = vmatpush1.msra.mxu0 0.0
    %263 = vmatprep.subr.mxu0 0.0
    %264 = vmatpush1.msra.mxu0 0.0
    %265 = vmatprep.subr.mxu0 0.0
    %266 = vmatpush1.msra.mxu0 0.0
    %267 = vmatprep.subr.mxu0 0.0
    %268 = vmatpush1.msra.mxu0 %v145
    %269 = vmatprep.subr.mxu0 0.0
    %270 = vmatpush1.msra.mxu0 %v144
    %271 = vmatprep.subr.mxu0 0.0
    %272 = vmatpush1.msra.mxu0 %v143
    %273 = vmatprep.subr.mxu0 0.0
    %274 = vmatpush1.msra.mxu0 %v142
    %275 = vmatprep.subr.mxu0 0.0
    %276 = vmatpush2.msra.mxu0 0.0
    %277 = vmatprep.subr.mxu0 0.0
    %278 = vmatpush2.msra.mxu0 0.0
    %279 = vmatprep.subr.mxu0 0.0
    %280 = vmatpush2.msra.mxu0 0.0
    %281 = vmatprep.subr.mxu0 0.0
    %282 = vmatpush2.msra.mxu0 0.0
    %283 = vmatprep.subr.mxu0 0.0
    %284 = vmatpush2.msra.mxu0 0.0
    %285 = vmatprep.subr.mxu0 0.0
    %286 = vmatpush2.msra.mxu0 0.0
    %287 = vmatprep.subr.mxu0 0.0
    %288 = vmatpush2.msra.mxu0 0.0
    %289 = vmatprep.subr.mxu0 0.0
    %290 = vmatpush2.msra.mxu0 0.0
    %291 = vmatprep.subr.mxu0 0.0
    %292 = vmatpush2.msra.mxu0 0.0
    %293 = vmatprep.subr.mxu0 0.0
    %294 = vmatpush2.msra.mxu0 0.0
    %295 = vmatprep.subr.mxu0 0.0
    %296 = vmatpush2.msra.mxu0 0.0
    %297 = vmatprep.subr.mxu0 0.0
    %298 = vmatpush2.msra.mxu0 0.0
    %299 = vmatprep.subr.mxu0 0.0
    %300 = vmatpush2.msra.mxu0 0.0
    %301 = vmatprep.subr.mxu0 0.0
    %302 = vmatpush2.msra.mxu0 0.0
    %303 = vmatprep.subr.mxu0 0.0
    %304 = vmatpush2.msra.mxu0 0.0
    %305 = vmatprep.subr.mxu0 0.0
    %306 = vmatpush2.msra.mxu0 0.0
    %307 = vmatprep.mubr.f32.mxu0 0.0
    %308 = vmatmul.mubr.f32.gmra.mxu0 %v148
    %v309 = vpop.f32.mrf.mxu0
    %v310 = vadd.f32 0.0, %v309
    %v311 = vpop.f32.mrf.mxu0
    %312 = vmatprep.mubr.f32.mxu0 0.0
    %313 = vmatmul.mubr.f32.gmra.mxu0 %v151
    %v314 = vpop.f32.mrf.mxu0
    %v315 = vadd.f32 0.0, %v314
    %v316 = vpop.f32.mrf.mxu0
    %317 = vmatprep.mubr.f32.mxu0 0.0
    %318 = vmatmul.mubr.f32.gmra.mxu0 %v154
    %v319 = vpop.f32.mrf.mxu0
    %v320 = vadd.f32 0.0, %v319
    %v321 = vpop.f32.mrf.mxu0
    %322 = vmatprep.mubr.f32.mxu0 0.0
    %323 = vmatmul.mubr.f32.gmra.mxu0 %v157
    %v324 = vpop.f32.mrf.mxu0
    %v325 = vadd.f32 0.0, %v324
    %v326 = vpop.f32.mrf.mxu0
    %327 = vmatprep.mubr.f32.mxu0 0.0
    %328 = vmatmul.mubr.f32.gmra.mxu0 %v160
    %v329 = vpop.f32.mrf.mxu0
    %v330 = vadd.f32 0.0, %v329
    %v331 = vpop.f32.mrf.mxu0
    %332 = vmatprep.mubr.f32.mxu0 0.0
    %333 = vmatmul.mubr.f32.gmra.mxu0 %v163
    %v334 = vpop.f32.mrf.mxu0
    %v335 = vadd.f32 0.0, %v334
    %v336 = vpop.f32.mrf.mxu0
    %337 = vmatprep.mubr.f32.mxu0 0.0
    %338 = vmatmul.mubr.f32.gmra.mxu0 %v166
    %v339 = vpop.f32.mrf.mxu0
    %v340 = vadd.f32 0.0, %v339
    %v341 = vpop.f32.mrf.mxu0
    %342 = vmatprep.mubr.f32.mxu0 0.0
    %343 = vmatmul.mubr.f32.gmra.mxu0 %v169
    %v344 = vpop.f32.mrf.mxu0
    %v345 = vadd.f32 0.0, %v344
    %v346 = vpop.f32.mrf.mxu0
    %347 = vmatprep.mubr.f32.mxu0 0.0
    %348 = vmatmul.mubr.f32.gmra.mxu0 %v172
    %v349 = vpop.f32.mrf.mxu0
    %v350 = vadd.f32 0.0, %v349
    %v351 = vpop.f32.mrf.mxu0
    %352 = vmatprep.mubr.f32.mxu0 0.0
    %353 = vmatmul.mubr.f32.gmra.mxu0 %v175
    %v354 = vpop.f32.mrf.mxu0
    %v355 = vadd.f32 0.0, %v354
    %v356 = vpop.f32.mrf.mxu0
    %357 = vmatprep.mubr.f32.mxu0 0.0
    %358 = vmatmul.mubr.f32.gmra.mxu0 %v178
    %v359 = vpop.f32.mrf.mxu0
    %v360 = vadd.f32 0.0, %v359
    %v361 = vpop.f32.mrf.mxu0
    %362 = vmatprep.mubr.f32.mxu0 0.0
    %363 = vmatmul.mubr.f32.gmra.mxu0 %v181
    %v364 = vpop.f32.mrf.mxu0
    %v365 = vadd.f32 0.0, %v364
    %v366 = vpop.f32.mrf.mxu0
    %367 = vmatprep.mubr.f32.mxu0 0.0
    %368 = vmatmul.mubr.f32.gmra.mxu0 %v184
    %v369 = vpop.f32.mrf.mxu0
    %v370 = vadd.f32 0.0, %v369
    %v371 = vpop.f32.mrf.mxu0
    %372 = vmatprep.mubr.f32.mxu0 0.0
    %373 = vmatmul.mubr.f32.gmra.mxu0 %v187
    %v374 = vpop.f32.mrf.mxu0
    %v375 = vadd.f32 0.0, %v374
    %v376 = vpop.f32.mrf.mxu0
    %377 = vmatprep.mubr.f32.mxu0 0.0
    %378 = vmatmul.mubr.f32.gmra.mxu0 %v190
    %v379 = vpop.f32.mrf.mxu0
    %v380 = vadd.f32 0.0, %v379
    %v381 = vpop.f32.mrf.mxu0
    %382 = vmatprep.mubr.f32.mxu0 0.0
    %383 = vmatmul.mubr.f32.gmra.mxu0 %v193
    %v384 = vpop.f32.mrf.mxu0
    %v385 = vadd.f32 0.0, %v384
    %v386 = vpop.f32.mrf.mxu0
    %387 = vmatprep.mubr.f32.mxu0 0.0
    %388 = vmatmul.mubr.f32.gmra.mxu0 %v196
    %v389 = vpop.f32.mrf.mxu0
    %v390 = vadd.f32 0.0, %v389
    %v391 = vpop.f32.mrf.mxu0
    %392 = vmatprep.mubr.f32.mxu0 0.0
    %393 = vmatmul.mubr.f32.gmra.mxu0 %v199
    %v394 = vpop.f32.mrf.mxu0
    %v395 = vadd.f32 0.0, %v394
    %v396 = vpop.f32.mrf.mxu0
    %397 = vmatprep.mubr.f32.mxu0 0.0
    %398 = vmatmul.mubr.f32.gmra.mxu0 %v202
    %v399 = vpop.f32.mrf.mxu0
    %v400 = vadd.f32 0.0, %v399
    %v401 = vpop.f32.mrf.mxu0
    %402 = vmatprep.mubr.f32.mxu0 0.0
    %403 = vmatmul.mubr.f32.gmra.mxu0 %v205
    %v404 = vpop.f32.mrf.mxu0
    %v405 = vadd.f32 0.0, %v404
    %v406 = vpop.f32.mrf.mxu0
    %407 = vmatprep.mubr.f32.mxu0 0.0
    %408 = vmatmul.mubr.f32.gmra.mxu0 %v208
    %v409 = vpop.f32.mrf.mxu0
    %v410 = vadd.f32 0.0, %v409
    %v411 = vpop.f32.mrf.mxu0
    %412 = vmatprep.mubr.f32.mxu0 0.0
    %413 = vmatmul.mubr.f32.gmra.mxu0 %v211
    %v414 = vpop.f32.mrf.mxu0
    %v415 = vadd.f32 0.0, %v414
    %v416 = vpop.f32.mrf.mxu0
    %417 = vmatprep.mubr.f32.mxu0 0.0
    %418 = vmatmul.mubr.f32.gmra.mxu0 %v214
    %v419 = vpop.f32.mrf.mxu0
    %v420 = vadd.f32 0.0, %v419
    %v421 = vpop.f32.mrf.mxu0
    %422 = vmatprep.mubr.f32.mxu0 0.0
    %423 = vmatmul.mubr.f32.gmra.mxu0 %v217
    %v424 = vpop.f32.mrf.mxu0
    %v425 = vadd.f32 0.0, %v424
    %v426 = vpop.f32.mrf.mxu0
    %427 = vmatprep.mubr.f32.mxu0 0.0
    %428 = vmatmul.mubr.f32.gmra.mxu0 %v220
    %v429 = vpop.f32.mrf.mxu0
    %v430 = vadd.f32 0.0, %v429
    %v431 = vpop.f32.mrf.mxu0
    %432 = vmatprep.mubr.f32.mxu0 0.0
    %433 = vmatmul.mubr.f32.gmra.mxu0 %v223
    %v434 = vpop.f32.mrf.mxu0
    %v435 = vadd.f32 0.0, %v434
    %v436 = vpop.f32.mrf.mxu0
    %437 = vmatprep.mubr.f32.mxu0 0.0
    %438 = vmatmul.mubr.f32.gmra.mxu0 %v226
    %v439 = vpop.f32.mrf.mxu0
    %v440 = vadd.f32 0.0, %v439
    %v441 = vpop.f32.mrf.mxu0
    %442 = vmatprep.mubr.f32.mxu0 0.0
    %443 = vmatmul.mubr.f32.gmra.mxu0 %v229
    %v444 = vpop.f32.mrf.mxu0
    %v445 = vadd.f32 0.0, %v444
    %v446 = vpop.f32.mrf.mxu0
    %447 = vmatprep.mubr.f32.mxu0 0.0
    %448 = vmatmul.mubr.f32.gmra.mxu0 %v232
    %v449 = vpop.f32.mrf.mxu0
    %v450 = vadd.f32 0.0, %v449
    %v451 = vpop.f32.mrf.mxu0
    %452 = vmatprep.mubr.f32.mxu0 0.0
    %453 = vmatmul.mubr.f32.gmra.mxu0 %v235
    %v454 = vpop.f32.mrf.mxu0
    %v455 = vadd.f32 0.0, %v454
    %v456 = vpop.f32.mrf.mxu0
    %457 = vmatprep.mubr.f32.mxu0 0.0
    %458 = vmatmul.mubr.f32.gmra.mxu0 %v238
    %v459 = vpop.f32.mrf.mxu0
    %v460 = vadd.f32 0.0, %v459
    %v461 = vpop.f32.mrf.mxu0
    %462 = vmatprep.mubr.f32.mxu0 0.0
    %463 = vmatmul.mubr.f32.gmra.mxu0 %v241
    %v464 = vpop.f32.mrf.mxu0
    %v465 = vadd.f32 0.0, %v464
    %v466 = vpop.f32.mrf.mxu0
    %467 = vdwg.mxu0
    %v468 = vld [vmem:[#allocation3] sm:$0xff]
    %v469 = vld [vmem:[#allocation3 + $0x8] sm:$0xff]
    %471 = vset.pattern.permute.xlu0 0
    %472 = vperm.xlu0 %471, %v468
    %v473 = vpop.permute.xlu0 %472
    %v475 = vlaneseq
    %v476 = vshrl.u32 %v475, 7
    %v477 = vsub.s32 0, %v476
    %v478 = vrot.slane %v310, %v477
    %v479 = vsub.f32 %v473, %v478
    %v480 = vand.u32 2147483647, %v479
    %v481 = vadd.f32 %v480, 0.0
    %482 = vset.pattern.permute.xlu0 1
    %483 = vperm.xlu0 %482, %v468
    %v484 = vpop.permute.xlu0 %483
    %v486 = vlaneseq
    %v487 = vshrl.u32 %v486, 7
    %v488 = vsub.s32 1, %v487
    %v489 = vrot.slane %v310, %v488
    %v490 = vsub.f32 %v484, %v489
    %v491 = vand.u32 2147483647, %v490
    %v492 = vadd.f32 %v481, %v491
    %493 = vset.pattern.permute.xlu0 2
    %494 = vperm.xlu0 %493, %v468
    %v495 = vpop.permute.xlu0 %494
    %v497 = vlaneseq
    %v498 = vshrl.u32 %v497, 7
    %v499 = vsub.s32 2, %v498
    %v500 = vrot.slane %v310, %v499
    %v501 = vsub.f32 %v495, %v500
    %v502 = vand.u32 2147483647, %v501
    %v503 = vadd.f32 %v492, %v502
    %504 = vset.pattern.permute.xlu0 3
    %505 = vperm.xlu0 %504, %v468
    %v506 = vpop.permute.xlu0 %505
    %v508 = vlaneseq
    %v509 = vshrl.u32 %v508, 7
    %v510 = vsub.s32 3, %v509
    %v511 = vrot.slane %v310, %v510
    %v512 = vsub.f32 %v506, %v511
    %v513 = vand.u32 2147483647, %v512
    %v514 = vadd.f32 %v503, %v513
    %515 = vset.pattern.permute.xlu0 4
    %516 = vperm.xlu0 %515, %v468
    %v517 = vpop.permute.xlu0 %516
    %v519 = vlaneseq
    %v520 = vshrl.u32 %v519, 7
    %v521 = vsub.s32 4, %v520
    %v522 = vrot.slane %v310, %v521
    %v523 = vsub.f32 %v517, %v522
    %v524 = vand.u32 2147483647, %v523
    %v525 = vadd.f32 %v514, %v524
    %526 = vset.pattern.permute.xlu0 5
    %527 = vperm.xlu0 %526, %v468
    %v528 = vpop.permute.xlu0 %527
    %v530 = vlaneseq
    %v531 = vshrl.u32 %v530, 7
    %v532 = vsub.s32 5, %v531
    %v533 = vrot.slane %v310, %v532
    %v534 = vsub.f32 %v528, %v533
    %v535 = vand.u32 2147483647, %v534
    %v536 = vadd.f32 %v525, %v535
    %537 = vset.pattern.permute.xlu0 6
    %538 = vperm.xlu0 %537, %v468
    %v539 = vpop.permute.xlu0 %538
    %v541 = vlaneseq
    %v542 = vshrl.u32 %v541, 7
    %v543 = vsub.s32 6, %v542
    %v544 = vrot.slane %v310, %v543
    %v545 = vsub.f32 %v539, %v544
    %v546 = vand.u32 2147483647, %v545
    %v547 = vadd.f32 %v536, %v546
    %548 = vset.pattern.permute.xlu0 7
    %549 = vperm.xlu0 %548, %v468
    %v550 = vpop.permute.xlu0 %549
    %v552 = vlaneseq
    %v553 = vshrl.u32 %v552, 7
    %v554 = vsub.s32 7, %v553
    %v555 = vrot.slane %v310, %v554
    %v556 = vsub.f32 %v550, %v555
    %v557 = vand.u32 2147483647, %v556
    %v558 = vadd.f32 %v547, %v557
    %559 = vset.pattern.permute.xlu0 8
    %560 = vperm.xlu0 %559, %v468
    %v561 = vpop.permute.xlu0 %560
    %v563 = vlaneseq
    %v564 = vshrl.u32 %v563, 7
    %v565 = vsub.s32 0, %v564
    %v566 = vrot.slane %v315, %v565
    %v567 = vsub.f32 %v561, %v566
    %v568 = vand.u32 2147483647, %v567
    %v569 = vadd.f32 %v558, %v568
    %570 = vset.pattern.permute.xlu0 9
    %571 = vperm.xlu0 %570, %v468
    %v572 = vpop.permute.xlu0 %571
    %v574 = vlaneseq
    %v575 = vshrl.u32 %v574, 7
    %v576 = vsub.s32 1, %v575
    %v577 = vrot.slane %v315, %v576
    %v578 = vsub.f32 %v572, %v577
    %v579 = vand.u32 2147483647, %v578
    %v580 = vadd.f32 %v569, %v579
    %581 = vset.pattern.permute.xlu0 10
    %582 = vperm.xlu0 %581, %v468
    %v583 = vpop.permute.xlu0 %582
    %v585 = vlaneseq
    %v586 = vshrl.u32 %v585, 7
    %v587 = vsub.s32 2, %v586
    %v588 = vrot.slane %v315, %v587
    %v589 = vsub.f32 %v583, %v588
    %v590 = vand.u32 2147483647, %v589
    %v591 = vadd.f32 %v580, %v590
    %592 = vset.pattern.permute.xlu0 11
    %593 = vperm.xlu0 %592, %v468
    %v594 = vpop.permute.xlu0 %593
    %v596 = vlaneseq
    %v597 = vshrl.u32 %v596, 7
    %v598 = vsub.s32 3, %v597
    %v599 = vrot.slane %v315, %v598
    %v600 = vsub.f32 %v594, %v599
    %v601 = vand.u32 2147483647, %v600
    %v602 = vadd.f32 %v591, %v601
    %603 = vset.pattern.permute.xlu0 12
    %604 = vperm.xlu0 %603, %v468
    %v605 = vpop.permute.xlu0 %604
    %v607 = vlaneseq
    %v608 = vshrl.u32 %v607, 7
    %v609 = vsub.s32 4, %v608
    %v610 = vrot.slane %v315, %v609
    %v611 = vsub.f32 %v605, %v610
    %v612 = vand.u32 2147483647, %v611
    %v613 = vadd.f32 %v602, %v612
    %614 = vset.pattern.permute.xlu0 13
    %615 = vperm.xlu0 %614, %v468
    %v616 = vpop.permute.xlu0 %615
    %v618 = vlaneseq
    %v619 = vshrl.u32 %v618, 7
    %v620 = vsub.s32 5, %v619
    %v621 = vrot.slane %v315, %v620
    %v622 = vsub.f32 %v616, %v621
    %v623 = vand.u32 2147483647, %v622
    %v624 = vadd.f32 %v613, %v623
    %625 = vset.pattern.permute.xlu0 14
    %626 = vperm.xlu0 %625, %v468
    %v627 = vpop.permute.xlu0 %626
    %v629 = vlaneseq
    %v630 = vshrl.u32 %v629, 7
    %v631 = vsub.s32 6, %v630
    %v632 = vrot.slane %v315, %v631
    %v633 = vsub.f32 %v627, %v632
    %v634 = vand.u32 2147483647, %v633
    %v635 = vadd.f32 %v624, %v634
    %636 = vset.pattern.permute.xlu0 15
    %637 = vperm.xlu0 %636, %v468
    %v638 = vpop.permute.xlu0 %637
    %v640 = vlaneseq
    %v641 = vshrl.u32 %v640, 7
    %v642 = vsub.s32 7, %v641
    %v643 = vrot.slane %v315, %v642
    %v644 = vsub.f32 %v638, %v643
    %v645 = vand.u32 2147483647, %v644
    %v646 = vadd.f32 %v635, %v645
    %v647 = vsub.f32 0.0, %v646
    %v648 = vmul.f32 %v647, 1.442695
    %v649 = vpow.pop %v648
    %vm650 = vcmask 64512
    %v651 = vsel %vm650, %v649, 0.0
    %652 = vadd.xlane.f32.xlu0 %v651
    %v653 = vpop.xlane.xlu0 %652
    %654 = vset.pattern.permute.xlu0 16
    %655 = vperm.xlu0 %654, %v468
    %v656 = vpop.permute.xlu0 %655
    %v658 = vlaneseq
    %v659 = vshrl.u32 %v658, 7
    %v660 = vsub.s32 0, %v659
    %v661 = vrot.slane %v320, %v660
    %v662 = vsub.f32 %v656, %v661
    %v663 = vand.u32 2147483647, %v662
    %v664 = vadd.f32 %v663, 0.0
    %665 = vset.pattern.permute.xlu0 17
    %666 = vperm.xlu0 %665, %v468
    %v667 = vpop.permute.xlu0 %666
    %v669 = vlaneseq
    %v670 = vshrl.u32 %v669, 7
    %v671 = vsub.s32 1, %v670
    %v672 = vrot.slane %v320, %v671
    %v673 = vsub.f32 %v667, %v672
    %v674 = vand.u32 2147483647, %v673
    %v675 = vadd.f32 %v664, %v674
    %676 = vset.pattern.permute.xlu0 18
    %677 = vperm.xlu0 %676, %v468
    %v678 = vpop.permute.xlu0 %677
    %v680 = vlaneseq
    %v681 = vshrl.u32 %v680, 7
    %v682 = vsub.s32 2, %v681
    %v683 = vrot.slane %v320, %v682
    %v684 = vsub.f32 %v678, %v683
    %v685 = vand.u32 2147483647, %v684
    %v686 = vadd.f32 %v675, %v685
    %687 = vset.pattern.permute.xlu0 19
    %688 = vperm.xlu0 %687, %v468
    %v689 = vpop.permute.xlu0 %688
    %v691 = vlaneseq
    %v692 = vshrl.u32 %v691, 7
    %v693 = vsub.s32 3, %v692
    %v694 = vrot.slane %v320, %v693
    %v695 = vsub.f32 %v689, %v694
    %v696 = vand.u32 2147483647, %v695
    %v697 = vadd.f32 %v686, %v696
    %698 = vset.pattern.permute.xlu0 20
    %699 = vperm.xlu0 %698, %v468
    %v700 = vpop.permute.xlu0 %699
    %v702 = vlaneseq
    %v703 = vshrl.u32 %v702, 7
    %v704 = vsub.s32 4, %v703
    %v705 = vrot.slane %v320, %v704
    %v706 = vsub.f32 %v700, %v705
    %v707 = vand.u32 2147483647, %v706
    %v708 = vadd.f32 %v697, %v707
    %709 = vset.pattern.permute.xlu0 21
    %710 = vperm.xlu0 %709, %v468
    %v711 = vpop.permute.xlu0 %710
    %v713 = vlaneseq
    %v714 = vshrl.u32 %v713, 7
    %v715 = vsub.s32 5, %v714
    %v716 = vrot.slane %v320, %v715
    %v717 = vsub.f32 %v711, %v716
    %v718 = vand.u32 2147483647, %v717
    %v719 = vadd.f32 %v708, %v718
    %720 = vset.pattern.permute.xlu0 22
    %721 = vperm.xlu0 %720, %v468
    %v722 = vpop.permute.xlu0 %721
    %v724 = vlaneseq
    %v725 = vshrl.u32 %v724, 7
    %v726 = vsub.s32 6, %v725
    %v727 = vrot.slane %v320, %v726
    %v728 = vsub.f32 %v722, %v727
    %v729 = vand.u32 2147483647, %v728
    %v730 = vadd.f32 %v719, %v729
    %731 = vset.pattern.permute.xlu0 23
    %732 = vperm.xlu0 %731, %v468
    %v733 = vpop.permute.xlu0 %732
    %v735 = vlaneseq
    %v736 = vshrl.u32 %v735, 7
    %v737 = vsub.s32 7, %v736
    %v738 = vrot.slane %v320, %v737
    %v739 = vsub.f32 %v733, %v738
    %v740 = vand.u32 2147483647, %v739
    %v741 = vadd.f32 %v730, %v740
    %742 = vset.pattern.permute.xlu0 24
    %743 = vperm.xlu0 %742, %v468
    %v744 = vpop.permute.xlu0 %743
    %v746 = vlaneseq
    %v747 = vshrl.u32 %v746, 7
    %v748 = vsub.s32 0, %v747
    %v749 = vrot.slane %v325, %v748
    %v750 = vsub.f32 %v744, %v749
    %v751 = vand.u32 2147483647, %v750
    %v752 = vadd.f32 %v741, %v751
    %753 = vset.pattern.permute.xlu0 25
    %754 = vperm.xlu0 %753, %v468
    %v755 = vpop.permute.xlu0 %754
    %v757 = vlaneseq
    %v758 = vshrl.u32 %v757, 7
    %v759 = vsub.s32 1, %v758
    %v760 = vrot.slane %v325, %v759
    %v761 = vsub.f32 %v755, %v760
    %v762 = vand.u32 2147483647, %v761
    %v763 = vadd.f32 %v752, %v762
    %764 = vset.pattern.permute.xlu0 26
    %765 = vperm.xlu0 %764, %v468
    %v766 = vpop.permute.xlu0 %765
    %v768 = vlaneseq
    %v769 = vshrl.u32 %v768, 7
    %v770 = vsub.s32 2, %v769
    %v771 = vrot.slane %v325, %v770
    %v772 = vsub.f32 %v766, %v771
    %v773 = vand.u32 2147483647, %v772
    %v774 = vadd.f32 %v763, %v773
    %775 = vset.pattern.permute.xlu0 27
    %776 = vperm.xlu0 %775, %v468
    %v777 = vpop.permute.xlu0 %776
    %v779 = vlaneseq
    %v780 = vshrl.u32 %v779, 7
    %v781 = vsub.s32 3, %v780
    %v782 = vrot.slane %v325, %v781
    %v783 = vsub.f32 %v777, %v782
    %v784 = vand.u32 2147483647, %v783
    %v785 = vadd.f32 %v774, %v784
    %786 = vset.pattern.permute.xlu0 28
    %787 = vperm.xlu0 %786, %v468
    %v788 = vpop.permute.xlu0 %787
    %v790 = vlaneseq
    %v791 = vshrl.u32 %v790, 7
    %v792 = vsub.s32 4, %v791
    %v793 = vrot.slane %v325, %v792
    %v794 = vsub.f32 %v788, %v793
    %v795 = vand.u32 2147483647, %v794
    %v796 = vadd.f32 %v785, %v795
    %797 = vset.pattern.permute.xlu0 29
    %798 = vperm.xlu0 %797, %v468
    %v799 = vpop.permute.xlu0 %798
    %v801 = vlaneseq
    %v802 = vshrl.u32 %v801, 7
    %v803 = vsub.s32 5, %v802
    %v804 = vrot.slane %v325, %v803
    %v805 = vsub.f32 %v799, %v804
    %v806 = vand.u32 2147483647, %v805
    %v807 = vadd.f32 %v796, %v806
    %808 = vset.pattern.permute.xlu0 30
    %809 = vperm.xlu0 %808, %v468
    %v810 = vpop.permute.xlu0 %809
    %v812 = vlaneseq
    %v813 = vshrl.u32 %v812, 7
    %v814 = vsub.s32 6, %v813
    %v815 = vrot.slane %v325, %v814
    %v816 = vsub.f32 %v810, %v815
    %v817 = vand.u32 2147483647, %v816
    %v818 = vadd.f32 %v807, %v817
    %819 = vset.pattern.permute.xlu0 31
    %820 = vperm.xlu0 %819, %v468
    %v821 = vpop.permute.xlu0 %820
    %v823 = vlaneseq
    %v824 = vshrl.u32 %v823, 7
    %v825 = vsub.s32 7, %v824
    %v826 = vrot.slane %v325, %v825
    %v827 = vsub.f32 %v821, %v826
    %v828 = vand.u32 2147483647, %v827
    %v829 = vadd.f32 %v818, %v828
    %v830 = vsub.f32 0.0, %v829
    %v831 = vmul.f32 %v830, 1.442695
    %v832 = vpow.pop %v831
    %v833 = vsel %vm650, %v832, 0.0
    %834 = vadd.xlane.f32.xlu0 %v833
    %v835 = vpop.xlane.xlu0 %834
    %836 = vset.pattern.permute.xlu0 32
    %837 = vperm.xlu0 %836, %v468
    %v838 = vpop.permute.xlu0 %837
    %v840 = vlaneseq
    %v841 = vshrl.u32 %v840, 7
    %v842 = vsub.s32 0, %v841
    %v843 = vrot.slane %v330, %v842
    %v844 = vsub.f32 %v838, %v843
    %v845 = vand.u32 2147483647, %v844
    %v846 = vadd.f32 %v845, 0.0
    %847 = vset.pattern.permute.xlu0 33
    %848 = vperm.xlu0 %847, %v468
    %v849 = vpop.permute.xlu0 %848
    %v851 = vlaneseq
    %v852 = vshrl.u32 %v851, 7
    %v853 = vsub.s32 1, %v852
    %v854 = vrot.slane %v330, %v853
    %v855 = vsub.f32 %v849, %v854
    %v856 = vand.u32 2147483647, %v855
    %v857 = vadd.f32 %v846, %v856
    %858 = vset.pattern.permute.xlu0 34
    %859 = vperm.xlu0 %858, %v468
    %v860 = vpop.permute.xlu0 %859
    %v862 = vlaneseq
    %v863 = vshrl.u32 %v862, 7
    %v864 = vsub.s32 2, %v863
    %v865 = vrot.slane %v330, %v864
    %v866 = vsub.f32 %v860, %v865
    %v867 = vand.u32 2147483647, %v866
    %v868 = vadd.f32 %v857, %v867
    %869 = vset.pattern.permute.xlu0 35
    %870 = vperm.xlu0 %869, %v468
    %v871 = vpop.permute.xlu0 %870
    %v873 = vlaneseq
    %v874 = vshrl.u32 %v873, 7
    %v875 = vsub.s32 3, %v874
    %v876 = vrot.slane %v330, %v875
    %v877 = vsub.f32 %v871, %v876
    %v878 = vand.u32 2147483647, %v877
    %v879 = vadd.f32 %v868, %v878
    %880 = vset.pattern.permute.xlu0 36
    %881 = vperm.xlu0 %880, %v468
    %v882 = vpop.permute.xlu0 %881
    %v884 = vlaneseq
    %v885 = vshrl.u32 %v884, 7
    %v886 = vsub.s32 4, %v885
    %v887 = vrot.slane %v330, %v886
    %v888 = vsub.f32 %v882, %v887
    %v889 = vand.u32 2147483647, %v888
    %v890 = vadd.f32 %v879, %v889
    %891 = vset.pattern.permute.xlu0 37
    %892 = vperm.xlu0 %891, %v468
    %v893 = vpop.permute.xlu0 %892
    %v895 = vlaneseq
    %v896 = vshrl.u32 %v895, 7
    %v897 = vsub.s32 5, %v896
    %v898 = vrot.slane %v330, %v897
    %v899 = vsub.f32 %v893, %v898
    %v900 = vand.u32 2147483647, %v899
    %v901 = vadd.f32 %v890, %v900
    %902 = vset.pattern.permute.xlu0 38
    %903 = vperm.xlu0 %902, %v468
    %v904 = vpop.permute.xlu0 %903
    %v906 = vlaneseq
    %v907 = vshrl.u32 %v906, 7
    %v908 = vsub.s32 6, %v907
    %v909 = vrot.slane %v330, %v908
    %v910 = vsub.f32 %v904, %v909
    %v911 = vand.u32 2147483647, %v910
    %v912 = vadd.f32 %v901, %v911
    %913 = vset.pattern.permute.xlu0 39
    %914 = vperm.xlu0 %913, %v468
    %v915 = vpop.permute.xlu0 %914
    %v917 = vlaneseq
    %v918 = vshrl.u32 %v917, 7
    %v919 = vsub.s32 7, %v918
    %v920 = vrot.slane %v330, %v919
    %v921 = vsub.f32 %v915, %v920
    %v922 = vand.u32 2147483647, %v921
    %v923 = vadd.f32 %v912, %v922
    %924 = vset.pattern.permute.xlu0 40
    %925 = vperm.xlu0 %924, %v468
    %v926 = vpop.permute.xlu0 %925
    %v928 = vlaneseq
    %v929 = vshrl.u32 %v928, 7
    %v930 = vsub.s32 0, %v929
    %v931 = vrot.slane %v335, %v930
    %v932 = vsub.f32 %v926, %v931
    %v933 = vand.u32 2147483647, %v932
    %v934 = vadd.f32 %v923, %v933
    %935 = vset.pattern.permute.xlu0 41
    %936 = vperm.xlu0 %935, %v468
    %v937 = vpop.permute.xlu0 %936
    %v939 = vlaneseq
    %v940 = vshrl.u32 %v939, 7
    %v941 = vsub.s32 1, %v940
    %v942 = vrot.slane %v335, %v941
    %v943 = vsub.f32 %v937, %v942
    %v944 = vand.u32 2147483647, %v943
    %v945 = vadd.f32 %v934, %v944
    %946 = vset.pattern.permute.xlu0 42
    %947 = vperm.xlu0 %946, %v468
    %v948 = vpop.permute.xlu0 %947
    %v950 = vlaneseq
    %v951 = vshrl.u32 %v950, 7
    %v952 = vsub.s32 2, %v951
    %v953 = vrot.slane %v335, %v952
    %v954 = vsub.f32 %v948, %v953
    %v955 = vand.u32 2147483647, %v954
    %v956 = vadd.f32 %v945, %v955
    %957 = vset.pattern.permute.xlu0 43
    %958 = vperm.xlu0 %957, %v468
    %v959 = vpop.permute.xlu0 %958
    %v961 = vlaneseq
    %v962 = vshrl.u32 %v961, 7
    %v963 = vsub.s32 3, %v962
    %v964 = vrot.slane %v335, %v963
    %v965 = vsub.f32 %v959, %v964
    %v966 = vand.u32 2147483647, %v965
    %v967 = vadd.f32 %v956, %v966
    %968 = vset.pattern.permute.xlu0 44
    %969 = vperm.xlu0 %968, %v468
    %v970 = vpop.permute.xlu0 %969
    %v972 = vlaneseq
    %v973 = vshrl.u32 %v972, 7
    %v974 = vsub.s32 4, %v973
    %v975 = vrot.slane %v335, %v974
    %v976 = vsub.f32 %v970, %v975
    %v977 = vand.u32 2147483647, %v976
    %v978 = vadd.f32 %v967, %v977
    %979 = vset.pattern.permute.xlu0 45
    %980 = vperm.xlu0 %979, %v468
    %v981 = vpop.permute.xlu0 %980
    %v983 = vlaneseq
    %v984 = vshrl.u32 %v983, 7
    %v985 = vsub.s32 5, %v984
    %v986 = vrot.slane %v335, %v985
    %v987 = vsub.f32 %v981, %v986
    %v988 = vand.u32 2147483647, %v987
    %v989 = vadd.f32 %v978, %v988
    %990 = vset.pattern.permute.xlu0 46
    %991 = vperm.xlu0 %990, %v468
    %v992 = vpop.permute.xlu0 %991
    %v994 = vlaneseq
    %v995 = vshrl.u32 %v994, 7
    %v996 = vsub.s32 6, %v995
    %v997 = vrot.slane %v335, %v996
    %v998 = vsub.f32 %v992, %v997
    %v999 = vand.u32 2147483647, %v998
    %v1000 = vadd.f32 %v989, %v999
    %1001 = vset.pattern.permute.xlu0 47
    %1002 = vperm.xlu0 %1001, %v468
    %v1003 = vpop.permute.xlu0 %1002
    %v1005 = vlaneseq
    %v1006 = vshrl.u32 %v1005, 7
    %v1007 = vsub.s32 7, %v1006
    %v1008 = vrot.slane %v335, %v1007
    %v1009 = vsub.f32 %v1003, %v1008
    %v1010 = vand.u32 2147483647, %v1009
    %v1011 = vadd.f32 %v1000, %v1010
    %v1012 = vsub.f32 0.0, %v1011
    %v1013 = vmul.f32 %v1012, 1.442695
    %v1014 = vpow.pop %v1013
    %v1015 = vsel %vm650, %v1014, 0.0
    %1016 = vadd.xlane.f32.xlu0 %v1015
    %v1017 = vpop.xlane.xlu0 %1016
    %1018 = vset.pattern.permute.xlu0 48
    %1019 = vperm.xlu0 %1018, %v468
    %v1020 = vpop.permute.xlu0 %1019
    %v1022 = vlaneseq
    %v1023 = vshrl.u32 %v1022, 7
    %v1024 = vsub.s32 0, %v1023
    %v1025 = vrot.slane %v340, %v1024
    %v1026 = vsub.f32 %v1020, %v1025
    %v1027 = vand.u32 2147483647, %v1026
    %v1028 = vadd.f32 %v1027, 0.0
    %1029 = vset.pattern.permute.xlu0 49
    %1030 = vperm.xlu0 %1029, %v468
    %v1031 = vpop.permute.xlu0 %1030
    %v1033 = vlaneseq
    %v1034 = vshrl.u32 %v1033, 7
    %v1035 = vsub.s32 1, %v1034
    %v1036 = vrot.slane %v340, %v1035
    %v1037 = vsub.f32 %v1031, %v1036
    %v1038 = vand.u32 2147483647, %v1037
    %v1039 = vadd.f32 %v1028, %v1038
    %1040 = vset.pattern.permute.xlu0 50
    %1041 = vperm.xlu0 %1040, %v468
    %v1042 = vpop.permute.xlu0 %1041
    %v1044 = vlaneseq
    %v1045 = vshrl.u32 %v1044, 7
    %v1046 = vsub.s32 2, %v1045
    %v1047 = vrot.slane %v340, %v1046
    %v1048 = vsub.f32 %v1042, %v1047
    %v1049 = vand.u32 2147483647, %v1048
    %v1050 = vadd.f32 %v1039, %v1049
    %1051 = vset.pattern.permute.xlu0 51
    %1052 = vperm.xlu0 %1051, %v468
    %v1053 = vpop.permute.xlu0 %1052
    %v1055 = vlaneseq
    %v1056 = vshrl.u32 %v1055, 7
    %v1057 = vsub.s32 3, %v1056
    %v1058 = vrot.slane %v340, %v1057
    %v1059 = vsub.f32 %v1053, %v1058
    %v1060 = vand.u32 2147483647, %v1059
    %v1061 = vadd.f32 %v1050, %v1060
    %1062 = vset.pattern.permute.xlu0 52
    %1063 = vperm.xlu0 %1062, %v468
    %v1064 = vpop.permute.xlu0 %1063
    %v1066 = vlaneseq
    %v1067 = vshrl.u32 %v1066, 7
    %v1068 = vsub.s32 4, %v1067
    %v1069 = vrot.slane %v340, %v1068
    %v1070 = vsub.f32 %v1064, %v1069
    %v1071 = vand.u32 2147483647, %v1070
    %v1072 = vadd.f32 %v1061, %v1071
    %1073 = vset.pattern.permute.xlu0 53
    %1074 = vperm.xlu0 %1073, %v468
    %v1075 = vpop.permute.xlu0 %1074
    %v1077 = vlaneseq
    %v1078 = vshrl.u32 %v1077, 7
    %v1079 = vsub.s32 5, %v1078
    %v1080 = vrot.slane %v340, %v1079
    %v1081 = vsub.f32 %v1075, %v1080
    %v1082 = vand.u32 2147483647, %v1081
    %v1083 = vadd.f32 %v1072, %v1082
    %1084 = vset.pattern.permute.xlu0 54
    %1085 = vperm.xlu0 %1084, %v468
    %v1086 = vpop.permute.xlu0 %1085
    %v1088 = vlaneseq
    %v1089 = vshrl.u32 %v1088, 7
    %v1090 = vsub.s32 6, %v1089
    %v1091 = vrot.slane %v340, %v1090
    %v1092 = vsub.f32 %v1086, %v1091
    %v1093 = vand.u32 2147483647, %v1092
    %v1094 = vadd.f32 %v1083, %v1093
    %1095 = vset.pattern.permute.xlu0 55
    %1096 = vperm.xlu0 %1095, %v468
    %v1097 = vpop.permute.xlu0 %1096
    %v1099 = vlaneseq
    %v1100 = vshrl.u32 %v1099, 7
    %v1101 = vsub.s32 7, %v1100
    %v1102 = vrot.slane %v340, %v1101
    %v1103 = vsub.f32 %v1097, %v1102
    %v1104 = vand.u32 2147483647, %v1103
    %v1105 = vadd.f32 %v1094, %v1104
    %1106 = vset.pattern.permute.xlu0 56
    %1107 = vperm.xlu0 %1106, %v468
    %v1108 = vpop.permute.xlu0 %1107
    %v1110 = vlaneseq
    %v1111 = vshrl.u32 %v1110, 7
    %v1112 = vsub.s32 0, %v1111
    %v1113 = vrot.slane %v345, %v1112
    %v1114 = vsub.f32 %v1108, %v1113
    %v1115 = vand.u32 2147483647, %v1114
    %v1116 = vadd.f32 %v1105, %v1115
    %1117 = vset.pattern.permute.xlu0 57
    %1118 = vperm.xlu0 %1117, %v468
    %v1119 = vpop.permute.xlu0 %1118
    %v1121 = vlaneseq
    %v1122 = vshrl.u32 %v1121, 7
    %v1123 = vsub.s32 1, %v1122
    %v1124 = vrot.slane %v345, %v1123
    %v1125 = vsub.f32 %v1119, %v1124
    %v1126 = vand.u32 2147483647, %v1125
    %v1127 = vadd.f32 %v1116, %v1126
    %1128 = vset.pattern.permute.xlu0 58
    %1129 = vperm.xlu0 %1128, %v468
    %v1130 = vpop.permute.xlu0 %1129
    %v1132 = vlaneseq
    %v1133 = vshrl.u32 %v1132, 7
    %v1134 = vsub.s32 2, %v1133
    %v1135 = vrot.slane %v345, %v1134
    %v1136 = vsub.f32 %v1130, %v1135
    %v1137 = vand.u32 2147483647, %v1136
    %v1138 = vadd.f32 %v1127, %v1137
    %1139 = vset.pattern.permute.xlu0 59
    %1140 = vperm.xlu0 %1139, %v468
    %v1141 = vpop.permute.xlu0 %1140
    %v1143 = vlaneseq
    %v1144 = vshrl.u32 %v1143, 7
    %v1145 = vsub.s32 3, %v1144
    %v1146 = vrot.slane %v345, %v1145
    %v1147 = vsub.f32 %v1141, %v1146
    %v1148 = vand.u32 2147483647, %v1147
    %v1149 = vadd.f32 %v1138, %v1148
    %1150 = vset.pattern.permute.xlu0 60
    %1151 = vperm.xlu0 %1150, %v468
    %v1152 = vpop.permute.xlu0 %1151
    %v1154 = vlaneseq
    %v1155 = vshrl.u32 %v1154, 7
    %v1156 = vsub.s32 4, %v1155
    %v1157 = vrot.slane %v345, %v1156
    %v1158 = vsub.f32 %v1152, %v1157
    %v1159 = vand.u32 2147483647, %v1158
    %v1160 = vadd.f32 %v1149, %v1159
    %1161 = vset.pattern.permute.xlu0 61
    %1162 = vperm.xlu0 %1161, %v468
    %v1163 = vpop.permute.xlu0 %1162
    %v1165 = vlaneseq
    %v1166 = vshrl.u32 %v1165, 7
    %v1167 = vsub.s32 5, %v1166
    %v1168 = vrot.slane %v345, %v1167
    %v1169 = vsub.f32 %v1163, %v1168
    %v1170 = vand.u32 2147483647, %v1169
    %v1171 = vadd.f32 %v1160, %v1170
    %1172 = vset.pattern.permute.xlu0 62
    %1173 = vperm.xlu0 %1172, %v468
    %v1174 = vpop.permute.xlu0 %1173
    %v1176 = vlaneseq
    %v1177 = vshrl.u32 %v1176, 7
    %v1178 = vsub.s32 6, %v1177
    %v1179 = vrot.slane %v345, %v1178
    %v1180 = vsub.f32 %v1174, %v1179
    %v1181 = vand.u32 2147483647, %v1180
    %v1182 = vadd.f32 %v1171, %v1181
    %1183 = vset.pattern.permute.xlu0 63
    %1184 = vperm.xlu0 %1183, %v468
    %v1185 = vpop.permute.xlu0 %1184
    %v1187 = vlaneseq
    %v1188 = vshrl.u32 %v1187, 7
    %v1189 = vsub.s32 7, %v1188
    %v1190 = vrot.slane %v345, %v1189
    %v1191 = vsub.f32 %v1185, %v1190
    %v1192 = vand.u32 2147483647, %v1191
    %v1193 = vadd.f32 %v1182, %v1192
    %v1194 = vsub.f32 0.0, %v1193
    %v1195 = vmul.f32 %v1194, 1.442695
    %v1196 = vpow.pop %v1195
    %v1197 = vsel %vm650, %v1196, 0.0
    %1198 = vadd.xlane.f32.xlu0 %v1197
    %v1199 = vpop.xlane.xlu0 %1198
    %1200 = vset.pattern.permute.xlu0 64
    %1201 = vperm.xlu0 %1200, %v468
    %v1202 = vpop.permute.xlu0 %1201
    %v1204 = vlaneseq
    %v1205 = vshrl.u32 %v1204, 7
    %v1206 = vsub.s32 0, %v1205
    %v1207 = vrot.slane %v350, %v1206
    %v1208 = vsub.f32 %v1202, %v1207
    %v1209 = vand.u32 2147483647, %v1208
    %v1210 = vadd.f32 %v1209, 0.0
    %1211 = vset.pattern.permute.xlu0 65
    %1212 = vperm.xlu0 %1211, %v468
    %v1213 = vpop.permute.xlu0 %1212
    %v1215 = vlaneseq
    %v1216 = vshrl.u32 %v1215, 7
    %v1217 = vsub.s32 1, %v1216
    %v1218 = vrot.slane %v350, %v1217
    %v1219 = vsub.f32 %v1213, %v1218
    %v1220 = vand.u32 2147483647, %v1219
    %v1221 = vadd.f32 %v1210, %v1220
    %1222 = vset.pattern.permute.xlu0 66
    %1223 = vperm.xlu0 %1222, %v468
    %v1224 = vpop.permute.xlu0 %1223
    %v1226 = vlaneseq
    %v1227 = vshrl.u32 %v1226, 7
    %v1228 = vsub.s32 2, %v1227
    %v1229 = vrot.slane %v350, %v1228
    %v1230 = vsub.f32 %v1224, %v1229
    %v1231 = vand.u32 2147483647, %v1230
    %v1232 = vadd.f32 %v1221, %v1231
    %1233 = vset.pattern.permute.xlu0 67
    %1234 = vperm.xlu0 %1233, %v468
    %v1235 = vpop.permute.xlu0 %1234
    %v1237 = vlaneseq
    %v1238 = vshrl.u32 %v1237, 7
    %v1239 = vsub.s32 3, %v1238
    %v1240 = vrot.slane %v350, %v1239
    %v1241 = vsub.f32 %v1235, %v1240
    %v1242 = vand.u32 2147483647, %v1241
    %v1243 = vadd.f32 %v1232, %v1242
    %1244 = vset.pattern.permute.xlu0 68
    %1245 = vperm.xlu0 %1244, %v468
    %v1246 = vpop.permute.xlu0 %1245
    %v1248 = vlaneseq
    %v1249 = vshrl.u32 %v1248, 7
    %v1250 = vsub.s32 4, %v1249
    %v1251 = vrot.slane %v350, %v1250
    %v1252 = vsub.f32 %v1246, %v1251
    %v1253 = vand.u32 2147483647, %v1252
    %v1254 = vadd.f32 %v1243, %v1253
    %1255 = vset.pattern.permute.xlu0 69
    %1256 = vperm.xlu0 %1255, %v468
    %v1257 = vpop.permute.xlu0 %1256
    %v1259 = vlaneseq
    %v1260 = vshrl.u32 %v1259, 7
    %v1261 = vsub.s32 5, %v1260
    %v1262 = vrot.slane %v350, %v1261
    %v1263 = vsub.f32 %v1257, %v1262
    %v1264 = vand.u32 2147483647, %v1263
    %v1265 = vadd.f32 %v1254, %v1264
    %1266 = vset.pattern.permute.xlu0 70
    %1267 = vperm.xlu0 %1266, %v468
    %v1268 = vpop.permute.xlu0 %1267
    %v1270 = vlaneseq
    %v1271 = vshrl.u32 %v1270, 7
    %v1272 = vsub.s32 6, %v1271
    %v1273 = vrot.slane %v350, %v1272
    %v1274 = vsub.f32 %v1268, %v1273
    %v1275 = vand.u32 2147483647, %v1274
    %v1276 = vadd.f32 %v1265, %v1275
    %1277 = vset.pattern.permute.xlu0 71
    %1278 = vperm.xlu0 %1277, %v468
    %v1279 = vpop.permute.xlu0 %1278
    %v1281 = vlaneseq
    %v1282 = vshrl.u32 %v1281, 7
    %v1283 = vsub.s32 7, %v1282
    %v1284 = vrot.slane %v350, %v1283
    %v1285 = vsub.f32 %v1279, %v1284
    %v1286 = vand.u32 2147483647, %v1285
    %v1287 = vadd.f32 %v1276, %v1286
    %1288 = vset.pattern.permute.xlu0 72
    %1289 = vperm.xlu0 %1288, %v468
    %v1290 = vpop.permute.xlu0 %1289
    %v1292 = vlaneseq
    %v1293 = vshrl.u32 %v1292, 7
    %v1294 = vsub.s32 0, %v1293
    %v1295 = vrot.slane %v355, %v1294
    %v1296 = vsub.f32 %v1290, %v1295
    %v1297 = vand.u32 2147483647, %v1296
    %v1298 = vadd.f32 %v1287, %v1297
    %1299 = vset.pattern.permute.xlu0 73
    %1300 = vperm.xlu0 %1299, %v468
    %v1301 = vpop.permute.xlu0 %1300
    %v1303 = vlaneseq
    %v1304 = vshrl.u32 %v1303, 7
    %v1305 = vsub.s32 1, %v1304
    %v1306 = vrot.slane %v355, %v1305
    %v1307 = vsub.f32 %v1301, %v1306
    %v1308 = vand.u32 2147483647, %v1307
    %v1309 = vadd.f32 %v1298, %v1308
    %1310 = vset.pattern.permute.xlu0 74
    %1311 = vperm.xlu0 %1310, %v468
    %v1312 = vpop.permute.xlu0 %1311
    %v1314 = vlaneseq
    %v1315 = vshrl.u32 %v1314, 7
    %v1316 = vsub.s32 2, %v1315
    %v1317 = vrot.slane %v355, %v1316
    %v1318 = vsub.f32 %v1312, %v1317
    %v1319 = vand.u32 2147483647, %v1318
    %v1320 = vadd.f32 %v1309, %v1319
    %1321 = vset.pattern.permute.xlu0 75
    %1322 = vperm.xlu0 %1321, %v468
    %v1323 = vpop.permute.xlu0 %1322
    %v1325 = vlaneseq
    %v1326 = vshrl.u32 %v1325, 7
    %v1327 = vsub.s32 3, %v1326
    %v1328 = vrot.slane %v355, %v1327
    %v1329 = vsub.f32 %v1323, %v1328
    %v1330 = vand.u32 2147483647, %v1329
    %v1331 = vadd.f32 %v1320, %v1330
    %1332 = vset.pattern.permute.xlu0 76
    %1333 = vperm.xlu0 %1332, %v468
    %v1334 = vpop.permute.xlu0 %1333
    %v1336 = vlaneseq
    %v1337 = vshrl.u32 %v1336, 7
    %v1338 = vsub.s32 4, %v1337
    %v1339 = vrot.slane %v355, %v1338
    %v1340 = vsub.f32 %v1334, %v1339
    %v1341 = vand.u32 2147483647, %v1340
    %v1342 = vadd.f32 %v1331, %v1341
    %1343 = vset.pattern.permute.xlu0 77
    %1344 = vperm.xlu0 %1343, %v468
    %v1345 = vpop.permute.xlu0 %1344
    %v1347 = vlaneseq
    %v1348 = vshrl.u32 %v1347, 7
    %v1349 = vsub.s32 5, %v1348
    %v1350 = vrot.slane %v355, %v1349
    %v1351 = vsub.f32 %v1345, %v1350
    %v1352 = vand.u32 2147483647, %v1351
    %v1353 = vadd.f32 %v1342, %v1352
    %1354 = vset.pattern.permute.xlu0 78
    %1355 = vperm.xlu0 %1354, %v468
    %v1356 = vpop.permute.xlu0 %1355
    %v1358 = vlaneseq
    %v1359 = vshrl.u32 %v1358, 7
    %v1360 = vsub.s32 6, %v1359
    %v1361 = vrot.slane %v355, %v1360
    %v1362 = vsub.f32 %v1356, %v1361
    %v1363 = vand.u32 2147483647, %v1362
    %v1364 = vadd.f32 %v1353, %v1363
    %1365 = vset.pattern.permute.xlu0 79
    %1366 = vperm.xlu0 %1365, %v468
    %v1367 = vpop.permute.xlu0 %1366
    %v1369 = vlaneseq
    %v1370 = vshrl.u32 %v1369, 7
    %v1371 = vsub.s32 7, %v1370
    %v1372 = vrot.slane %v355, %v1371
    %v1373 = vsub.f32 %v1367, %v1372
    %v1374 = vand.u32 2147483647, %v1373
    %v1375 = vadd.f32 %v1364, %v1374
    %v1376 = vsub.f32 0.0, %v1375
    %v1377 = vmul.f32 %v1376, 1.442695
    %v1378 = vpow.pop %v1377
    %v1379 = vsel %vm650, %v1378, 0.0
    %1380 = vadd.xlane.f32.xlu0 %v1379
    %v1381 = vpop.xlane.xlu0 %1380
    %1382 = vset.pattern.permute.xlu0 80
    %1383 = vperm.xlu0 %1382, %v468
    %v1384 = vpop.permute.xlu0 %1383
    %v1386 = vlaneseq
    %v1387 = vshrl.u32 %v1386, 7
    %v1388 = vsub.s32 0, %v1387
    %v1389 = vrot.slane %v360, %v1388
    %v1390 = vsub.f32 %v1384, %v1389
    %v1391 = vand.u32 2147483647, %v1390
    %v1392 = vadd.f32 %v1391, 0.0
    %1393 = vset.pattern.permute.xlu0 81
    %1394 = vperm.xlu0 %1393, %v468
    %v1395 = vpop.permute.xlu0 %1394
    %v1397 = vlaneseq
    %v1398 = vshrl.u32 %v1397, 7
    %v1399 = vsub.s32 1, %v1398
    %v1400 = vrot.slane %v360, %v1399
    %v1401 = vsub.f32 %v1395, %v1400
    %v1402 = vand.u32 2147483647, %v1401
    %v1403 = vadd.f32 %v1392, %v1402
    %1404 = vset.pattern.permute.xlu0 82
    %1405 = vperm.xlu0 %1404, %v468
    %v1406 = vpop.permute.xlu0 %1405
    %v1408 = vlaneseq
    %v1409 = vshrl.u32 %v1408, 7
    %v1410 = vsub.s32 2, %v1409
    %v1411 = vrot.slane %v360, %v1410
    %v1412 = vsub.f32 %v1406, %v1411
    %v1413 = vand.u32 2147483647, %v1412
    %v1414 = vadd.f32 %v1403, %v1413
    %1415 = vset.pattern.permute.xlu0 83
    %1416 = vperm.xlu0 %1415, %v468
    %v1417 = vpop.permute.xlu0 %1416
    %v1419 = vlaneseq
    %v1420 = vshrl.u32 %v1419, 7
    %v1421 = vsub.s32 3, %v1420
    %v1422 = vrot.slane %v360, %v1421
    %v1423 = vsub.f32 %v1417, %v1422
    %v1424 = vand.u32 2147483647, %v1423
    %v1425 = vadd.f32 %v1414, %v1424
    %1426 = vset.pattern.permute.xlu0 84
    %1427 = vperm.xlu0 %1426, %v468
    %v1428 = vpop.permute.xlu0 %1427
    %v1430 = vlaneseq
    %v1431 = vshrl.u32 %v1430, 7
    %v1432 = vsub.s32 4, %v1431
    %v1433 = vrot.slane %v360, %v1432
    %v1434 = vsub.f32 %v1428, %v1433
    %v1435 = vand.u32 2147483647, %v1434
    %v1436 = vadd.f32 %v1425, %v1435
    %1437 = vset.pattern.permute.xlu0 85
    %1438 = vperm.xlu0 %1437, %v468
    %v1439 = vpop.permute.xlu0 %1438
    %v1441 = vlaneseq
    %v1442 = vshrl.u32 %v1441, 7
    %v1443 = vsub.s32 5, %v1442
    %v1444 = vrot.slane %v360, %v1443
    %v1445 = vsub.f32 %v1439, %v1444
    %v1446 = vand.u32 2147483647, %v1445
    %v1447 = vadd.f32 %v1436, %v1446
    %1448 = vset.pattern.permute.xlu0 86
    %1449 = vperm.xlu0 %1448, %v468
    %v1450 = vpop.permute.xlu0 %1449
    %v1452 = vlaneseq
    %v1453 = vshrl.u32 %v1452, 7
    %v1454 = vsub.s32 6, %v1453
    %v1455 = vrot.slane %v360, %v1454
    %v1456 = vsub.f32 %v1450, %v1455
    %v1457 = vand.u32 2147483647, %v1456
    %v1458 = vadd.f32 %v1447, %v1457
    %1459 = vset.pattern.permute.xlu0 87
    %1460 = vperm.xlu0 %1459, %v468
    %v1461 = vpop.permute.xlu0 %1460
    %v1463 = vlaneseq
    %v1464 = vshrl.u32 %v1463, 7
    %v1465 = vsub.s32 7, %v1464
    %v1466 = vrot.slane %v360, %v1465
    %v1467 = vsub.f32 %v1461, %v1466
    %v1468 = vand.u32 2147483647, %v1467
    %v1469 = vadd.f32 %v1458, %v1468
    %1470 = vset.pattern.permute.xlu0 88
    %1471 = vperm.xlu0 %1470, %v468
    %v1472 = vpop.permute.xlu0 %1471
    %v1474 = vlaneseq
    %v1475 = vshrl.u32 %v1474, 7
    %v1476 = vsub.s32 0, %v1475
    %v1477 = vrot.slane %v365, %v1476
    %v1478 = vsub.f32 %v1472, %v1477
    %v1479 = vand.u32 2147483647, %v1478
    %v1480 = vadd.f32 %v1469, %v1479
    %1481 = vset.pattern.permute.xlu0 89
    %1482 = vperm.xlu0 %1481, %v468
    %v1483 = vpop.permute.xlu0 %1482
    %v1485 = vlaneseq
    %v1486 = vshrl.u32 %v1485, 7
    %v1487 = vsub.s32 1, %v1486
    %v1488 = vrot.slane %v365, %v1487
    %v1489 = vsub.f32 %v1483, %v1488
    %v1490 = vand.u32 2147483647, %v1489
    %v1491 = vadd.f32 %v1480, %v1490
    %1492 = vset.pattern.permute.xlu0 90
    %1493 = vperm.xlu0 %1492, %v468
    %v1494 = vpop.permute.xlu0 %1493
    %v1496 = vlaneseq
    %v1497 = vshrl.u32 %v1496, 7
    %v1498 = vsub.s32 2, %v1497
    %v1499 = vrot.slane %v365, %v1498
    %v1500 = vsub.f32 %v1494, %v1499
    %v1501 = vand.u32 2147483647, %v1500
    %v1502 = vadd.f32 %v1491, %v1501
    %1503 = vset.pattern.permute.xlu0 91
    %1504 = vperm.xlu0 %1503, %v468
    %v1505 = vpop.permute.xlu0 %1504
    %v1507 = vlaneseq
    %v1508 = vshrl.u32 %v1507, 7
    %v1509 = vsub.s32 3, %v1508
    %v1510 = vrot.slane %v365, %v1509
    %v1511 = vsub.f32 %v1505, %v1510
    %v1512 = vand.u32 2147483647, %v1511
    %v1513 = vadd.f32 %v1502, %v1512
    %1514 = vset.pattern.permute.xlu0 92
    %1515 = vperm.xlu0 %1514, %v468
    %v1516 = vpop.permute.xlu0 %1515
    %v1518 = vlaneseq
    %v1519 = vshrl.u32 %v1518, 7
    %v1520 = vsub.s32 4, %v1519
    %v1521 = vrot.slane %v365, %v1520
    %v1522 = vsub.f32 %v1516, %v1521
    %v1523 = vand.u32 2147483647, %v1522
    %v1524 = vadd.f32 %v1513, %v1523
    %1525 = vset.pattern.permute.xlu0 93
    %1526 = vperm.xlu0 %1525, %v468
    %v1527 = vpop.permute.xlu0 %1526
    %v1529 = vlaneseq
    %v1530 = vshrl.u32 %v1529, 7
    %v1531 = vsub.s32 5, %v1530
    %v1532 = vrot.slane %v365, %v1531
    %v1533 = vsub.f32 %v1527, %v1532
    %v1534 = vand.u32 2147483647, %v1533
    %v1535 = vadd.f32 %v1524, %v1534
    %1536 = vset.pattern.permute.xlu0 94
    %1537 = vperm.xlu0 %1536, %v468
    %v1538 = vpop.permute.xlu0 %1537
    %v1540 = vlaneseq
    %v1541 = vshrl.u32 %v1540, 7
    %v1542 = vsub.s32 6, %v1541
    %v1543 = vrot.slane %v365, %v1542
    %v1544 = vsub.f32 %v1538, %v1543
    %v1545 = vand.u32 2147483647, %v1544
    %v1546 = vadd.f32 %v1535, %v1545
    %1547 = vset.pattern.permute.xlu0 95
    %1548 = vperm.xlu0 %1547, %v468
    %v1549 = vpop.permute.xlu0 %1548
    %v1551 = vlaneseq
    %v1552 = vshrl.u32 %v1551, 7
    %v1553 = vsub.s32 7, %v1552
    %v1554 = vrot.slane %v365, %v1553
    %v1555 = vsub.f32 %v1549, %v1554
    %v1556 = vand.u32 2147483647, %v1555
    %v1557 = vadd.f32 %v1546, %v1556
    %v1558 = vsub.f32 0.0, %v1557
    %v1559 = vmul.f32 %v1558, 1.442695
    %v1560 = vpow.pop %v1559
    %v1561 = vsel %vm650, %v1560, 0.0
    %1562 = vadd.xlane.f32.xlu0 %v1561
    %v1563 = vpop.xlane.xlu0 %1562
    %1564 = vset.pattern.permute.xlu0 96
    %1565 = vperm.xlu0 %1564, %v468
    %v1566 = vpop.permute.xlu0 %1565
    %v1568 = vlaneseq
    %v1569 = vshrl.u32 %v1568, 7
    %v1570 = vsub.s32 0, %v1569
    %v1571 = vrot.slane %v370, %v1570
    %v1572 = vsub.f32 %v1566, %v1571
    %v1573 = vand.u32 2147483647, %v1572
    %v1574 = vadd.f32 %v1573, 0.0
    %1575 = vset.pattern.permute.xlu0 97
    %1576 = vperm.xlu0 %1575, %v468
    %v1577 = vpop.permute.xlu0 %1576
    %v1579 = vlaneseq
    %v1580 = vshrl.u32 %v1579, 7
    %v1581 = vsub.s32 1, %v1580
    %v1582 = vrot.slane %v370, %v1581
    %v1583 = vsub.f32 %v1577, %v1582
    %v1584 = vand.u32 2147483647, %v1583
    %v1585 = vadd.f32 %v1574, %v1584
    %1586 = vset.pattern.permute.xlu0 98
    %1587 = vperm.xlu0 %1586, %v468
    %v1588 = vpop.permute.xlu0 %1587
    %v1590 = vlaneseq
    %v1591 = vshrl.u32 %v1590, 7
    %v1592 = vsub.s32 2, %v1591
    %v1593 = vrot.slane %v370, %v1592
    %v1594 = vsub.f32 %v1588, %v1593
    %v1595 = vand.u32 2147483647, %v1594
    %v1596 = vadd.f32 %v1585, %v1595
    %1597 = vset.pattern.permute.xlu0 99
    %1598 = vperm.xlu0 %1597, %v468
    %v1599 = vpop.permute.xlu0 %1598
    %v1601 = vlaneseq
    %v1602 = vshrl.u32 %v1601, 7
    %v1603 = vsub.s32 3, %v1602
    %v1604 = vrot.slane %v370, %v1603
    %v1605 = vsub.f32 %v1599, %v1604
    %v1606 = vand.u32 2147483647, %v1605
    %v1607 = vadd.f32 %v1596, %v1606
    %1608 = vset.pattern.permute.xlu0 100
    %1609 = vperm.xlu0 %1608, %v468
    %v1610 = vpop.permute.xlu0 %1609
    %v1612 = vlaneseq
    %v1613 = vshrl.u32 %v1612, 7
    %v1614 = vsub.s32 4, %v1613
    %v1615 = vrot.slane %v370, %v1614
    %v1616 = vsub.f32 %v1610, %v1615
    %v1617 = vand.u32 2147483647, %v1616
    %v1618 = vadd.f32 %v1607, %v1617
    %1619 = vset.pattern.permute.xlu0 101
    %1620 = vperm.xlu0 %1619, %v468
    %v1621 = vpop.permute.xlu0 %1620
    %v1623 = vlaneseq
    %v1624 = vshrl.u32 %v1623, 7
    %v1625 = vsub.s32 5, %v1624
    %v1626 = vrot.slane %v370, %v1625
    %v1627 = vsub.f32 %v1621, %v1626
    %v1628 = vand.u32 2147483647, %v1627
    %v1629 = vadd.f32 %v1618, %v1628
    %1630 = vset.pattern.permute.xlu0 102
    %1631 = vperm.xlu0 %1630, %v468
    %v1632 = vpop.permute.xlu0 %1631
    %v1634 = vlaneseq
    %v1635 = vshrl.u32 %v1634, 7
    %v1636 = vsub.s32 6, %v1635
    %v1637 = vrot.slane %v370, %v1636
    %v1638 = vsub.f32 %v1632, %v1637
    %v1639 = vand.u32 2147483647, %v1638
    %v1640 = vadd.f32 %v1629, %v1639
    %1641 = vset.pattern.permute.xlu0 103
    %1642 = vperm.xlu0 %1641, %v468
    %v1643 = vpop.permute.xlu0 %1642
    %v1645 = vlaneseq
    %v1646 = vshrl.u32 %v1645, 7
    %v1647 = vsub.s32 7, %v1646
    %v1648 = vrot.slane %v370, %v1647
    %v1649 = vsub.f32 %v1643, %v1648
    %v1650 = vand.u32 2147483647, %v1649
    %v1651 = vadd.f32 %v1640, %v1650
    %1652 = vset.pattern.permute.xlu0 104
    %1653 = vperm.xlu0 %1652, %v468
    %v1654 = vpop.permute.xlu0 %1653
    %v1656 = vlaneseq
    %v1657 = vshrl.u32 %v1656, 7
    %v1658 = vsub.s32 0, %v1657
    %v1659 = vrot.slane %v375, %v1658
    %v1660 = vsub.f32 %v1654, %v1659
    %v1661 = vand.u32 2147483647, %v1660
    %v1662 = vadd.f32 %v1651, %v1661
    %1663 = vset.pattern.permute.xlu0 105
    %1664 = vperm.xlu0 %1663, %v468
    %v1665 = vpop.permute.xlu0 %1664
    %v1667 = vlaneseq
    %v1668 = vshrl.u32 %v1667, 7
    %v1669 = vsub.s32 1, %v1668
    %v1670 = vrot.slane %v375, %v1669
    %v1671 = vsub.f32 %v1665, %v1670
    %v1672 = vand.u32 2147483647, %v1671
    %v1673 = vadd.f32 %v1662, %v1672
    %1674 = vset.pattern.permute.xlu0 106
    %1675 = vperm.xlu0 %1674, %v468
    %v1676 = vpop.permute.xlu0 %1675
    %v1678 = vlaneseq
    %v1679 = vshrl.u32 %v1678, 7
    %v1680 = vsub.s32 2, %v1679
    %v1681 = vrot.slane %v375, %v1680
    %v1682 = vsub.f32 %v1676, %v1681
    %v1683 = vand.u32 2147483647, %v1682
    %v1684 = vadd.f32 %v1673, %v1683
    %1685 = vset.pattern.permute.xlu0 107
    %1686 = vperm.xlu0 %1685, %v468
    %v1687 = vpop.permute.xlu0 %1686
    %v1689 = vlaneseq
    %v1690 = vshrl.u32 %v1689, 7
    %v1691 = vsub.s32 3, %v1690
    %v1692 = vrot.slane %v375, %v1691
    %v1693 = vsub.f32 %v1687, %v1692
    %v1694 = vand.u32 2147483647, %v1693
    %v1695 = vadd.f32 %v1684, %v1694
    %1696 = vset.pattern.permute.xlu0 108
    %1697 = vperm.xlu0 %1696, %v468
    %v1698 = vpop.permute.xlu0 %1697
    %v1700 = vlaneseq
    %v1701 = vshrl.u32 %v1700, 7
    %v1702 = vsub.s32 4, %v1701
    %v1703 = vrot.slane %v375, %v1702
    %v1704 = vsub.f32 %v1698, %v1703
    %v1705 = vand.u32 2147483647, %v1704
    %v1706 = vadd.f32 %v1695, %v1705
    %1707 = vset.pattern.permute.xlu0 109
    %1708 = vperm.xlu0 %1707, %v468
    %v1709 = vpop.permute.xlu0 %1708
    %v1711 = vlaneseq
    %v1712 = vshrl.u32 %v1711, 7
    %v1713 = vsub.s32 5, %v1712
    %v1714 = vrot.slane %v375, %v1713
    %v1715 = vsub.f32 %v1709, %v1714
    %v1716 = vand.u32 2147483647, %v1715
    %v1717 = vadd.f32 %v1706, %v1716
    %1718 = vset.pattern.permute.xlu0 110
    %1719 = vperm.xlu0 %1718, %v468
    %v1720 = vpop.permute.xlu0 %1719
    %v1722 = vlaneseq
    %v1723 = vshrl.u32 %v1722, 7
    %v1724 = vsub.s32 6, %v1723
    %v1725 = vrot.slane %v375, %v1724
    %v1726 = vsub.f32 %v1720, %v1725
    %v1727 = vand.u32 2147483647, %v1726
    %v1728 = vadd.f32 %v1717, %v1727
    %1729 = vset.pattern.permute.xlu0 111
    %1730 = vperm.xlu0 %1729, %v468
    %v1731 = vpop.permute.xlu0 %1730
    %v1733 = vlaneseq
    %v1734 = vshrl.u32 %v1733, 7
    %v1735 = vsub.s32 7, %v1734
    %v1736 = vrot.slane %v375, %v1735
    %v1737 = vsub.f32 %v1731, %v1736
    %v1738 = vand.u32 2147483647, %v1737
    %v1739 = vadd.f32 %v1728, %v1738
    %v1740 = vsub.f32 0.0, %v1739
    %v1741 = vmul.f32 %v1740, 1.442695
    %v1742 = vpow.pop %v1741
    %v1743 = vsel %vm650, %v1742, 0.0
    %1744 = vadd.xlane.f32.xlu0 %v1743
    %v1745 = vpop.xlane.xlu0 %1744
    %1746 = vset.pattern.permute.xlu0 112
    %1747 = vperm.xlu0 %1746, %v468
    %v1748 = vpop.permute.xlu0 %1747
    %v1750 = vlaneseq
    %v1751 = vshrl.u32 %v1750, 7
    %v1752 = vsub.s32 0, %v1751
    %v1753 = vrot.slane %v380, %v1752
    %v1754 = vsub.f32 %v1748, %v1753
    %v1755 = vand.u32 2147483647, %v1754
    %v1756 = vadd.f32 %v1755, 0.0
    %1757 = vset.pattern.permute.xlu0 113
    %1758 = vperm.xlu0 %1757, %v468
    %v1759 = vpop.permute.xlu0 %1758
    %v1761 = vlaneseq
    %v1762 = vshrl.u32 %v1761, 7
    %v1763 = vsub.s32 1, %v1762
    %v1764 = vrot.slane %v380, %v1763
    %v1765 = vsub.f32 %v1759, %v1764
    %v1766 = vand.u32 2147483647, %v1765
    %v1767 = vadd.f32 %v1756, %v1766
    %1768 = vset.pattern.permute.xlu0 114
    %1769 = vperm.xlu0 %1768, %v468
    %v1770 = vpop.permute.xlu0 %1769
    %v1772 = vlaneseq
    %v1773 = vshrl.u32 %v1772, 7
    %v1774 = vsub.s32 2, %v1773
    %v1775 = vrot.slane %v380, %v1774
    %v1776 = vsub.f32 %v1770, %v1775
    %v1777 = vand.u32 2147483647, %v1776
    %v1778 = vadd.f32 %v1767, %v1777
    %1779 = vset.pattern.permute.xlu0 115
    %1780 = vperm.xlu0 %1779, %v468
    %v1781 = vpop.permute.xlu0 %1780
    %v1783 = vlaneseq
    %v1784 = vshrl.u32 %v1783, 7
    %v1785 = vsub.s32 3, %v1784
    %v1786 = vrot.slane %v380, %v1785
    %v1787 = vsub.f32 %v1781, %v1786
    %v1788 = vand.u32 2147483647, %v1787
    %v1789 = vadd.f32 %v1778, %v1788
    %1790 = vset.pattern.permute.xlu0 116
    %1791 = vperm.xlu0 %1790, %v468
    %v1792 = vpop.permute.xlu0 %1791
    %v1794 = vlaneseq
    %v1795 = vshrl.u32 %v1794, 7
    %v1796 = vsub.s32 4, %v1795
    %v1797 = vrot.slane %v380, %v1796
    %v1798 = vsub.f32 %v1792, %v1797
    %v1799 = vand.u32 2147483647, %v1798
    %v1800 = vadd.f32 %v1789, %v1799
    %1801 = vset.pattern.permute.xlu0 117
    %1802 = vperm.xlu0 %1801, %v468
    %v1803 = vpop.permute.xlu0 %1802
    %v1805 = vlaneseq
    %v1806 = vshrl.u32 %v1805, 7
    %v1807 = vsub.s32 5, %v1806
    %v1808 = vrot.slane %v380, %v1807
    %v1809 = vsub.f32 %v1803, %v1808
    %v1810 = vand.u32 2147483647, %v1809
    %v1811 = vadd.f32 %v1800, %v1810
    %1812 = vset.pattern.permute.xlu0 118
    %1813 = vperm.xlu0 %1812, %v468
    %v1814 = vpop.permute.xlu0 %1813
    %v1816 = vlaneseq
    %v1817 = vshrl.u32 %v1816, 7
    %v1818 = vsub.s32 6, %v1817
    %v1819 = vrot.slane %v380, %v1818
    %v1820 = vsub.f32 %v1814, %v1819
    %v1821 = vand.u32 2147483647, %v1820
    %v1822 = vadd.f32 %v1811, %v1821
    %1823 = vset.pattern.permute.xlu0 119
    %1824 = vperm.xlu0 %1823, %v468
    %v1825 = vpop.permute.xlu0 %1824
    %v1827 = vlaneseq
    %v1828 = vshrl.u32 %v1827, 7
    %v1829 = vsub.s32 7, %v1828
    %v1830 = vrot.slane %v380, %v1829
    %v1831 = vsub.f32 %v1825, %v1830
    %v1832 = vand.u32 2147483647, %v1831
    %v1833 = vadd.f32 %v1822, %v1832
    %1834 = vset.pattern.permute.xlu0 120
    %1835 = vperm.xlu0 %1834, %v468
    %v1836 = vpop.permute.xlu0 %1835
    %v1838 = vlaneseq
    %v1839 = vshrl.u32 %v1838, 7
    %v1840 = vsub.s32 0, %v1839
    %v1841 = vrot.slane %v385, %v1840
    %v1842 = vsub.f32 %v1836, %v1841
    %v1843 = vand.u32 2147483647, %v1842
    %v1844 = vadd.f32 %v1833, %v1843
    %1845 = vset.pattern.permute.xlu0 121
    %1846 = vperm.xlu0 %1845, %v468
    %v1847 = vpop.permute.xlu0 %1846
    %v1849 = vlaneseq
    %v1850 = vshrl.u32 %v1849, 7
    %v1851 = vsub.s32 1, %v1850
    %v1852 = vrot.slane %v385, %v1851
    %v1853 = vsub.f32 %v1847, %v1852
    %v1854 = vand.u32 2147483647, %v1853
    %v1855 = vadd.f32 %v1844, %v1854
    %1856 = vset.pattern.permute.xlu0 122
    %1857 = vperm.xlu0 %1856, %v468
    %v1858 = vpop.permute.xlu0 %1857
    %v1860 = vlaneseq
    %v1861 = vshrl.u32 %v1860, 7
    %v1862 = vsub.s32 2, %v1861
    %v1863 = vrot.slane %v385, %v1862
    %v1864 = vsub.f32 %v1858, %v1863
    %v1865 = vand.u32 2147483647, %v1864
    %v1866 = vadd.f32 %v1855, %v1865
    %1867 = vset.pattern.permute.xlu0 123
    %1868 = vperm.xlu0 %1867, %v468
    %v1869 = vpop.permute.xlu0 %1868
    %v1871 = vlaneseq
    %v1872 = vshrl.u32 %v1871, 7
    %v1873 = vsub.s32 3, %v1872
    %v1874 = vrot.slane %v385, %v1873
    %v1875 = vsub.f32 %v1869, %v1874
    %v1876 = vand.u32 2147483647, %v1875
    %v1877 = vadd.f32 %v1866, %v1876
    %1878 = vset.pattern.permute.xlu0 124
    %1879 = vperm.xlu0 %1878, %v468
    %v1880 = vpop.permute.xlu0 %1879
    %v1882 = vlaneseq
    %v1883 = vshrl.u32 %v1882, 7
    %v1884 = vsub.s32 4, %v1883
    %v1885 = vrot.slane %v385, %v1884
    %v1886 = vsub.f32 %v1880, %v1885
    %v1887 = vand.u32 2147483647, %v1886
    %v1888 = vadd.f32 %v1877, %v1887
    %1889 = vset.pattern.permute.xlu0 125
    %1890 = vperm.xlu0 %1889, %v468
    %v1891 = vpop.permute.xlu0 %1890
    %v1893 = vlaneseq
    %v1894 = vshrl.u32 %v1893, 7
    %v1895 = vsub.s32 5, %v1894
    %v1896 = vrot.slane %v385, %v1895
    %v1897 = vsub.f32 %v1891, %v1896
    %v1898 = vand.u32 2147483647, %v1897
    %v1899 = vadd.f32 %v1888, %v1898
    %1900 = vset.pattern.permute.xlu0 126
    %1901 = vperm.xlu0 %1900, %v468
    %v1902 = vpop.permute.xlu0 %1901
    %v1904 = vlaneseq
    %v1905 = vshrl.u32 %v1904, 7
    %v1906 = vsub.s32 6, %v1905
    %v1907 = vrot.slane %v385, %v1906
    %v1908 = vsub.f32 %v1902, %v1907
    %v1909 = vand.u32 2147483647, %v1908
    %v1910 = vadd.f32 %v1899, %v1909
    %1911 = vset.pattern.permute.xlu0 127
    %1912 = vperm.xlu0 %1911, %v468
    %v1913 = vpop.permute.xlu0 %1912
    %v1915 = vlaneseq
    %v1916 = vshrl.u32 %v1915, 7
    %v1917 = vsub.s32 7, %v1916
    %v1918 = vrot.slane %v385, %v1917
    %v1919 = vsub.f32 %v1913, %v1918
    %v1920 = vand.u32 2147483647, %v1919
    %v1921 = vadd.f32 %v1910, %v1920
    %v1922 = vsub.f32 0.0, %v1921
    %v1923 = vmul.f32 %v1922, 1.442695
    %v1924 = vpow.pop %v1923
    %v1925 = vsel %vm650, %v1924, 0.0
    %1926 = vadd.xlane.f32.xlu0 %v1925
    %v1927 = vpop.xlane.xlu0 %1926
    %1929 = vset.pattern.permute.xlu0 0
    %1930 = vperm.xlu0 %1929, %v469
    %v1931 = vpop.permute.xlu0 %1930
    %v1933 = vlaneseq
    %v1934 = vshrl.u32 %v1933, 7
    %v1935 = vsub.s32 0, %v1934
    %v1936 = vrot.slane %v390, %v1935
    %v1937 = vsub.f32 %v1931, %v1936
    %v1938 = vand.u32 2147483647, %v1937
    %v1939 = vadd.f32 %v1938, 0.0
    %1940 = vset.pattern.permute.xlu0 1
    %1941 = vperm.xlu0 %1940, %v469
    %v1942 = vpop.permute.xlu0 %1941
    %v1944 = vlaneseq
    %v1945 = vshrl.u32 %v1944, 7
    %v1946 = vsub.s32 1, %v1945
    %v1947 = vrot.slane %v390, %v1946
    %v1948 = vsub.f32 %v1942, %v1947
    %v1949 = vand.u32 2147483647, %v1948
    %v1950 = vadd.f32 %v1939, %v1949
    %1951 = vset.pattern.permute.xlu0 2
    %1952 = vperm.xlu0 %1951, %v469
    %v1953 = vpop.permute.xlu0 %1952
    %v1955 = vlaneseq
    %v1956 = vshrl.u32 %v1955, 7
    %v1957 = vsub.s32 2, %v1956
    %v1958 = vrot.slane %v390, %v1957
    %v1959 = vsub.f32 %v1953, %v1958
    %v1960 = vand.u32 2147483647, %v1959
    %v1961 = vadd.f32 %v1950, %v1960
    %1962 = vset.pattern.permute.xlu0 3
    %1963 = vperm.xlu0 %1962, %v469
    %v1964 = vpop.permute.xlu0 %1963
    %v1966 = vlaneseq
    %v1967 = vshrl.u32 %v1966, 7
    %v1968 = vsub.s32 3, %v1967
    %v1969 = vrot.slane %v390, %v1968
    %v1970 = vsub.f32 %v1964, %v1969
    %v1971 = vand.u32 2147483647, %v1970
    %v1972 = vadd.f32 %v1961, %v1971
    %1973 = vset.pattern.permute.xlu0 4
    %1974 = vperm.xlu0 %1973, %v469
    %v1975 = vpop.permute.xlu0 %1974
    %v1977 = vlaneseq
    %v1978 = vshrl.u32 %v1977, 7
    %v1979 = vsub.s32 4, %v1978
    %v1980 = vrot.slane %v390, %v1979
    %v1981 = vsub.f32 %v1975, %v1980
    %v1982 = vand.u32 2147483647, %v1981
    %v1983 = vadd.f32 %v1972, %v1982
    %1984 = vset.pattern.permute.xlu0 5
    %1985 = vperm.xlu0 %1984, %v469
    %v1986 = vpop.permute.xlu0 %1985
    %v1988 = vlaneseq
    %v1989 = vshrl.u32 %v1988, 7
    %v1990 = vsub.s32 5, %v1989
    %v1991 = vrot.slane %v390, %v1990
    %v1992 = vsub.f32 %v1986, %v1991
    %v1993 = vand.u32 2147483647, %v1992
    %v1994 = vadd.f32 %v1983, %v1993
    %1995 = vset.pattern.permute.xlu0 6
    %1996 = vperm.xlu0 %1995, %v469
    %v1997 = vpop.permute.xlu0 %1996
    %v1999 = vlaneseq
    %v2000 = vshrl.u32 %v1999, 7
    %v2001 = vsub.s32 6, %v2000
    %v2002 = vrot.slane %v390, %v2001
    %v2003 = vsub.f32 %v1997, %v2002
    %v2004 = vand.u32 2147483647, %v2003
    %v2005 = vadd.f32 %v1994, %v2004
    %2006 = vset.pattern.permute.xlu0 7
    %2007 = vperm.xlu0 %2006, %v469
    %v2008 = vpop.permute.xlu0 %2007
    %v2010 = vlaneseq
    %v2011 = vshrl.u32 %v2010, 7
    %v2012 = vsub.s32 7, %v2011
    %v2013 = vrot.slane %v390, %v2012
    %v2014 = vsub.f32 %v2008, %v2013
    %v2015 = vand.u32 2147483647, %v2014
    %v2016 = vadd.f32 %v2005, %v2015
    %2017 = vset.pattern.permute.xlu0 8
    %2018 = vperm.xlu0 %2017, %v469
    %v2019 = vpop.permute.xlu0 %2018
    %v2021 = vlaneseq
    %v2022 = vshrl.u32 %v2021, 7
    %v2023 = vsub.s32 0, %v2022
    %v2024 = vrot.slane %v395, %v2023
    %v2025 = vsub.f32 %v2019, %v2024
    %v2026 = vand.u32 2147483647, %v2025
    %v2027 = vadd.f32 %v2016, %v2026
    %2028 = vset.pattern.permute.xlu0 9
    %2029 = vperm.xlu0 %2028, %v469
    %v2030 = vpop.permute.xlu0 %2029
    %v2032 = vlaneseq
    %v2033 = vshrl.u32 %v2032, 7
    %v2034 = vsub.s32 1, %v2033
    %v2035 = vrot.slane %v395, %v2034
    %v2036 = vsub.f32 %v2030, %v2035
    %v2037 = vand.u32 2147483647, %v2036
    %v2038 = vadd.f32 %v2027, %v2037
    %2039 = vset.pattern.permute.xlu0 10
    %2040 = vperm.xlu0 %2039, %v469
    %v2041 = vpop.permute.xlu0 %2040
    %v2043 = vlaneseq
    %v2044 = vshrl.u32 %v2043, 7
    %v2045 = vsub.s32 2, %v2044
    %v2046 = vrot.slane %v395, %v2045
    %v2047 = vsub.f32 %v2041, %v2046
    %v2048 = vand.u32 2147483647, %v2047
    %v2049 = vadd.f32 %v2038, %v2048
    %2050 = vset.pattern.permute.xlu0 11
    %2051 = vperm.xlu0 %2050, %v469
    %v2052 = vpop.permute.xlu0 %2051
    %v2054 = vlaneseq
    %v2055 = vshrl.u32 %v2054, 7
    %v2056 = vsub.s32 3, %v2055
    %v2057 = vrot.slane %v395, %v2056
    %v2058 = vsub.f32 %v2052, %v2057
    %v2059 = vand.u32 2147483647, %v2058
    %v2060 = vadd.f32 %v2049, %v2059
    %2061 = vset.pattern.permute.xlu0 12
    %2062 = vperm.xlu0 %2061, %v469
    %v2063 = vpop.permute.xlu0 %2062
    %v2065 = vlaneseq
    %v2066 = vshrl.u32 %v2065, 7
    %v2067 = vsub.s32 4, %v2066
    %v2068 = vrot.slane %v395, %v2067
    %v2069 = vsub.f32 %v2063, %v2068
    %v2070 = vand.u32 2147483647, %v2069
    %v2071 = vadd.f32 %v2060, %v2070
    %2072 = vset.pattern.permute.xlu0 13
    %2073 = vperm.xlu0 %2072, %v469
    %v2074 = vpop.permute.xlu0 %2073
    %v2076 = vlaneseq
    %v2077 = vshrl.u32 %v2076, 7
    %v2078 = vsub.s32 5, %v2077
    %v2079 = vrot.slane %v395, %v2078
    %v2080 = vsub.f32 %v2074, %v2079
    %v2081 = vand.u32 2147483647, %v2080
    %v2082 = vadd.f32 %v2071, %v2081
    %2083 = vset.pattern.permute.xlu0 14
    %2084 = vperm.xlu0 %2083, %v469
    %v2085 = vpop.permute.xlu0 %2084
    %v2087 = vlaneseq
    %v2088 = vshrl.u32 %v2087, 7
    %v2089 = vsub.s32 6, %v2088
    %v2090 = vrot.slane %v395, %v2089
    %v2091 = vsub.f32 %v2085, %v2090
    %v2092 = vand.u32 2147483647, %v2091
    %v2093 = vadd.f32 %v2082, %v2092
    %2094 = vset.pattern.permute.xlu0 15
    %2095 = vperm.xlu0 %2094, %v469
    %v2096 = vpop.permute.xlu0 %2095
    %v2098 = vlaneseq
    %v2099 = vshrl.u32 %v2098, 7
    %v2100 = vsub.s32 7, %v2099
    %v2101 = vrot.slane %v395, %v2100
    %v2102 = vsub.f32 %v2096, %v2101
    %v2103 = vand.u32 2147483647, %v2102
    %v2104 = vadd.f32 %v2093, %v2103
    %v2105 = vsub.f32 0.0, %v2104
    %v2106 = vmul.f32 %v2105, 1.442695
    %v2107 = vpow.pop %v2106
    %v2108 = vsel %vm650, %v2107, 0.0
    %2109 = vadd.xlane.f32.xlu0 %v2108
    %v2110 = vpop.xlane.xlu0 %2109
    %2111 = vset.pattern.permute.xlu0 16
    %2112 = vperm.xlu0 %2111, %v469
    %v2113 = vpop.permute.xlu0 %2112
    %v2115 = vlaneseq
    %v2116 = vshrl.u32 %v2115, 7
    %v2117 = vsub.s32 0, %v2116
    %v2118 = vrot.slane %v400, %v2117
    %v2119 = vsub.f32 %v2113, %v2118
    %v2120 = vand.u32 2147483647, %v2119
    %v2121 = vadd.f32 %v2120, 0.0
    %2122 = vset.pattern.permute.xlu0 17
    %2123 = vperm.xlu0 %2122, %v469
    %v2124 = vpop.permute.xlu0 %2123
    %v2126 = vlaneseq
    %v2127 = vshrl.u32 %v2126, 7
    %v2128 = vsub.s32 1, %v2127
    %v2129 = vrot.slane %v400, %v2128
    %v2130 = vsub.f32 %v2124, %v2129
    %v2131 = vand.u32 2147483647, %v2130
    %v2132 = vadd.f32 %v2121, %v2131
    %2133 = vset.pattern.permute.xlu0 18
    %2134 = vperm.xlu0 %2133, %v469
    %v2135 = vpop.permute.xlu0 %2134
    %v2137 = vlaneseq
    %v2138 = vshrl.u32 %v2137, 7
    %v2139 = vsub.s32 2, %v2138
    %v2140 = vrot.slane %v400, %v2139
    %v2141 = vsub.f32 %v2135, %v2140
    %v2142 = vand.u32 2147483647, %v2141
    %v2143 = vadd.f32 %v2132, %v2142
    %2144 = vset.pattern.permute.xlu0 19
    %2145 = vperm.xlu0 %2144, %v469
    %v2146 = vpop.permute.xlu0 %2145
    %v2148 = vlaneseq
    %v2149 = vshrl.u32 %v2148, 7
    %v2150 = vsub.s32 3, %v2149
    %v2151 = vrot.slane %v400, %v2150
    %v2152 = vsub.f32 %v2146, %v2151
    %v2153 = vand.u32 2147483647, %v2152
    %v2154 = vadd.f32 %v2143, %v2153
    %2155 = vset.pattern.permute.xlu0 20
    %2156 = vperm.xlu0 %2155, %v469
    %v2157 = vpop.permute.xlu0 %2156
    %v2159 = vlaneseq
    %v2160 = vshrl.u32 %v2159, 7
    %v2161 = vsub.s32 4, %v2160
    %v2162 = vrot.slane %v400, %v2161
    %v2163 = vsub.f32 %v2157, %v2162
    %v2164 = vand.u32 2147483647, %v2163
    %v2165 = vadd.f32 %v2154, %v2164
    %2166 = vset.pattern.permute.xlu0 21
    %2167 = vperm.xlu0 %2166, %v469
    %v2168 = vpop.permute.xlu0 %2167
    %v2170 = vlaneseq
    %v2171 = vshrl.u32 %v2170, 7
    %v2172 = vsub.s32 5, %v2171
    %v2173 = vrot.slane %v400, %v2172
    %v2174 = vsub.f32 %v2168, %v2173
    %v2175 = vand.u32 2147483647, %v2174
    %v2176 = vadd.f32 %v2165, %v2175
    %2177 = vset.pattern.permute.xlu0 22
    %2178 = vperm.xlu0 %2177, %v469
    %v2179 = vpop.permute.xlu0 %2178
    %v2181 = vlaneseq
    %v2182 = vshrl.u32 %v2181, 7
    %v2183 = vsub.s32 6, %v2182
    %v2184 = vrot.slane %v400, %v2183
    %v2185 = vsub.f32 %v2179, %v2184
    %v2186 = vand.u32 2147483647, %v2185
    %v2187 = vadd.f32 %v2176, %v2186
    %2188 = vset.pattern.permute.xlu0 23
    %2189 = vperm.xlu0 %2188, %v469
    %v2190 = vpop.permute.xlu0 %2189
    %v2192 = vlaneseq
    %v2193 = vshrl.u32 %v2192, 7
    %v2194 = vsub.s32 7, %v2193
    %v2195 = vrot.slane %v400, %v2194
    %v2196 = vsub.f32 %v2190, %v2195
    %v2197 = vand.u32 2147483647, %v2196
    %v2198 = vadd.f32 %v2187, %v2197
    %2199 = vset.pattern.permute.xlu0 24
    %2200 = vperm.xlu0 %2199, %v469
    %v2201 = vpop.permute.xlu0 %2200
    %v2203 = vlaneseq
    %v2204 = vshrl.u32 %v2203, 7
    %v2205 = vsub.s32 0, %v2204
    %v2206 = vrot.slane %v405, %v2205
    %v2207 = vsub.f32 %v2201, %v2206
    %v2208 = vand.u32 2147483647, %v2207
    %v2209 = vadd.f32 %v2198, %v2208
    %2210 = vset.pattern.permute.xlu0 25
    %2211 = vperm.xlu0 %2210, %v469
    %v2212 = vpop.permute.xlu0 %2211
    %v2214 = vlaneseq
    %v2215 = vshrl.u32 %v2214, 7
    %v2216 = vsub.s32 1, %v2215
    %v2217 = vrot.slane %v405, %v2216
    %v2218 = vsub.f32 %v2212, %v2217
    %v2219 = vand.u32 2147483647, %v2218
    %v2220 = vadd.f32 %v2209, %v2219
    %2221 = vset.pattern.permute.xlu0 26
    %2222 = vperm.xlu0 %2221, %v469
    %v2223 = vpop.permute.xlu0 %2222
    %v2225 = vlaneseq
    %v2226 = vshrl.u32 %v2225, 7
    %v2227 = vsub.s32 2, %v2226
    %v2228 = vrot.slane %v405, %v2227
    %v2229 = vsub.f32 %v2223, %v2228
    %v2230 = vand.u32 2147483647, %v2229
    %v2231 = vadd.f32 %v2220, %v2230
    %2232 = vset.pattern.permute.xlu0 27
    %2233 = vperm.xlu0 %2232, %v469
    %v2234 = vpop.permute.xlu0 %2233
    %v2236 = vlaneseq
    %v2237 = vshrl.u32 %v2236, 7
    %v2238 = vsub.s32 3, %v2237
    %v2239 = vrot.slane %v405, %v2238
    %v2240 = vsub.f32 %v2234, %v2239
    %v2241 = vand.u32 2147483647, %v2240
    %v2242 = vadd.f32 %v2231, %v2241
    %2243 = vset.pattern.permute.xlu0 28
    %2244 = vperm.xlu0 %2243, %v469
    %v2245 = vpop.permute.xlu0 %2244
    %v2247 = vlaneseq
    %v2248 = vshrl.u32 %v2247, 7
    %v2249 = vsub.s32 4, %v2248
    %v2250 = vrot.slane %v405, %v2249
    %v2251 = vsub.f32 %v2245, %v2250
    %v2252 = vand.u32 2147483647, %v2251
    %v2253 = vadd.f32 %v2242, %v2252
    %2254 = vset.pattern.permute.xlu0 29
    %2255 = vperm.xlu0 %2254, %v469
    %v2256 = vpop.permute.xlu0 %2255
    %v2258 = vlaneseq
    %v2259 = vshrl.u32 %v2258, 7
    %v2260 = vsub.s32 5, %v2259
    %v2261 = vrot.slane %v405, %v2260
    %v2262 = vsub.f32 %v2256, %v2261
    %v2263 = vand.u32 2147483647, %v2262
    %v2264 = vadd.f32 %v2253, %v2263
    %2265 = vset.pattern.permute.xlu0 30
    %2266 = vperm.xlu0 %2265, %v469
    %v2267 = vpop.permute.xlu0 %2266
    %v2269 = vlaneseq
    %v2270 = vshrl.u32 %v2269, 7
    %v2271 = vsub.s32 6, %v2270
    %v2272 = vrot.slane %v405, %v2271
    %v2273 = vsub.f32 %v2267, %v2272
    %v2274 = vand.u32 2147483647, %v2273
    %v2275 = vadd.f32 %v2264, %v2274
    %2276 = vset.pattern.permute.xlu0 31
    %2277 = vperm.xlu0 %2276, %v469
    %v2278 = vpop.permute.xlu0 %2277
    %v2280 = vlaneseq
    %v2281 = vshrl.u32 %v2280, 7
    %v2282 = vsub.s32 7, %v2281
    %v2283 = vrot.slane %v405, %v2282
    %v2284 = vsub.f32 %v2278, %v2283
    %v2285 = vand.u32 2147483647, %v2284
    %v2286 = vadd.f32 %v2275, %v2285
    %v2287 = vsub.f32 0.0, %v2286
    %v2288 = vmul.f32 %v2287, 1.442695
    %v2289 = vpow.pop %v2288
    %v2290 = vsel %vm650, %v2289, 0.0
    %2291 = vadd.xlane.f32.xlu0 %v2290
    %v2292 = vpop.xlane.xlu0 %2291
    %2293 = vset.pattern.permute.xlu0 32
    %2294 = vperm.xlu0 %2293, %v469
    %v2295 = vpop.permute.xlu0 %2294
    %v2297 = vlaneseq
    %v2298 = vshrl.u32 %v2297, 7
    %v2299 = vsub.s32 0, %v2298
    %v2300 = vrot.slane %v410, %v2299
    %v2301 = vsub.f32 %v2295, %v2300
    %v2302 = vand.u32 2147483647, %v2301
    %v2303 = vadd.f32 %v2302, 0.0
    %2304 = vset.pattern.permute.xlu0 33
    %2305 = vperm.xlu0 %2304, %v469
    %v2306 = vpop.permute.xlu0 %2305
    %v2308 = vlaneseq
    %v2309 = vshrl.u32 %v2308, 7
    %v2310 = vsub.s32 1, %v2309
    %v2311 = vrot.slane %v410, %v2310
    %v2312 = vsub.f32 %v2306, %v2311
    %v2313 = vand.u32 2147483647, %v2312
    %v2314 = vadd.f32 %v2303, %v2313
    %2315 = vset.pattern.permute.xlu0 34
    %2316 = vperm.xlu0 %2315, %v469
    %v2317 = vpop.permute.xlu0 %2316
    %v2319 = vlaneseq
    %v2320 = vshrl.u32 %v2319, 7
    %v2321 = vsub.s32 2, %v2320
    %v2322 = vrot.slane %v410, %v2321
    %v2323 = vsub.f32 %v2317, %v2322
    %v2324 = vand.u32 2147483647, %v2323
    %v2325 = vadd.f32 %v2314, %v2324
    %2326 = vset.pattern.permute.xlu0 35
    %2327 = vperm.xlu0 %2326, %v469
    %v2328 = vpop.permute.xlu0 %2327
    %v2330 = vlaneseq
    %v2331 = vshrl.u32 %v2330, 7
    %v2332 = vsub.s32 3, %v2331
    %v2333 = vrot.slane %v410, %v2332
    %v2334 = vsub.f32 %v2328, %v2333
    %v2335 = vand.u32 2147483647, %v2334
    %v2336 = vadd.f32 %v2325, %v2335
    %2337 = vset.pattern.permute.xlu0 36
    %2338 = vperm.xlu0 %2337, %v469
    %v2339 = vpop.permute.xlu0 %2338
    %v2341 = vlaneseq
    %v2342 = vshrl.u32 %v2341, 7
    %v2343 = vsub.s32 4, %v2342
    %v2344 = vrot.slane %v410, %v2343
    %v2345 = vsub.f32 %v2339, %v2344
    %v2346 = vand.u32 2147483647, %v2345
    %v2347 = vadd.f32 %v2336, %v2346
    %2348 = vset.pattern.permute.xlu0 37
    %2349 = vperm.xlu0 %2348, %v469
    %v2350 = vpop.permute.xlu0 %2349
    %v2352 = vlaneseq
    %v2353 = vshrl.u32 %v2352, 7
    %v2354 = vsub.s32 5, %v2353
    %v2355 = vrot.slane %v410, %v2354
    %v2356 = vsub.f32 %v2350, %v2355
    %v2357 = vand.u32 2147483647, %v2356
    %v2358 = vadd.f32 %v2347, %v2357
    %2359 = vset.pattern.permute.xlu0 38
    %2360 = vperm.xlu0 %2359, %v469
    %v2361 = vpop.permute.xlu0 %2360
    %v2363 = vlaneseq
    %v2364 = vshrl.u32 %v2363, 7
    %v2365 = vsub.s32 6, %v2364
    %v2366 = vrot.slane %v410, %v2365
    %v2367 = vsub.f32 %v2361, %v2366
    %v2368 = vand.u32 2147483647, %v2367
    %v2369 = vadd.f32 %v2358, %v2368
    %2370 = vset.pattern.permute.xlu0 39
    %2371 = vperm.xlu0 %2370, %v469
    %v2372 = vpop.permute.xlu0 %2371
    %v2374 = vlaneseq
    %v2375 = vshrl.u32 %v2374, 7
    %v2376 = vsub.s32 7, %v2375
    %v2377 = vrot.slane %v410, %v2376
    %v2378 = vsub.f32 %v2372, %v2377
    %v2379 = vand.u32 2147483647, %v2378
    %v2380 = vadd.f32 %v2369, %v2379
    %2381 = vset.pattern.permute.xlu0 40
    %2382 = vperm.xlu0 %2381, %v469
    %v2383 = vpop.permute.xlu0 %2382
    %v2385 = vlaneseq
    %v2386 = vshrl.u32 %v2385, 7
    %v2387 = vsub.s32 0, %v2386
    %v2388 = vrot.slane %v415, %v2387
    %v2389 = vsub.f32 %v2383, %v2388
    %v2390 = vand.u32 2147483647, %v2389
    %v2391 = vadd.f32 %v2380, %v2390
    %2392 = vset.pattern.permute.xlu0 41
    %2393 = vperm.xlu0 %2392, %v469
    %v2394 = vpop.permute.xlu0 %2393
    %v2396 = vlaneseq
    %v2397 = vshrl.u32 %v2396, 7
    %v2398 = vsub.s32 1, %v2397
    %v2399 = vrot.slane %v415, %v2398
    %v2400 = vsub.f32 %v2394, %v2399
    %v2401 = vand.u32 2147483647, %v2400
    %v2402 = vadd.f32 %v2391, %v2401
    %2403 = vset.pattern.permute.xlu0 42
    %2404 = vperm.xlu0 %2403, %v469
    %v2405 = vpop.permute.xlu0 %2404
    %v2407 = vlaneseq
    %v2408 = vshrl.u32 %v2407, 7
    %v2409 = vsub.s32 2, %v2408
    %v2410 = vrot.slane %v415, %v2409
    %v2411 = vsub.f32 %v2405, %v2410
    %v2412 = vand.u32 2147483647, %v2411
    %v2413 = vadd.f32 %v2402, %v2412
    %2414 = vset.pattern.permute.xlu0 43
    %2415 = vperm.xlu0 %2414, %v469
    %v2416 = vpop.permute.xlu0 %2415
    %v2418 = vlaneseq
    %v2419 = vshrl.u32 %v2418, 7
    %v2420 = vsub.s32 3, %v2419
    %v2421 = vrot.slane %v415, %v2420
    %v2422 = vsub.f32 %v2416, %v2421
    %v2423 = vand.u32 2147483647, %v2422
    %v2424 = vadd.f32 %v2413, %v2423
    %2425 = vset.pattern.permute.xlu0 44
    %2426 = vperm.xlu0 %2425, %v469
    %v2427 = vpop.permute.xlu0 %2426
    %v2429 = vlaneseq
    %v2430 = vshrl.u32 %v2429, 7
    %v2431 = vsub.s32 4, %v2430
    %v2432 = vrot.slane %v415, %v2431
    %v2433 = vsub.f32 %v2427, %v2432
    %v2434 = vand.u32 2147483647, %v2433
    %v2435 = vadd.f32 %v2424, %v2434
    %2436 = vset.pattern.permute.xlu0 45
    %2437 = vperm.xlu0 %2436, %v469
    %v2438 = vpop.permute.xlu0 %2437
    %v2440 = vlaneseq
    %v2441 = vshrl.u32 %v2440, 7
    %v2442 = vsub.s32 5, %v2441
    %v2443 = vrot.slane %v415, %v2442
    %v2444 = vsub.f32 %v2438, %v2443
    %v2445 = vand.u32 2147483647, %v2444
    %v2446 = vadd.f32 %v2435, %v2445
    %2447 = vset.pattern.permute.xlu0 46
    %2448 = vperm.xlu0 %2447, %v469
    %v2449 = vpop.permute.xlu0 %2448
    %v2451 = vlaneseq
    %v2452 = vshrl.u32 %v2451, 7
    %v2453 = vsub.s32 6, %v2452
    %v2454 = vrot.slane %v415, %v2453
    %v2455 = vsub.f32 %v2449, %v2454
    %v2456 = vand.u32 2147483647, %v2455
    %v2457 = vadd.f32 %v2446, %v2456
    %2458 = vset.pattern.permute.xlu0 47
    %2459 = vperm.xlu0 %2458, %v469
    %v2460 = vpop.permute.xlu0 %2459
    %v2462 = vlaneseq
    %v2463 = vshrl.u32 %v2462, 7
    %v2464 = vsub.s32 7, %v2463
    %v2465 = vrot.slane %v415, %v2464
    %v2466 = vsub.f32 %v2460, %v2465
    %v2467 = vand.u32 2147483647, %v2466
    %v2468 = vadd.f32 %v2457, %v2467
    %v2469 = vsub.f32 0.0, %v2468
    %v2470 = vmul.f32 %v2469, 1.442695
    %v2471 = vpow.pop %v2470
    %v2472 = vsel %vm650, %v2471, 0.0
    %2473 = vadd.xlane.f32.xlu0 %v2472
    %v2474 = vpop.xlane.xlu0 %2473
    %2475 = vset.pattern.permute.xlu0 48
    %2476 = vperm.xlu0 %2475, %v469
    %v2477 = vpop.permute.xlu0 %2476
    %v2479 = vlaneseq
    %v2480 = vshrl.u32 %v2479, 7
    %v2481 = vsub.s32 0, %v2480
    %v2482 = vrot.slane %v420, %v2481
    %v2483 = vsub.f32 %v2477, %v2482
    %v2484 = vand.u32 2147483647, %v2483
    %v2485 = vadd.f32 %v2484, 0.0
    %2486 = vset.pattern.permute.xlu0 49
    %2487 = vperm.xlu0 %2486, %v469
    %v2488 = vpop.permute.xlu0 %2487
    %v2490 = vlaneseq
    %v2491 = vshrl.u32 %v2490, 7
    %v2492 = vsub.s32 1, %v2491
    %v2493 = vrot.slane %v420, %v2492
    %v2494 = vsub.f32 %v2488, %v2493
    %v2495 = vand.u32 2147483647, %v2494
    %v2496 = vadd.f32 %v2485, %v2495
    %2497 = vset.pattern.permute.xlu0 50
    %2498 = vperm.xlu0 %2497, %v469
    %v2499 = vpop.permute.xlu0 %2498
    %v2501 = vlaneseq
    %v2502 = vshrl.u32 %v2501, 7
    %v2503 = vsub.s32 2, %v2502
    %v2504 = vrot.slane %v420, %v2503
    %v2505 = vsub.f32 %v2499, %v2504
    %v2506 = vand.u32 2147483647, %v2505
    %v2507 = vadd.f32 %v2496, %v2506
    %2508 = vset.pattern.permute.xlu0 51
    %2509 = vperm.xlu0 %2508, %v469
    %v2510 = vpop.permute.xlu0 %2509
    %v2512 = vlaneseq
    %v2513 = vshrl.u32 %v2512, 7
    %v2514 = vsub.s32 3, %v2513
    %v2515 = vrot.slane %v420, %v2514
    %v2516 = vsub.f32 %v2510, %v2515
    %v2517 = vand.u32 2147483647, %v2516
    %v2518 = vadd.f32 %v2507, %v2517
    %2519 = vset.pattern.permute.xlu0 52
    %2520 = vperm.xlu0 %2519, %v469
    %v2521 = vpop.permute.xlu0 %2520
    %v2523 = vlaneseq
    %v2524 = vshrl.u32 %v2523, 7
    %v2525 = vsub.s32 4, %v2524
    %v2526 = vrot.slane %v420, %v2525
    %v2527 = vsub.f32 %v2521, %v2526
    %v2528 = vand.u32 2147483647, %v2527
    %v2529 = vadd.f32 %v2518, %v2528
    %2530 = vset.pattern.permute.xlu0 53
    %2531 = vperm.xlu0 %2530, %v469
    %v2532 = vpop.permute.xlu0 %2531
    %v2534 = vlaneseq
    %v2535 = vshrl.u32 %v2534, 7
    %v2536 = vsub.s32 5, %v2535
    %v2537 = vrot.slane %v420, %v2536
    %v2538 = vsub.f32 %v2532, %v2537
    %v2539 = vand.u32 2147483647, %v2538
    %v2540 = vadd.f32 %v2529, %v2539
    %2541 = vset.pattern.permute.xlu0 54
    %2542 = vperm.xlu0 %2541, %v469
    %v2543 = vpop.permute.xlu0 %2542
    %v2545 = vlaneseq
    %v2546 = vshrl.u32 %v2545, 7
    %v2547 = vsub.s32 6, %v2546
    %v2548 = vrot.slane %v420, %v2547
    %v2549 = vsub.f32 %v2543, %v2548
    %v2550 = vand.u32 2147483647, %v2549
    %v2551 = vadd.f32 %v2540, %v2550
    %2552 = vset.pattern.permute.xlu0 55
    %2553 = vperm.xlu0 %2552, %v469
    %v2554 = vpop.permute.xlu0 %2553
    %v2556 = vlaneseq
    %v2557 = vshrl.u32 %v2556, 7
    %v2558 = vsub.s32 7, %v2557
    %v2559 = vrot.slane %v420, %v2558
    %v2560 = vsub.f32 %v2554, %v2559
    %v2561 = vand.u32 2147483647, %v2560
    %v2562 = vadd.f32 %v2551, %v2561
    %2563 = vset.pattern.permute.xlu0 56
    %2564 = vperm.xlu0 %2563, %v469
    %v2565 = vpop.permute.xlu0 %2564
    %v2567 = vlaneseq
    %v2568 = vshrl.u32 %v2567, 7
    %v2569 = vsub.s32 0, %v2568
    %v2570 = vrot.slane %v425, %v2569
    %v2571 = vsub.f32 %v2565, %v2570
    %v2572 = vand.u32 2147483647, %v2571
    %v2573 = vadd.f32 %v2562, %v2572
    %2574 = vset.pattern.permute.xlu0 57
    %2575 = vperm.xlu0 %2574, %v469
    %v2576 = vpop.permute.xlu0 %2575
    %v2578 = vlaneseq
    %v2579 = vshrl.u32 %v2578, 7
    %v2580 = vsub.s32 1, %v2579
    %v2581 = vrot.slane %v425, %v2580
    %v2582 = vsub.f32 %v2576, %v2581
    %v2583 = vand.u32 2147483647, %v2582
    %v2584 = vadd.f32 %v2573, %v2583
    %2585 = vset.pattern.permute.xlu0 58
    %2586 = vperm.xlu0 %2585, %v469
    %v2587 = vpop.permute.xlu0 %2586
    %v2589 = vlaneseq
    %v2590 = vshrl.u32 %v2589, 7
    %v2591 = vsub.s32 2, %v2590
    %v2592 = vrot.slane %v425, %v2591
    %v2593 = vsub.f32 %v2587, %v2592
    %v2594 = vand.u32 2147483647, %v2593
    %v2595 = vadd.f32 %v2584, %v2594
    %2596 = vset.pattern.permute.xlu0 59
    %2597 = vperm.xlu0 %2596, %v469
    %v2598 = vpop.permute.xlu0 %2597
    %v2600 = vlaneseq
    %v2601 = vshrl.u32 %v2600, 7
    %v2602 = vsub.s32 3, %v2601
    %v2603 = vrot.slane %v425, %v2602
    %v2604 = vsub.f32 %v2598, %v2603
    %v2605 = vand.u32 2147483647, %v2604
    %v2606 = vadd.f32 %v2595, %v2605
    %2607 = vset.pattern.permute.xlu0 60
    %2608 = vperm.xlu0 %2607, %v469
    %v2609 = vpop.permute.xlu0 %2608
    %v2611 = vlaneseq
    %v2612 = vshrl.u32 %v2611, 7
    %v2613 = vsub.s32 4, %v2612
    %v2614 = vrot.slane %v425, %v2613
    %v2615 = vsub.f32 %v2609, %v2614
    %v2616 = vand.u32 2147483647, %v2615
    %v2617 = vadd.f32 %v2606, %v2616
    %2618 = vset.pattern.permute.xlu0 61
    %2619 = vperm.xlu0 %2618, %v469
    %v2620 = vpop.permute.xlu0 %2619
    %v2622 = vlaneseq
    %v2623 = vshrl.u32 %v2622, 7
    %v2624 = vsub.s32 5, %v2623
    %v2625 = vrot.slane %v425, %v2624
    %v2626 = vsub.f32 %v2620, %v2625
    %v2627 = vand.u32 2147483647, %v2626
    %v2628 = vadd.f32 %v2617, %v2627
    %2629 = vset.pattern.permute.xlu0 62
    %2630 = vperm.xlu0 %2629, %v469
    %v2631 = vpop.permute.xlu0 %2630
    %v2633 = vlaneseq
    %v2634 = vshrl.u32 %v2633, 7
    %v2635 = vsub.s32 6, %v2634
    %v2636 = vrot.slane %v425, %v2635
    %v2637 = vsub.f32 %v2631, %v2636
    %v2638 = vand.u32 2147483647, %v2637
    %v2639 = vadd.f32 %v2628, %v2638
    %2640 = vset.pattern.permute.xlu0 63
    %2641 = vperm.xlu0 %2640, %v469
    %v2642 = vpop.permute.xlu0 %2641
    %v2644 = vlaneseq
    %v2645 = vshrl.u32 %v2644, 7
    %v2646 = vsub.s32 7, %v2645
    %v2647 = vrot.slane %v425, %v2646
    %v2648 = vsub.f32 %v2642, %v2647
    %v2649 = vand.u32 2147483647, %v2648
    %v2650 = vadd.f32 %v2639, %v2649
    %v2651 = vsub.f32 0.0, %v2650
    %v2652 = vmul.f32 %v2651, 1.442695
    %v2653 = vpow.pop %v2652
    %v2654 = vsel %vm650, %v2653, 0.0
    %2655 = vadd.xlane.f32.xlu0 %v2654
    %v2656 = vpop.xlane.xlu0 %2655
    %2657 = vset.pattern.permute.xlu0 64
    %2658 = vperm.xlu0 %2657, %v469
    %v2659 = vpop.permute.xlu0 %2658
    %v2661 = vlaneseq
    %v2662 = vshrl.u32 %v2661, 7
    %v2663 = vsub.s32 0, %v2662
    %v2664 = vrot.slane %v430, %v2663
    %v2665 = vsub.f32 %v2659, %v2664
    %v2666 = vand.u32 2147483647, %v2665
    %v2667 = vadd.f32 %v2666, 0.0
    %2668 = vset.pattern.permute.xlu0 65
    %2669 = vperm.xlu0 %2668, %v469
    %v2670 = vpop.permute.xlu0 %2669
    %v2672 = vlaneseq
    %v2673 = vshrl.u32 %v2672, 7
    %v2674 = vsub.s32 1, %v2673
    %v2675 = vrot.slane %v430, %v2674
    %v2676 = vsub.f32 %v2670, %v2675
    %v2677 = vand.u32 2147483647, %v2676
    %v2678 = vadd.f32 %v2667, %v2677
    %2679 = vset.pattern.permute.xlu0 66
    %2680 = vperm.xlu0 %2679, %v469
    %v2681 = vpop.permute.xlu0 %2680
    %v2683 = vlaneseq
    %v2684 = vshrl.u32 %v2683, 7
    %v2685 = vsub.s32 2, %v2684
    %v2686 = vrot.slane %v430, %v2685
    %v2687 = vsub.f32 %v2681, %v2686
    %v2688 = vand.u32 2147483647, %v2687
    %v2689 = vadd.f32 %v2678, %v2688
    %2690 = vset.pattern.permute.xlu0 67
    %2691 = vperm.xlu0 %2690, %v469
    %v2692 = vpop.permute.xlu0 %2691
    %v2694 = vlaneseq
    %v2695 = vshrl.u32 %v2694, 7
    %v2696 = vsub.s32 3, %v2695
    %v2697 = vrot.slane %v430, %v2696
    %v2698 = vsub.f32 %v2692, %v2697
    %v2699 = vand.u32 2147483647, %v2698
    %v2700 = vadd.f32 %v2689, %v2699
    %2701 = vset.pattern.permute.xlu0 68
    %2702 = vperm.xlu0 %2701, %v469
    %v2703 = vpop.permute.xlu0 %2702
    %v2705 = vlaneseq
    %v2706 = vshrl.u32 %v2705, 7
    %v2707 = vsub.s32 4, %v2706
    %v2708 = vrot.slane %v430, %v2707
    %v2709 = vsub.f32 %v2703, %v2708
    %v2710 = vand.u32 2147483647, %v2709
    %v2711 = vadd.f32 %v2700, %v2710
    %2712 = vset.pattern.permute.xlu0 69
    %2713 = vperm.xlu0 %2712, %v469
    %v2714 = vpop.permute.xlu0 %2713
    %v2716 = vlaneseq
    %v2717 = vshrl.u32 %v2716, 7
    %v2718 = vsub.s32 5, %v2717
    %v2719 = vrot.slane %v430, %v2718
    %v2720 = vsub.f32 %v2714, %v2719
    %v2721 = vand.u32 2147483647, %v2720
    %v2722 = vadd.f32 %v2711, %v2721
    %2723 = vset.pattern.permute.xlu0 70
    %2724 = vperm.xlu0 %2723, %v469
    %v2725 = vpop.permute.xlu0 %2724
    %v2727 = vlaneseq
    %v2728 = vshrl.u32 %v2727, 7
    %v2729 = vsub.s32 6, %v2728
    %v2730 = vrot.slane %v430, %v2729
    %v2731 = vsub.f32 %v2725, %v2730
    %v2732 = vand.u32 2147483647, %v2731
    %v2733 = vadd.f32 %v2722, %v2732
    %2734 = vset.pattern.permute.xlu0 71
    %2735 = vperm.xlu0 %2734, %v469
    %v2736 = vpop.permute.xlu0 %2735
    %v2738 = vlaneseq
    %v2739 = vshrl.u32 %v2738, 7
    %v2740 = vsub.s32 7, %v2739
    %v2741 = vrot.slane %v430, %v2740
    %v2742 = vsub.f32 %v2736, %v2741
    %v2743 = vand.u32 2147483647, %v2742
    %v2744 = vadd.f32 %v2733, %v2743
    %2745 = vset.pattern.permute.xlu0 72
    %2746 = vperm.xlu0 %2745, %v469
    %v2747 = vpop.permute.xlu0 %2746
    %v2749 = vlaneseq
    %v2750 = vshrl.u32 %v2749, 7
    %v2751 = vsub.s32 0, %v2750
    %v2752 = vrot.slane %v435, %v2751
    %v2753 = vsub.f32 %v2747, %v2752
    %v2754 = vand.u32 2147483647, %v2753
    %v2755 = vadd.f32 %v2744, %v2754
    %2756 = vset.pattern.permute.xlu0 73
    %2757 = vperm.xlu0 %2756, %v469
    %v2758 = vpop.permute.xlu0 %2757
    %v2760 = vlaneseq
    %v2761 = vshrl.u32 %v2760, 7
    %v2762 = vsub.s32 1, %v2761
    %v2763 = vrot.slane %v435, %v2762
    %v2764 = vsub.f32 %v2758, %v2763
    %v2765 = vand.u32 2147483647, %v2764
    %v2766 = vadd.f32 %v2755, %v2765
    %2767 = vset.pattern.permute.xlu0 74
    %2768 = vperm.xlu0 %2767, %v469
    %v2769 = vpop.permute.xlu0 %2768
    %v2771 = vlaneseq
    %v2772 = vshrl.u32 %v2771, 7
    %v2773 = vsub.s32 2, %v2772
    %v2774 = vrot.slane %v435, %v2773
    %v2775 = vsub.f32 %v2769, %v2774
    %v2776 = vand.u32 2147483647, %v2775
    %v2777 = vadd.f32 %v2766, %v2776
    %2778 = vset.pattern.permute.xlu0 75
    %2779 = vperm.xlu0 %2778, %v469
    %v2780 = vpop.permute.xlu0 %2779
    %v2782 = vlaneseq
    %v2783 = vshrl.u32 %v2782, 7
    %v2784 = vsub.s32 3, %v2783
    %v2785 = vrot.slane %v435, %v2784
    %v2786 = vsub.f32 %v2780, %v2785
    %v2787 = vand.u32 2147483647, %v2786
    %v2788 = vadd.f32 %v2777, %v2787
    %2789 = vset.pattern.permute.xlu0 76
    %2790 = vperm.xlu0 %2789, %v469
    %v2791 = vpop.permute.xlu0 %2790
    %v2793 = vlaneseq
    %v2794 = vshrl.u32 %v2793, 7
    %v2795 = vsub.s32 4, %v2794
    %v2796 = vrot.slane %v435, %v2795
    %v2797 = vsub.f32 %v2791, %v2796
    %v2798 = vand.u32 2147483647, %v2797
    %v2799 = vadd.f32 %v2788, %v2798
    %2800 = vset.pattern.permute.xlu0 77
    %2801 = vperm.xlu0 %2800, %v469
    %v2802 = vpop.permute.xlu0 %2801
    %v2804 = vlaneseq
    %v2805 = vshrl.u32 %v2804, 7
    %v2806 = vsub.s32 5, %v2805
    %v2807 = vrot.slane %v435, %v2806
    %v2808 = vsub.f32 %v2802, %v2807
    %v2809 = vand.u32 2147483647, %v2808
    %v2810 = vadd.f32 %v2799, %v2809
    %2811 = vset.pattern.permute.xlu0 78
    %2812 = vperm.xlu0 %2811, %v469
    %v2813 = vpop.permute.xlu0 %2812
    %v2815 = vlaneseq
    %v2816 = vshrl.u32 %v2815, 7
    %v2817 = vsub.s32 6, %v2816
    %v2818 = vrot.slane %v435, %v2817
    %v2819 = vsub.f32 %v2813, %v2818
    %v2820 = vand.u32 2147483647, %v2819
    %v2821 = vadd.f32 %v2810, %v2820
    %2822 = vset.pattern.permute.xlu0 79
    %2823 = vperm.xlu0 %2822, %v469
    %v2824 = vpop.permute.xlu0 %2823
    %v2826 = vlaneseq
    %v2827 = vshrl.u32 %v2826, 7
    %v2828 = vsub.s32 7, %v2827
    %v2829 = vrot.slane %v435, %v2828
    %v2830 = vsub.f32 %v2824, %v2829
    %v2831 = vand.u32 2147483647, %v2830
    %v2832 = vadd.f32 %v2821, %v2831
    %v2833 = vsub.f32 0.0, %v2832
    %v2834 = vmul.f32 %v2833, 1.442695
    %v2835 = vpow.pop %v2834
    %v2836 = vsel %vm650, %v2835, 0.0
    %2837 = vadd.xlane.f32.xlu0 %v2836
    %v2838 = vpop.xlane.xlu0 %2837
    %2839 = vset.pattern.permute.xlu0 80
    %2840 = vperm.xlu0 %2839, %v469
    %v2841 = vpop.permute.xlu0 %2840
    %v2843 = vlaneseq
    %v2844 = vshrl.u32 %v2843, 7
    %v2845 = vsub.s32 0, %v2844
    %v2846 = vrot.slane %v440, %v2845
    %v2847 = vsub.f32 %v2841, %v2846
    %v2848 = vand.u32 2147483647, %v2847
    %v2849 = vadd.f32 %v2848, 0.0
    %2850 = vset.pattern.permute.xlu0 81
    %2851 = vperm.xlu0 %2850, %v469
    %v2852 = vpop.permute.xlu0 %2851
    %v2854 = vlaneseq
    %v2855 = vshrl.u32 %v2854, 7
    %v2856 = vsub.s32 1, %v2855
    %v2857 = vrot.slane %v440, %v2856
    %v2858 = vsub.f32 %v2852, %v2857
    %v2859 = vand.u32 2147483647, %v2858
    %v2860 = vadd.f32 %v2849, %v2859
    %2861 = vset.pattern.permute.xlu0 82
    %2862 = vperm.xlu0 %2861, %v469
    %v2863 = vpop.permute.xlu0 %2862
    %v2865 = vlaneseq
    %v2866 = vshrl.u32 %v2865, 7
    %v2867 = vsub.s32 2, %v2866
    %v2868 = vrot.slane %v440, %v2867
    %v2869 = vsub.f32 %v2863, %v2868
    %v2870 = vand.u32 2147483647, %v2869
    %v2871 = vadd.f32 %v2860, %v2870
    %2872 = vset.pattern.permute.xlu0 83
    %2873 = vperm.xlu0 %2872, %v469
    %v2874 = vpop.permute.xlu0 %2873
    %v2876 = vlaneseq
    %v2877 = vshrl.u32 %v2876, 7
    %v2878 = vsub.s32 3, %v2877
    %v2879 = vrot.slane %v440, %v2878
    %v2880 = vsub.f32 %v2874, %v2879
    %v2881 = vand.u32 2147483647, %v2880
    %v2882 = vadd.f32 %v2871, %v2881
    %2883 = vset.pattern.permute.xlu0 84
    %2884 = vperm.xlu0 %2883, %v469
    %v2885 = vpop.permute.xlu0 %2884
    %v2887 = vlaneseq
    %v2888 = vshrl.u32 %v2887, 7
    %v2889 = vsub.s32 4, %v2888
    %v2890 = vrot.slane %v440, %v2889
    %v2891 = vsub.f32 %v2885, %v2890
    %v2892 = vand.u32 2147483647, %v2891
    %v2893 = vadd.f32 %v2882, %v2892
    %2894 = vset.pattern.permute.xlu0 85
    %2895 = vperm.xlu0 %2894, %v469
    %v2896 = vpop.permute.xlu0 %2895
    %v2898 = vlaneseq
    %v2899 = vshrl.u32 %v2898, 7
    %v2900 = vsub.s32 5, %v2899
    %v2901 = vrot.slane %v440, %v2900
    %v2902 = vsub.f32 %v2896, %v2901
    %v2903 = vand.u32 2147483647, %v2902
    %v2904 = vadd.f32 %v2893, %v2903
    %2905 = vset.pattern.permute.xlu0 86
    %2906 = vperm.xlu0 %2905, %v469
    %v2907 = vpop.permute.xlu0 %2906
    %v2909 = vlaneseq
    %v2910 = vshrl.u32 %v2909, 7
    %v2911 = vsub.s32 6, %v2910
    %v2912 = vrot.slane %v440, %v2911
    %v2913 = vsub.f32 %v2907, %v2912
    %v2914 = vand.u32 2147483647, %v2913
    %v2915 = vadd.f32 %v2904, %v2914
    %2916 = vset.pattern.permute.xlu0 87
    %2917 = vperm.xlu0 %2916, %v469
    %v2918 = vpop.permute.xlu0 %2917
    %v2920 = vlaneseq
    %v2921 = vshrl.u32 %v2920, 7
    %v2922 = vsub.s32 7, %v2921
    %v2923 = vrot.slane %v440, %v2922
    %v2924 = vsub.f32 %v2918, %v2923
    %v2925 = vand.u32 2147483647, %v2924
    %v2926 = vadd.f32 %v2915, %v2925
    %2927 = vset.pattern.permute.xlu0 88
    %2928 = vperm.xlu0 %2927, %v469
    %v2929 = vpop.permute.xlu0 %2928
    %v2931 = vlaneseq
    %v2932 = vshrl.u32 %v2931, 7
    %v2933 = vsub.s32 0, %v2932
    %v2934 = vrot.slane %v445, %v2933
    %v2935 = vsub.f32 %v2929, %v2934
    %v2936 = vand.u32 2147483647, %v2935
    %v2937 = vadd.f32 %v2926, %v2936
    %2938 = vset.pattern.permute.xlu0 89
    %2939 = vperm.xlu0 %2938, %v469
    %v2940 = vpop.permute.xlu0 %2939
    %v2942 = vlaneseq
    %v2943 = vshrl.u32 %v2942, 7
    %v2944 = vsub.s32 1, %v2943
    %v2945 = vrot.slane %v445, %v2944
    %v2946 = vsub.f32 %v2940, %v2945
    %v2947 = vand.u32 2147483647, %v2946
    %v2948 = vadd.f32 %v2937, %v2947
    %2949 = vset.pattern.permute.xlu0 90
    %2950 = vperm.xlu0 %2949, %v469
    %v2951 = vpop.permute.xlu0 %2950
    %v2953 = vlaneseq
    %v2954 = vshrl.u32 %v2953, 7
    %v2955 = vsub.s32 2, %v2954
    %v2956 = vrot.slane %v445, %v2955
    %v2957 = vsub.f32 %v2951, %v2956
    %v2958 = vand.u32 2147483647, %v2957
    %v2959 = vadd.f32 %v2948, %v2958
    %2960 = vset.pattern.permute.xlu0 91
    %2961 = vperm.xlu0 %2960, %v469
    %v2962 = vpop.permute.xlu0 %2961
    %v2964 = vlaneseq
    %v2965 = vshrl.u32 %v2964, 7
    %v2966 = vsub.s32 3, %v2965
    %v2967 = vrot.slane %v445, %v2966
    %v2968 = vsub.f32 %v2962, %v2967
    %v2969 = vand.u32 2147483647, %v2968
    %v2970 = vadd.f32 %v2959, %v2969
    %2971 = vset.pattern.permute.xlu0 92
    %2972 = vperm.xlu0 %2971, %v469
    %v2973 = vpop.permute.xlu0 %2972
    %v2975 = vlaneseq
    %v2976 = vshrl.u32 %v2975, 7
    %v2977 = vsub.s32 4, %v2976
    %v2978 = vrot.slane %v445, %v2977
    %v2979 = vsub.f32 %v2973, %v2978
    %v2980 = vand.u32 2147483647, %v2979
    %v2981 = vadd.f32 %v2970, %v2980
    %2982 = vset.pattern.permute.xlu0 93
    %2983 = vperm.xlu0 %2982, %v469
    %v2984 = vpop.permute.xlu0 %2983
    %v2986 = vlaneseq
    %v2987 = vshrl.u32 %v2986, 7
    %v2988 = vsub.s32 5, %v2987
    %v2989 = vrot.slane %v445, %v2988
    %v2990 = vsub.f32 %v2984, %v2989
    %v2991 = vand.u32 2147483647, %v2990
    %v2992 = vadd.f32 %v2981, %v2991
    %2993 = vset.pattern.permute.xlu0 94
    %2994 = vperm.xlu0 %2993, %v469
    %v2995 = vpop.permute.xlu0 %2994
    %v2997 = vlaneseq
    %v2998 = vshrl.u32 %v2997, 7
    %v2999 = vsub.s32 6, %v2998
    %v3000 = vrot.slane %v445, %v2999
    %v3001 = vsub.f32 %v2995, %v3000
    %v3002 = vand.u32 2147483647, %v3001
    %v3003 = vadd.f32 %v2992, %v3002
    %3004 = vset.pattern.permute.xlu0 95
    %3005 = vperm.xlu0 %3004, %v469
    %v3006 = vpop.permute.xlu0 %3005
    %v3008 = vlaneseq
    %v3009 = vshrl.u32 %v3008, 7
    %v3010 = vsub.s32 7, %v3009
    %v3011 = vrot.slane %v445, %v3010
    %v3012 = vsub.f32 %v3006, %v3011
    %v3013 = vand.u32 2147483647, %v3012
    %v3014 = vadd.f32 %v3003, %v3013
    %v3015 = vsub.f32 0.0, %v3014
    %v3016 = vmul.f32 %v3015, 1.442695
    %v3017 = vpow.pop %v3016
    %v3018 = vsel %vm650, %v3017, 0.0
    %3019 = vadd.xlane.f32.xlu0 %v3018
    %v3020 = vpop.xlane.xlu0 %3019
    %3021 = vset.pattern.permute.xlu0 96
    %3022 = vperm.xlu0 %3021, %v469
    %v3023 = vpop.permute.xlu0 %3022
    %v3025 = vlaneseq
    %v3026 = vshrl.u32 %v3025, 7
    %v3027 = vsub.s32 0, %v3026
    %v3028 = vrot.slane %v450, %v3027
    %v3029 = vsub.f32 %v3023, %v3028
    %v3030 = vand.u32 2147483647, %v3029
    %v3031 = vadd.f32 %v3030, 0.0
    %3032 = vset.pattern.permute.xlu0 97
    %3033 = vperm.xlu0 %3032, %v469
    %v3034 = vpop.permute.xlu0 %3033
    %v3036 = vlaneseq
    %v3037 = vshrl.u32 %v3036, 7
    %v3038 = vsub.s32 1, %v3037
    %v3039 = vrot.slane %v450, %v3038
    %v3040 = vsub.f32 %v3034, %v3039
    %v3041 = vand.u32 2147483647, %v3040
    %v3042 = vadd.f32 %v3031, %v3041
    %3043 = vset.pattern.permute.xlu0 98
    %3044 = vperm.xlu0 %3043, %v469
    %v3045 = vpop.permute.xlu0 %3044
    %v3047 = vlaneseq
    %v3048 = vshrl.u32 %v3047, 7
    %v3049 = vsub.s32 2, %v3048
    %v3050 = vrot.slane %v450, %v3049
    %v3051 = vsub.f32 %v3045, %v3050
    %v3052 = vand.u32 2147483647, %v3051
    %v3053 = vadd.f32 %v3042, %v3052
    %3054 = vset.pattern.permute.xlu0 99
    %3055 = vperm.xlu0 %3054, %v469
    %v3056 = vpop.permute.xlu0 %3055
    %v3058 = vlaneseq
    %v3059 = vshrl.u32 %v3058, 7
    %v3060 = vsub.s32 3, %v3059
    %v3061 = vrot.slane %v450, %v3060
    %v3062 = vsub.f32 %v3056, %v3061
    %v3063 = vand.u32 2147483647, %v3062
    %v3064 = vadd.f32 %v3053, %v3063
    %3065 = vset.pattern.permute.xlu0 100
    %3066 = vperm.xlu0 %3065, %v469
    %v3067 = vpop.permute.xlu0 %3066
    %v3069 = vlaneseq
    %v3070 = vshrl.u32 %v3069, 7
    %v3071 = vsub.s32 4, %v3070
    %v3072 = vrot.slane %v450, %v3071
    %v3073 = vsub.f32 %v3067, %v3072
    %v3074 = vand.u32 2147483647, %v3073
    %v3075 = vadd.f32 %v3064, %v3074
    %3076 = vset.pattern.permute.xlu0 101
    %3077 = vperm.xlu0 %3076, %v469
    %v3078 = vpop.permute.xlu0 %3077
    %v3080 = vlaneseq
    %v3081 = vshrl.u32 %v3080, 7
    %v3082 = vsub.s32 5, %v3081
    %v3083 = vrot.slane %v450, %v3082
    %v3084 = vsub.f32 %v3078, %v3083
    %v3085 = vand.u32 2147483647, %v3084
    %v3086 = vadd.f32 %v3075, %v3085
    %3087 = vset.pattern.permute.xlu0 102
    %3088 = vperm.xlu0 %3087, %v469
    %v3089 = vpop.permute.xlu0 %3088
    %v3091 = vlaneseq
    %v3092 = vshrl.u32 %v3091, 7
    %v3093 = vsub.s32 6, %v3092
    %v3094 = vrot.slane %v450, %v3093
    %v3095 = vsub.f32 %v3089, %v3094
    %v3096 = vand.u32 2147483647, %v3095
    %v3097 = vadd.f32 %v3086, %v3096
    %3098 = vset.pattern.permute.xlu0 103
    %3099 = vperm.xlu0 %3098, %v469
    %v3100 = vpop.permute.xlu0 %3099
    %v3102 = vlaneseq
    %v3103 = vshrl.u32 %v3102, 7
    %v3104 = vsub.s32 7, %v3103
    %v3105 = vrot.slane %v450, %v3104
    %v3106 = vsub.f32 %v3100, %v3105
    %v3107 = vand.u32 2147483647, %v3106
    %v3108 = vadd.f32 %v3097, %v3107
    %3109 = vset.pattern.permute.xlu0 104
    %3110 = vperm.xlu0 %3109, %v469
    %v3111 = vpop.permute.xlu0 %3110
    %v3113 = vlaneseq
    %v3114 = vshrl.u32 %v3113, 7
    %v3115 = vsub.s32 0, %v3114
    %v3116 = vrot.slane %v455, %v3115
    %v3117 = vsub.f32 %v3111, %v3116
    %v3118 = vand.u32 2147483647, %v3117
    %v3119 = vadd.f32 %v3108, %v3118
    %3120 = vset.pattern.permute.xlu0 105
    %3121 = vperm.xlu0 %3120, %v469
    %v3122 = vpop.permute.xlu0 %3121
    %v3124 = vlaneseq
    %v3125 = vshrl.u32 %v3124, 7
    %v3126 = vsub.s32 1, %v3125
    %v3127 = vrot.slane %v455, %v3126
    %v3128 = vsub.f32 %v3122, %v3127
    %v3129 = vand.u32 2147483647, %v3128
    %v3130 = vadd.f32 %v3119, %v3129
    %3131 = vset.pattern.permute.xlu0 106
    %3132 = vperm.xlu0 %3131, %v469
    %v3133 = vpop.permute.xlu0 %3132
    %v3135 = vlaneseq
    %v3136 = vshrl.u32 %v3135, 7
    %v3137 = vsub.s32 2, %v3136
    %v3138 = vrot.slane %v455, %v3137
    %v3139 = vsub.f32 %v3133, %v3138
    %v3140 = vand.u32 2147483647, %v3139
    %v3141 = vadd.f32 %v3130, %v3140
    %3142 = vset.pattern.permute.xlu0 107
    %3143 = vperm.xlu0 %3142, %v469
    %v3144 = vpop.permute.xlu0 %3143
    %v3146 = vlaneseq
    %v3147 = vshrl.u32 %v3146, 7
    %v3148 = vsub.s32 3, %v3147
    %v3149 = vrot.slane %v455, %v3148
    %v3150 = vsub.f32 %v3144, %v3149
    %v3151 = vand.u32 2147483647, %v3150
    %v3152 = vadd.f32 %v3141, %v3151
    %3153 = vset.pattern.permute.xlu0 108
    %3154 = vperm.xlu0 %3153, %v469
    %v3155 = vpop.permute.xlu0 %3154
    %v3157 = vlaneseq
    %v3158 = vshrl.u32 %v3157, 7
    %v3159 = vsub.s32 4, %v3158
    %v3160 = vrot.slane %v455, %v3159
    %v3161 = vsub.f32 %v3155, %v3160
    %v3162 = vand.u32 2147483647, %v3161
    %v3163 = vadd.f32 %v3152, %v3162
    %3164 = vset.pattern.permute.xlu0 109
    %3165 = vperm.xlu0 %3164, %v469
    %v3166 = vpop.permute.xlu0 %3165
    %v3168 = vlaneseq
    %v3169 = vshrl.u32 %v3168, 7
    %v3170 = vsub.s32 5, %v3169
    %v3171 = vrot.slane %v455, %v3170
    %v3172 = vsub.f32 %v3166, %v3171
    %v3173 = vand.u32 2147483647, %v3172
    %v3174 = vadd.f32 %v3163, %v3173
    %3175 = vset.pattern.permute.xlu0 110
    %3176 = vperm.xlu0 %3175, %v469
    %v3177 = vpop.permute.xlu0 %3176
    %v3179 = vlaneseq
    %v3180 = vshrl.u32 %v3179, 7
    %v3181 = vsub.s32 6, %v3180
    %v3182 = vrot.slane %v455, %v3181
    %v3183 = vsub.f32 %v3177, %v3182
    %v3184 = vand.u32 2147483647, %v3183
    %v3185 = vadd.f32 %v3174, %v3184
    %3186 = vset.pattern.permute.xlu0 111
    %3187 = vperm.xlu0 %3186, %v469
    %v3188 = vpop.permute.xlu0 %3187
    %v3190 = vlaneseq
    %v3191 = vshrl.u32 %v3190, 7
    %v3192 = vsub.s32 7, %v3191
    %v3193 = vrot.slane %v455, %v3192
    %v3194 = vsub.f32 %v3188, %v3193
    %v3195 = vand.u32 2147483647, %v3194
    %v3196 = vadd.f32 %v3185, %v3195
    %v3197 = vsub.f32 0.0, %v3196
    %v3198 = vmul.f32 %v3197, 1.442695
    %v3199 = vpow.pop %v3198
    %v3200 = vsel %vm650, %v3199, 0.0
    %3201 = vadd.xlane.f32.xlu0 %v3200
    %v3202 = vpop.xlane.xlu0 %3201
    %3203 = vset.pattern.permute.xlu0 112
    %3204 = vperm.xlu0 %3203, %v469
    %v3205 = vpop.permute.xlu0 %3204
    %v3207 = vlaneseq
    %v3208 = vshrl.u32 %v3207, 7
    %v3209 = vsub.s32 0, %v3208
    %v3210 = vrot.slane %v460, %v3209
    %v3211 = vsub.f32 %v3205, %v3210
    %v3212 = vand.u32 2147483647, %v3211
    %v3213 = vadd.f32 %v3212, 0.0
    %3214 = vset.pattern.permute.xlu0 113
    %3215 = vperm.xlu0 %3214, %v469
    %v3216 = vpop.permute.xlu0 %3215
    %v3218 = vlaneseq
    %v3219 = vshrl.u32 %v3218, 7
    %v3220 = vsub.s32 1, %v3219
    %v3221 = vrot.slane %v460, %v3220
    %v3222 = vsub.f32 %v3216, %v3221
    %v3223 = vand.u32 2147483647, %v3222
    %v3224 = vadd.f32 %v3213, %v3223
    %3225 = vset.pattern.permute.xlu0 114
    %3226 = vperm.xlu0 %3225, %v469
    %v3227 = vpop.permute.xlu0 %3226
    %v3229 = vlaneseq
    %v3230 = vshrl.u32 %v3229, 7
    %v3231 = vsub.s32 2, %v3230
    %v3232 = vrot.slane %v460, %v3231
    %v3233 = vsub.f32 %v3227, %v3232
    %v3234 = vand.u32 2147483647, %v3233
    %v3235 = vadd.f32 %v3224, %v3234
    %3236 = vset.pattern.permute.xlu0 115
    %3237 = vperm.xlu0 %3236, %v469
    %v3238 = vpop.permute.xlu0 %3237
    %v3240 = vlaneseq
    %v3241 = vshrl.u32 %v3240, 7
    %v3242 = vsub.s32 3, %v3241
    %v3243 = vrot.slane %v460, %v3242
    %v3244 = vsub.f32 %v3238, %v3243
    %v3245 = vand.u32 2147483647, %v3244
    %v3246 = vadd.f32 %v3235, %v3245
    %3247 = vset.pattern.permute.xlu0 116
    %3248 = vperm.xlu0 %3247, %v469
    %v3249 = vpop.permute.xlu0 %3248
    %v3251 = vlaneseq
    %v3252 = vshrl.u32 %v3251, 7
    %v3253 = vsub.s32 4, %v3252
    %v3254 = vrot.slane %v460, %v3253
    %v3255 = vsub.f32 %v3249, %v3254
    %v3256 = vand.u32 2147483647, %v3255
    %v3257 = vadd.f32 %v3246, %v3256
    %3258 = vset.pattern.permute.xlu0 117
    %3259 = vperm.xlu0 %3258, %v469
    %v3260 = vpop.permute.xlu0 %3259
    %v3262 = vlaneseq
    %v3263 = vshrl.u32 %v3262, 7
    %v3264 = vsub.s32 5, %v3263
    %v3265 = vrot.slane %v460, %v3264
    %v3266 = vsub.f32 %v3260, %v3265
    %v3267 = vand.u32 2147483647, %v3266
    %v3268 = vadd.f32 %v3257, %v3267
    %3269 = vset.pattern.permute.xlu0 118
    %3270 = vperm.xlu0 %3269, %v469
    %v3271 = vpop.permute.xlu0 %3270
    %v3273 = vlaneseq
    %v3274 = vshrl.u32 %v3273, 7
    %v3275 = vsub.s32 6, %v3274
    %v3276 = vrot.slane %v460, %v3275
    %v3277 = vsub.f32 %v3271, %v3276
    %v3278 = vand.u32 2147483647, %v3277
    %v3279 = vadd.f32 %v3268, %v3278
    %3280 = vset.pattern.permute.xlu0 119
    %3281 = vperm.xlu0 %3280, %v469
    %v3282 = vpop.permute.xlu0 %3281
    %v3284 = vlaneseq
    %v3285 = vshrl.u32 %v3284, 7
    %v3286 = vsub.s32 7, %v3285
    %v3287 = vrot.slane %v460, %v3286
    %v3288 = vsub.f32 %v3282, %v3287
    %v3289 = vand.u32 2147483647, %v3288
    %v3290 = vadd.f32 %v3279, %v3289
    %3291 = vset.pattern.permute.xlu0 120
    %3292 = vperm.xlu0 %3291, %v469
    %v3293 = vpop.permute.xlu0 %3292
    %v3295 = vlaneseq
    %v3296 = vshrl.u32 %v3295, 7
    %v3297 = vsub.s32 0, %v3296
    %v3298 = vrot.slane %v465, %v3297
    %v3299 = vsub.f32 %v3293, %v3298
    %v3300 = vand.u32 2147483647, %v3299
    %v3301 = vadd.f32 %v3290, %v3300
    %3302 = vset.pattern.permute.xlu0 121
    %3303 = vperm.xlu0 %3302, %v469
    %v3304 = vpop.permute.xlu0 %3303
    %v3306 = vlaneseq
    %v3307 = vshrl.u32 %v3306, 7
    %v3308 = vsub.s32 1, %v3307
    %v3309 = vrot.slane %v465, %v3308
    %v3310 = vsub.f32 %v3304, %v3309
    %v3311 = vand.u32 2147483647, %v3310
    %v3312 = vadd.f32 %v3301, %v3311
    %3313 = vset.pattern.permute.xlu0 122
    %3314 = vperm.xlu0 %3313, %v469
    %v3315 = vpop.permute.xlu0 %3314
    %v3317 = vlaneseq
    %v3318 = vshrl.u32 %v3317, 7
    %v3319 = vsub.s32 2, %v3318
    %v3320 = vrot.slane %v465, %v3319
    %v3321 = vsub.f32 %v3315, %v3320
    %v3322 = vand.u32 2147483647, %v3321
    %v3323 = vadd.f32 %v3312, %v3322
    %3324 = vset.pattern.permute.xlu0 123
    %3325 = vperm.xlu0 %3324, %v469
    %v3326 = vpop.permute.xlu0 %3325
    %v3328 = vlaneseq
    %v3329 = vshrl.u32 %v3328, 7
    %v3330 = vsub.s32 3, %v3329
    %v3331 = vrot.slane %v465, %v3330
    %v3332 = vsub.f32 %v3326, %v3331
    %v3333 = vand.u32 2147483647, %v3332
    %v3334 = vadd.f32 %v3323, %v3333
    %3335 = vset.pattern.permute.xlu0 124
    %3336 = vperm.xlu0 %3335, %v469
    %v3337 = vpop.permute.xlu0 %3336
    %v3339 = vlaneseq
    %v3340 = vshrl.u32 %v3339, 7
    %v3341 = vsub.s32 4, %v3340
    %v3342 = vrot.slane %v465, %v3341
    %v3343 = vsub.f32 %v3337, %v3342
    %v3344 = vand.u32 2147483647, %v3343
    %v3345 = vadd.f32 %v3334, %v3344
    %3346 = vset.pattern.permute.xlu0 125
    %3347 = vperm.xlu0 %3346, %v469
    %v3348 = vpop.permute.xlu0 %3347
    %v3350 = vlaneseq
    %v3351 = vshrl.u32 %v3350, 7
    %v3352 = vsub.s32 5, %v3351
    %v3353 = vrot.slane %v465, %v3352
    %v3354 = vsub.f32 %v3348, %v3353
    %v3355 = vand.u32 2147483647, %v3354
    %v3356 = vadd.f32 %v3345, %v3355
    %3357 = vset.pattern.permute.xlu0 126
    %3358 = vperm.xlu0 %3357, %v469
    %v3359 = vpop.permute.xlu0 %3358
    %v3361 = vlaneseq
    %v3362 = vshrl.u32 %v3361, 7
    %v3363 = vsub.s32 6, %v3362
    %v3364 = vrot.slane %v465, %v3363
    %v3365 = vsub.f32 %v3359, %v3364
    %v3366 = vand.u32 2147483647, %v3365
    %v3367 = vadd.f32 %v3356, %v3366
    %3368 = vset.pattern.permute.xlu0 127
    %3369 = vperm.xlu0 %3368, %v469
    %v3370 = vpop.permute.xlu0 %3369
    %v3372 = vlaneseq
    %v3373 = vshrl.u32 %v3372, 7
    %v3374 = vsub.s32 7, %v3373
    %v3375 = vrot.slane %v465, %v3374
    %v3376 = vsub.f32 %v3370, %v3375
    %v3377 = vand.u32 2147483647, %v3376
    %v3378 = vadd.f32 %v3367, %v3377
    %v3379 = vsub.f32 0.0, %v3378
    %v3380 = vmul.f32 %v3379, 1.442695
    %v3381 = vpow.pop %v3380
    %v3382 = vsel %vm650, %v3381, 0.0
    %3383 = vadd.xlane.f32.xlu0 %v3382
    %v3384 = vpop.xlane.xlu0 %3383
    %v3385 = vld [vmem:[#allocation2] sm:$0xff]
    %vm3386 = vcmask 7168
    %v3387 = vsel %vm3386, %v653, %v835
    %vm3388 = vcmask 15360
    %v3389 = vsel %vm3388, %v3387, %v1017
    %vm3390 = vcmask 23552
    %v3391 = vsel %vm3390, %v3389, %v1199
    %vm3392 = vcmask 31744
    %v3393 = vsel %vm3392, %v3391, %v1381
    %vm3394 = vcmask 39936
    %v3395 = vsel %vm3394, %v3393, %v1563
    %vm3396 = vcmask 48128
    %v3397 = vsel %vm3396, %v3395, %v1745
    %vm3398 = vcmask 56320
    %v3399 = vsel %vm3398, %v3397, %v1927
    %v3400 = vsel %vm650, %v3399, %v2110
    %vm3401 = vcmask 72704
    %v3402 = vsel %vm3401, %v3400, %v2292
    %vm3403 = vcmask 80896
    %v3404 = vsel %vm3403, %v3402, %v2474
    %vm3405 = vcmask 89088
    %v3406 = vsel %vm3405, %v3404, %v2656
    %vm3407 = vcmask 97280
    %v3408 = vsel %vm3407, %v3406, %v2838
    %vm3409 = vcmask 105472
    %v3410 = vsel %vm3409, %v3408, %v3020
    %vm3411 = vcmask 113664
    %v3412 = vsel %vm3411, %v3410, %v3202
    %vm3413 = vcmask 121856
    %v3414 = vsel %vm3413, %v3412, %v3384
    %v3415 = vadd.f32 %v3385, %v3414
    %vm3416 = vcmask 130048
    %3417 = vst.msk [vmem:[#allocation2] sm:$0xff] %vm3416, %v3415
    // Predicated region
    $region22: #{tpu_custom_call.1} parent=1 // pred_check
      %p3418 = pneg %p18
    $region23: #{tpu_custom_call.1} parent=1 // pred_check_branch
      %3420 = sbr.rel (%p3418) target = $region25
    $region24: #{tpu_custom_call.1} parent=1 // pred_region
      %v3421 = vld [vmem:[#allocation2] sm:$0xff]
      %v3422 = vsub.f32 %v3421, 1.0
      %3423 = vst.msk [vmem:[#allocation4] sm:$0xff] %vm3416, %v3422
    $region25: #{tpu_custom_call.1} parent=1 // pred_fallthru
      _
    // Predicated region
    $region26: #{tpu_custom_call.1} parent=1 // pred_check
      _
    $region27: #{tpu_custom_call.1} parent=1 // pred_check_branch
      %3425 = sbr.rel (0) target = $region29
    $region28: #{tpu_custom_call.1} parent=1 // pred_region
      %s3427 = ssub.s32 128, 128
      %3428 = vsyncadd [#allocation5], %s3427
      %s3430 = sshll.u32 [#allocation4], 4
      %s3431 = int_to_ptr.vmem [resolvable:$true] %s3430
      %3433 = dma.vmem_to_hbm [thread:$0]  %s3431, 128, %s4, [#allocation5]
    $region29: #{tpu_custom_call.1} parent=1 // pred_fallthru
      _
    // Predicated region
    $region30: #{tpu_custom_call.1} parent=1 // pred_check
      _
    $region31: #{tpu_custom_call.1} parent=1 // pred_check_branch
      %3435 = sbr.rel (0) target = $region33
    $region32: #{tpu_custom_call.1} parent=1 // pred_region
      %3436 = dma.done [#allocation5], 128
    $region33: #{tpu_custom_call.1} parent=1 // pred_fallthru
      _
    %3437 = vsyncpa [#allocation5], 1

</llo_original>
